<compile_context>
chip_gen: v7x
topology: tpu7x:2x2x1
jax: 0.10.0
libtpu: 0.0.40
codegen_flags: <defaults>
</compile_context>

<pallas_src>
import functools
import math

import jax
import jax.numpy as jnp
from jax import lax
from jax.experimental import pallas as pl
from jax.experimental.pallas import tpu as pltpu

_NEG_INF = -1e30                 # large-negative instead of -inf (avoids inf-inf NaNs)

# CompilerParams name (defensive fallback for older jax builds).
_CompilerParams = getattr(pltpu, "CompilerParams", None) or getattr(
    pltpu, "TPUCompilerParams")


# ----------------------------------------------------------------------------
# small helpers
# ----------------------------------------------------------------------------

def _round_up(x, m):
    return (x + m - 1) // m * m


@functools.lru_cache(maxsize=None)
def _vmem_limit_bytes():
    """Scoped-VMEM limit ≈ 3/4 of physical VMEM (96 MiB on v5e/v6e which have
    128 MiB, 48 MiB on v7x which has 64 MiB/TC); conservative 48 MiB fallback."""
    limit = 48 * 1024 * 1024
    try:
        cap = int(getattr(pltpu.get_tpu_info(), "vmem_capacity_bytes", 0))
        if cap > 0:
            limit = min(cap * 3 // 4, 96 * 1024 * 1024)
    except Exception:
        pass
    return int(max(limit, 32 * 1024 * 1024))


def _cparams(semantics):
    return _CompilerParams(dimension_semantics=semantics,
                           vmem_limit_bytes=_vmem_limit_bytes())


def _token_tile(n):
    # 512-wide token tiles for real ViT-det token counts (≈85% of HBM roofline
    # vs ~63% at 256); clamp for small demos.
    if n >= 512:
        return 512
    if n >= 256:
        return 256
    return _round_up(max(n, 8), 8)


def _head_group(num_heads, head_dim):
    """Smallest head-group size whose lane width (g*head_dim) is 128-aligned,
    falling back to all heads (== full C, also a legal full-dim block)."""
    for g in range(1, num_heads + 1):
        if num_heads % g == 0 and (g * head_dim) % 128 == 0:
            return g
    return num_heads


def _hidden_tile(hid, c):
    """Largest MLP hidden tile whose double-buffered bf16 fc1+fc2 footprint
    (≈ 8*C*t bytes) fits ~40% of the scoped VMEM budget; prefer the full hidden
    dim (weights resident, no reduction grid axis)."""
    cap = max(int(0.4 * _vmem_limit_bytes()) // (8 * c), 128)
    if hid <= cap:
        return hid
    t = (cap // 128) * 128
    while t >= 128:
        if hid % t == 0:
            return t
        t -= 128
    return hid


def _layernorm_f32(x, w, b, eps=1e-5):
    # Two-pass (centered) variance for parity with torch LayerNorm.
    mean = jnp.mean(x, axis=-1, keepdims=True)
    xc = x - mean
    var = jnp.mean(xc * xc, axis=-1, keepdims=True)
    return xc * lax.rsqrt(var + eps) * w + b


def _gelu_tanh(x):
    # tanh-approximate GELU (tanh runs on the EUP slot; bf16 EUP path on v6e/v7x).
    # TODO(synk): torch nn.GELU defaults to exact erf; tanh approx differs ~1e-3.
    c = 0.7978845608028654  # sqrt(2/pi)
    return 0.5 * x * (1.0 + jnp.tanh(c * (x + 0.044715 * x * x * x)))


# ----------------------------------------------------------------------------
# Pallas kernels
# ----------------------------------------------------------------------------

def _patch_embed_kernel(x_ref, w_ref, b_ref, pos_ref, o_ref):
    # x_ref: (1, T, K) bf16 flattened patches; w_ref: (K, D) bf16;
    # b_ref: (1, D) f32; pos_ref: (T, D) f32; o_ref: (1, T, D) bf16.
    y = jnp.dot(x_ref[0], w_ref[...], preferred_element_type=jnp.float32)
    o_ref[0] = (y + b_ref[...] + pos_ref[...]).astype(o_ref.dtype)


def _qkv_kernel(x_ref, n1w_ref, n1b_ref, qkvw_ref, qkvb_ref,
                q_ref, k_ref, v_ref, *, eps=1e-5):
    # LN1 + fused qkv projection for one (batch, token-tile).  q/k/v are emitted
    # in the merged lane-dense (T, C) layout (no per-head slab copies); the
    # 1/sqrt(head_dim) scale is already folded into the q part of the weights.
    x = x_ref[0].astype(jnp.float32)                      # (T, C)
    xn = _layernorm_f32(x, n1w_ref[...], n1b_ref[...], eps)
    y = jnp.dot(xn.astype(jnp.bfloat16), qkvw_ref[...],
                preferred_element_type=jnp.float32)
    y = (y + qkvb_ref[...]).astype(q_ref.dtype)           # (T, 3C)
    c = q_ref.shape[-1]
    q_ref[0] = y[:, :c]
    k_ref[0] = y[:, c:2 * c]
    v_ref[0] = y[:, 2 * c:3 * c]


def _attn_kernel(q_ref, k_ref, v_ref, o_ref, m_sc, l_sc, acc_sc, *,
                 heads, head_dim, key_tile, n_real, mask_keys):
    # Flash attention for one (batch, head-group, q-tile).  The FULL sequence of
    # K/V for this head group is resident in VMEM (blocks do not change while the
    # q-tile grid axis iterates), and key chunks are looped inside the kernel, so
    # K/V are streamed from HBM exactly once per (batch, head-group).
    #   q_ref: (1, TQ, G*hd); k_ref/v_ref: (1, Npad, G*hd); o_ref: (1, TQ, G*hd)
    #   m_sc/l_sc: (G, TQ, 1) f32; acc_sc: (G, TQ, hd) f32
    nk = k_ref.shape[1] // key_tile
    qg = q_ref[0]                                         # (TQ, G*hd) bf16
    m_sc[...] = jnp.full_like(m_sc, _NEG_INF)
    l_sc[...] = jnp.zeros_like(l_sc)
    acc_sc[...] = jnp.zeros_like(acc_sc)

    def body(i, carry):
        start = pl.multiple_of(i * key_tile, key_tile)
        kc = k_ref[0, pl.ds(start, key_tile), :]          # (TK, G*hd) bf16
        vc = v_ref[0, pl.ds(start, key_tile), :]
        for h in range(heads):                            # compile-time head loop
            lo = h * head_dim
            q = qg[:, lo:lo + head_dim]
            k = kc[:, lo:lo + head_dim]
            v = vc[:, lo:lo + head_dim]
            # Contract last axes of q and k — no explicit k.T materialization.
            s = lax.dot_general(q, k, (((1,), (1,)), ((), ())),
                                preferred_element_type=jnp.float32)   # (TQ, TK)
            if mask_keys:
                # The last key chunk always contains >= 1 real key (n_pad is the
                # round-up of n_real), so a fully-masked chunk cannot occur.
                key_idx = start + lax.broadcasted_iota(jnp.int32, s.shape, 1)
                s = jnp.where(key_idx < n_real, s, _NEG_INF)
            m_prev = m_sc[h]
            m_new = jnp.maximum(m_prev, jnp.max(s, axis=-1, keepdims=True))
            alpha = jnp.exp(m_prev - m_new)
            p = jnp.exp(s - m_new)
            l_sc[h] = alpha * l_sc[h] + jnp.sum(p, axis=-1, keepdims=True)
            acc_sc[h] = alpha * acc_sc[h] + jnp.dot(
                p.astype(v.dtype), v, preferred_element_type=jnp.float32)
            m_sc[h] = m_new
        return carry

    lax.fori_loop(0, nk, body, 0)

    # Single lane-dense store of the whole head-group block, directly into the
    # merged (B, N, C) output layout (no separate head-merge kernel needed).
    parts = [(acc_sc[h] * pl.reciprocal(l_sc[h], approx=True)).astype(o_ref.dtype)
             for h in range(heads)]
    o_ref[0] = parts[0] if heads == 1 else jnp.concatenate(parts, axis=-1)


def _proj_mlp_kernel(attn_ref, x_ref, pw_ref, pb_ref, n2w_ref, n2b_ref,
                     fc1w_ref, fc1b_ref, fc2w_ref, fc2b_ref, o_ref,
                     x1_sc, xn_sc, acc_sc, *, eps=1e-5):
    # Fused: output projection + residual1 (at hi==0, into VMEM scratch so the
    # intermediate never round-trips HBM), then LN2 + MLP tiled over the hidden
    # dim (reduction grid axis) with f32 accumulation, then residual2.
    hi = pl.program_id(2)

    @pl.when(hi == 0)
    def _():
        y = jnp.dot(attn_ref[0], pw_ref[...], preferred_element_type=jnp.float32)
        x1 = y + pb_ref[...] + x_ref[0].astype(jnp.float32)
        x1_sc[...] = x1
        xn_sc[...] = _layernorm_f32(x1, n2w_ref[...], n2b_ref[...],
                                    eps).astype(xn_sc.dtype)
        acc_sc[...] = jnp.zeros_like(acc_sc)

    h = jnp.dot(xn_sc[...], fc1w_ref[...],
                preferred_element_type=jnp.float32) + fc1b_ref[...]
    h = _gelu_tanh(h.astype(jnp.bfloat16))                # bf16 EUP GELU
    acc_sc[...] += jnp.dot(h, fc2w_ref[...], preferred_element_type=jnp.float32)

    @pl.when(hi == pl.num_programs(2) - 1)
    def _():
        o_ref[0] = (x1_sc[...] + acc_sc[...] + fc2b_ref[...]).astype(o_ref.dtype)


# ----------------------------------------------------------------------------
# Wrappers (glue: reshapes, parameter plumbing, pallas_call plumbing)
# ----------------------------------------------------------------------------

def get_abs_pos(pos_embed, has_cls_token, hw):
    """Mirror of torch get_abs_pos when the pretrain grid equals the token grid
    (bicubic resize with matching sizes is the identity)."""
    h, w = hw
    if has_cls_token:
        pos_embed = pos_embed[:, 1:]
    n = pos_embed.shape[1]
    size = int(math.sqrt(n))
    assert size * size == n
    # TODO(synk): bicubic interpolation when (h, w) != (size, size); not needed
    # here because pretrain grid == token grid.
    assert (h, w) == (size, size)
    return pos_embed.reshape(size * size, -1).astype(jnp.float32)   # (N, C)


def patch_embed(x_nchw, w_mat, b_row, pos_nd, patch, n_pad, tok_tile):
    """PatchEmbed (Conv2d k=s=patch) + abs-pos add, tiled over tokens."""
    B, cin, H, W = x_nchw.shape
    Hp, Wp = H // patch, W // patch
    N = Hp * Wp
    K, D = w_mat.shape
    # Extract non-overlapping patches; per-patch flatten order = (cin, ph, pw)
    # to match nn.Conv2d weight layout (D, cin, ph, pw).  Done in bf16 to halve
    # the XLA-side transpose traffic.
    # TODO(synk): fold this flatten into the BlockSpec index_map to avoid the
    # extra XLA pass over the image entirely.
    xp = x_nchw.astype(jnp.bfloat16).reshape(B, cin, Hp, patch, Wp, patch)
    xp = xp.transpose(0, 2, 4, 1, 3, 5).reshape(B, N, K)
    if n_pad != N:
        xp = jnp.pad(xp, ((0, 0), (0, n_pad - N), (0, 0)))
        pos_nd = jnp.pad(pos_nd, ((0, n_pad - N), (0, 0)))

    out = pl.pallas_call(
        _patch_embed_kernel,
        out_shape=jax.ShapeDtypeStruct((B, n_pad, D), jnp.bfloat16),
        grid=(B, n_pad // tok_tile),
        in_specs=[
            pl.BlockSpec((1, tok_tile, K), lambda b, t: (b, t, 0)),
            pl.BlockSpec((K, D), lambda b, t: (0, 0)),
            pl.BlockSpec((1, D), lambda b, t: (0, 0)),
            pl.BlockSpec((tok_tile, D), lambda b, t: (t, 0)),
        ],
        out_specs=pl.BlockSpec((1, tok_tile, D), lambda b, t: (b, t, 0)),
        compiler_params=_cparams(("parallel", "parallel")),
    )(xp, w_mat, b_row, pos_nd)
    return out, (Hp, Wp)


def vit_block(x_bnc, blk, *, num_heads, n_real, tok_tile, hid_tile):
    """One transformer Block over (B, N_pad, C) bf16 tokens (3 pallas_calls)."""
    B, Np, C = x_bnc.shape
    hd = C // num_heads
    nt = Np // tok_tile
    hid = blk['fc1_w'].shape[1]
    nh = hid // hid_tile
    g = _head_group(num_heads, hd)      # heads per attention grid step
    gc = g * hd                         # lane width per step (128-aligned or == C)
    ng = num_heads // g
    mask_keys = (Np != n_real)

    # ---- LN1 + fused QKV projection; q/k/v stay in merged (B, Np, C) layout ----
    q, k, v = pl.pallas_call(
        _qkv_kernel,
        out_shape=tuple(jax.ShapeDtypeStruct((B, Np, C), jnp.bfloat16)
                        for _ in range(3)),
        grid=(B, nt),
        in_specs=[
            pl.BlockSpec((1, tok_tile, C), lambda b, t: (b, t, 0)),
            pl.BlockSpec((1, C), lambda b, t: (0, 0)),
            pl.BlockSpec((1, C), lambda b, t: (0, 0)),
            pl.BlockSpec((C, 3 * C), lambda b, t: (0, 0)),
            pl.BlockSpec((1, 3 * C), lambda b, t: (0, 0)),
        ],
        out_specs=tuple(pl.BlockSpec((1, tok_tile, C), lambda b, t: (b, t, 0))
                        for _ in range(3)),
        compiler_params=_cparams(("parallel", "parallel")),
    )(x_bnc, blk['n1_w'], blk['n1_b'], blk['qkv_w'], blk['qkv_b'])

    # ---- flash attention: full-sequence K/V resident per (batch, head-group),
    #      key chunks looped inside the kernel (no per-q-tile K/V re-streaming),
    #      output written lane-dense directly into the merged (B, Np, C) layout ----
    attn = pl.pallas_call(
        functools.partial(_attn_kernel, heads=g, head_dim=hd, key_tile=tok_tile,
                          n_real=n_real, mask_keys=mask_keys),
        out_shape=jax.ShapeDtypeStruct((B, Np, C), jnp.bfloat16),
        grid=(B, ng, nt),
        in_specs=[
            pl.BlockSpec((1, tok_tile, gc), lambda b, hg, qi: (b, qi, hg)),
            pl.BlockSpec((1, Np, gc), lambda b, hg, qi: (b, 0, hg)),
            pl.BlockSpec((1, Np, gc), lambda b, hg, qi: (b, 0, hg)),
        ],
        out_specs=pl.BlockSpec((1, tok_tile, gc), lambda b, hg, qi: (b, qi, hg)),
        scratch_shapes=[
            pltpu.VMEM((g, tok_tile, 1), jnp.float32),    # running max m (per head)
            pltpu.VMEM((g, tok_tile, 1), jnp.float32),    # running denom l
            pltpu.VMEM((g, tok_tile, hd), jnp.float32),   # f32 accumulator
        ],
        compiler_params=_cparams(("parallel", "parallel", "parallel")),
    )(q, k, v)

    # ---- proj + residual1 + LN2 + MLP + residual2 (fused; hidden-dim tiled) ----
    x2 = pl.pallas_call(
        _proj_mlp_kernel,
        out_shape=jax.ShapeDtypeStruct((B, Np, C), jnp.bfloat16),
        grid=(B, nt, nh),
        in_specs=[
            pl.BlockSpec((1, tok_tile, C), lambda b, t, h: (b, t, 0)),   # attn
            pl.BlockSpec((1, tok_tile, C), lambda b, t, h: (b, t, 0)),   # residual x
            pl.BlockSpec((C, C), lambda b, t, h: (0, 0)),                # proj_w
            pl.BlockSpec((1, C), lambda b, t, h: (0, 0)),                # proj_b
            pl.BlockSpec((1, C), lambda b, t, h: (0, 0)),                # n2_w
            pl.BlockSpec((1, C), lambda b, t, h: (0, 0)),                # n2_b
            pl.BlockSpec((C, hid_tile), lambda b, t, h: (0, h)),         # fc1_w
            pl.BlockSpec((1, hid_tile), lambda b, t, h: (0, h)),         # fc1_b
            pl.BlockSpec((hid_tile, C), lambda b, t, h: (h, 0)),         # fc2_w
            pl.BlockSpec((1, C), lambda b, t, h: (0, 0)),                # fc2_b
        ],
        out_specs=pl.BlockSpec((1, tok_tile, C), lambda b, t, h: (b, t, 0)),
        scratch_shapes=[
            pltpu.VMEM((tok_tile, C), jnp.float32),    # x1 = x + proj(attn)
            pltpu.VMEM((tok_tile, C), jnp.bfloat16),   # LN2(x1), reused across hid tiles
            pltpu.VMEM((tok_tile, C), jnp.float32),    # fc2 accumulator
        ],
        compiler_params=_cparams(("parallel", "parallel", "arbitrary")),
    )(attn, x_bnc, blk['proj_w'], blk['proj_b'], blk['n2_w'], blk['n2_b'],
      blk['fc1_w'], blk['fc1_b'], blk['fc2_w'], blk['fc2_b'])
    return x2


def vit_forward(x_nchw, prep, *, patch, num_heads):
    B, _, H, W = x_nchw.shape
    assert H % patch == 0 and W % patch == 0
    Hp, Wp = H // patch, W // patch
    N = Hp * Wp
    tok_tile = _token_tile(N)
    n_pad = _round_up(N, tok_tile)

    pos = get_abs_pos(prep['pos_embed'], True, (Hp, Wp))            # (N, D) f32
    x, _ = patch_embed(x_nchw, prep['patch_w'], prep['patch_b'], pos,
                       patch, n_pad, tok_tile)                      # (B, Np, D) bf16

    D = x.shape[-1]
    hid = prep['blocks'][0]['fc1_w'].shape[1]
    hid_tile = _hidden_tile(hid, D)
    for blk in prep['blocks']:
        x = vit_block(x, blk, num_heads=num_heads, n_real=N,
                      tok_tile=tok_tile, hid_tile=hid_tile)

    # encoder_norm defaults to Identity.
    x = x[:, :N].astype(jnp.float32).reshape(B, Hp, Wp, D).transpose(0, 3, 1, 2)
    return {'last_feat': x}


# ----------------------------------------------------------------------------
# Parameter init (torch-like, f32) and one-time preparation (bf16 + folds)
# ----------------------------------------------------------------------------

def init_params(key, *, in_chans, patch, embed_dim, depth, num_heads,
                mlp_ratio, num_positions):
    hid = int(embed_dim * mlp_ratio)

    def dense(k, shape, std=0.02):
        return std * jax.random.normal(k, shape, jnp.float32)

    ks = jax.random.split(key, 3 + depth)
    params = {
        'patch_w': dense(ks[0], (embed_dim, in_chans, patch, patch)),
        'patch_b': dense(ks[1], (embed_dim,)),
        'pos_embed': 0.02 * jax.random.truncated_normal(
            ks[2], -2.0, 2.0, (1, num_positions, embed_dim), jnp.float32),
        'blocks': [],
    }
    for i in range(depth):
        bk = jax.random.split(ks[3 + i], 8)
        params['blocks'].append({
            'n1_w': jnp.ones((1, embed_dim), jnp.float32),
            'n1_b': jnp.zeros((1, embed_dim), jnp.float32),
            'qkv_w': dense(bk[0], (embed_dim, 3 * embed_dim)),
            'qkv_b': dense(bk[1], (1, 3 * embed_dim)),
            'proj_w': dense(bk[2], (embed_dim, embed_dim)),
            'proj_b': dense(bk[3], (1, embed_dim)),
            'n2_w': jnp.ones((1, embed_dim), jnp.float32),
            'n2_b': jnp.zeros((1, embed_dim), jnp.float32),
            'fc1_w': dense(bk[4], (embed_dim, hid)),
            'fc1_b': dense(bk[5], (1, hid)),
            'fc2_w': dense(bk[6], (hid, embed_dim)),
            'fc2_b': dense(bk[7], (1, embed_dim)),
        })
    return params


def prepare_params(params, *, num_heads):
    """One-time weight transform outside the hot path: reshape the conv weight
    to a matmul operand, fold 1/sqrt(head_dim) into the q part of qkv (weight
    AND bias), cast streamed weights to bf16 (biases / LN params stay f32)."""
    D, cin, ph, pw = params['patch_w'].shape
    prep = {
        'patch_w': params['patch_w'].reshape(D, cin * ph * pw).T.astype(jnp.bfloat16),
        'patch_b': params['patch_b'].reshape(1, D).astype(jnp.float32),
        'pos_embed': params['pos_embed'],
        'blocks': [],
    }
    for blk in params['blocks']:
        C = blk['qkv_w'].shape[0]
        scale = (C // num_heads) ** (-0.5)
        qkv_w = blk['qkv_w'].at[:, :C].multiply(scale)
        qkv_b = blk['qkv_b'].at[:, :C].multiply(scale)
        prep['blocks'].append({
            'n1_w': blk['n1_w'].astype(jnp.float32),
            'n1_b': blk['n1_b'].astype(jnp.float32),
            'qkv_w': qkv_w.astype(jnp.bfloat16),
            'qkv_b': qkv_b.astype(jnp.float32),
            'proj_w': blk['proj_w'].astype(jnp.bfloat16),
            'proj_b': blk['proj_b'].astype(jnp.float32),
            'n2_w': blk['n2_w'].astype(jnp.float32),
            'n2_b': blk['n2_b'].astype(jnp.float32),
            'fc1_w': blk['fc1_w'].astype(jnp.bfloat16),
            'fc1_b': blk['fc1_b'].astype(jnp.float32),
            'fc2_w': blk['fc2_w'].astype(jnp.bfloat16),
            'fc2_b': blk['fc2_b'].astype(jnp.float32),
        })
    return prep


# ----------------------------------------------------------------------------

if __name__ == "__main__":
    # Small shapes consistent with the module:
    #   batch=2, in_chans=3, image 64x64, patch 16 -> 4x4 = 16 tokens,
    #   embed_dim=32, 4 heads, mlp_ratio=4, depth=2.
    #   pretrain_img_size=64 -> pos grid 4x4 (+1 cls token) = 17 positions.
    B, in_chans, H, W = 2, 3, 64, 64
    patch = 16
    embed_dim = 32
    depth = 2
    num_heads = 4
    mlp_ratio = 4.0
    num_positions = (H // patch) * (W // patch) + 1   # pretrain grid + cls

    root = jax.random.PRNGKey(0)
    k_param, k_x = jax.random.split(root)
    params = init_params(k_param, in_chans=in_chans, patch=patch,
                         embed_dim=embed_dim, depth=depth,
                         num_heads=num_heads, mlp_ratio=mlp_ratio,
                         num_positions=num_positions)
    prep = prepare_params(params, num_heads=num_heads)
    x = jax.random.normal(k_x, (B, in_chans, H, W), jnp.float32)

    fwd = jax.jit(functools.partial(vit_forward, patch=patch,
                                    num_heads=num_heads))
    out = fwd(x, prep)
    feat = jax.block_until_ready(out['last_feat'])
    assert feat.shape == (B, embed_dim, H // patch, W // patch), feat.shape
    assert bool(jnp.all(jnp.isfinite(feat)))
    print("KERNEL_OK")
</pallas_src>

<mosaic_0001>
module attributes {stable_mosaic.version = 11 : i64} {
  func.func @_patch_embed_kernel(%arg0: i32, %arg1: i32, %arg2: memref<1x16x768xbf16, #tpu.memory_space<vmem>>, %arg3: memref<768x32xbf16, #tpu.memory_space<vmem>>, %arg4: memref<1x32xf32, #tpu.memory_space<vmem>>, %arg5: memref<16x32xf32, #tpu.memory_space<vmem>>, %arg6: memref<1x16x32xbf16, #tpu.memory_space<vmem>>) attributes {dimension_semantics = [#tpu.dimension_semantics<parallel>, #tpu.dimension_semantics<parallel>], iteration_bounds = array<i64: 2, 1>, scalar_prefetch = 0 : i64, scratch_operands = 0 : i64, tpu.core_type = #tpu.core_type<tc>, window_params = [{transform_indices = @transform_0, window_bounds = array<i64: 1, 16, 768>}, {pipeline_mode = #tpu.pipeline_mode<synchronous>, transform_indices = @transform_1, window_bounds = array<i64: 768, 32>}, {pipeline_mode = #tpu.pipeline_mode<synchronous>, transform_indices = @transform_2, window_bounds = array<i64: 1, 32>}, {transform_indices = @transform_3, window_bounds = array<i64: 16, 32>}, {transform_indices = @transform_4, window_bounds = array<i64: 1, 16, 32>}]} {
    %c0 = arith.constant 0 : index
    %c0_0 = arith.constant 0 : index
    %c0_1 = arith.constant 0 : index
    %0 = vector.load %arg2[%c0, %c0_0, %c0_1] : memref<1x16x768xbf16, #tpu.memory_space<vmem>>, vector<1x16x768xbf16>
    %1 = vector.shape_cast %0 : vector<1x16x768xbf16> to vector<16x768xbf16>
    %c0_2 = arith.constant 0 : index
    %c0_3 = arith.constant 0 : index
    %2 = vector.load %arg3[%c0_2, %c0_3] : memref<768x32xbf16, #tpu.memory_space<vmem>>, vector<768x32xbf16>
    %cst = arith.constant dense<0.000000e+00> : vector<16x32xf32>
    %3 = tpu.matmul %1, %2, %cst {dimension_numbers = #tpu.dot_dimension_numbers<[1], [0], [0], [1], [0, 0, 1, 1], [], []>} : vector<16x768xbf16>, vector<768x32xbf16>, vector<16x32xf32> -> vector<16x32xf32>
    %c0_4 = arith.constant 0 : index
    %c0_5 = arith.constant 0 : index
    %4 = vector.load %arg4[%c0_4, %c0_5] : memref<1x32xf32, #tpu.memory_space<vmem>>, vector<1x32xf32>
    %5 = vector.broadcast %4 : vector<1x32xf32> to vector<16x32xf32>
    %6 = arith.addf %3, %5 : vector<16x32xf32>
    %c0_6 = arith.constant 0 : index
    %c0_7 = arith.constant 0 : index
    %7 = vector.load %arg5[%c0_6, %c0_7] : memref<16x32xf32, #tpu.memory_space<vmem>>, vector<16x32xf32>
    %8 = arith.addf %6, %7 : vector<16x32xf32>
    %9 = arith.truncf %8 : vector<16x32xf32> to vector<16x32xbf16>
    %c0_8 = arith.constant 0 : index
    %c0_9 = arith.constant 0 : index
    %c0_10 = arith.constant 0 : index
    %10 = vector.load %arg6[%c0_8, %c0_9, %c0_10] : memref<1x16x32xbf16, #tpu.memory_space<vmem>>, vector<1x16x32xbf16>
    %11 = vector.shape_cast %10 : vector<1x16x32xbf16> to vector<16x32xbf16>
    %12 = vector.shape_cast %9 : vector<16x32xbf16> to vector<1x16x32xbf16>
    tpu.vector_store %arg6[%c0_8, %c0_9, %c0_10], %12 {strides = array<i32>} : memref<1x16x32xbf16, #tpu.memory_space<vmem>>, vector<1x16x32xbf16>,
    return
  }
  func.func @transform_0(%arg0: i32, %arg1: i32) -> (i32, i32, i32) {
    %c0_i32 = arith.constant 0 : i32
    %c0_i32_0 = arith.constant 0 : i32
    return %arg0, %arg1, %c0_i32 : i32, i32, i32
  }
  func.func @transform_1(%arg0: i32, %arg1: i32) -> (i32, i32) {
    %c0_i32 = arith.constant 0 : i32
    %c0_i32_0 = arith.constant 0 : i32
    %c0_i32_1 = arith.constant 0 : i32
    return %c0_i32, %c0_i32_0 : i32, i32
  }
  func.func @transform_2(%arg0: i32, %arg1: i32) -> (i32, i32) {
    %c0_i32 = arith.constant 0 : i32
    %c0_i32_0 = arith.constant 0 : i32
    %c0_i32_1 = arith.constant 0 : i32
    return %c0_i32, %c0_i32_0 : i32, i32
  }
  func.func @transform_3(%arg0: i32, %arg1: i32) -> (i32, i32) {
    %c0_i32 = arith.constant 0 : i32
    %c0_i32_0 = arith.constant 0 : i32
    return %arg1, %c0_i32 : i32, i32
  }
  func.func @transform_4(%arg0: i32, %arg1: i32) -> (i32, i32, i32) {
    %c0_i32 = arith.constant 0 : i32
    %c0_i32_0 = arith.constant 0 : i32
    return %arg0, %arg1, %c0_i32 : i32, i32, i32
  }
}

module attributes {stable_mosaic.version = 11 : i64} {
  func.func @_qkv_kernel(%arg0: i32, %arg1: i32, %arg2: memref<1x16x32xbf16, #tpu.memory_space<vmem>>, %arg3: memref<1x32xf32, #tpu.memory_space<vmem>>, %arg4: memref<1x32xf32, #tpu.memory_space<vmem>>, %arg5: memref<32x96xbf16, #tpu.memory_space<vmem>>, %arg6: memref<1x96xf32, #tpu.memory_space<vmem>>, %arg7: memref<1x16x32xbf16, #tpu.memory_space<vmem>>, %arg8: memref<1x16x32xbf16, #tpu.memory_space<vmem>>, %arg9: memref<1x16x32xbf16, #tpu.memory_space<vmem>>) attributes {dimension_semantics = [#tpu.dimension_semantics<parallel>, #tpu.dimension_semantics<parallel>], iteration_bounds = array<i64: 2, 1>, scalar_prefetch = 0 : i64, scratch_operands = 0 : i64, tpu.core_type = #tpu.core_type<tc>, window_params = [{transform_indices = @transform_0, window_bounds = array<i64: 1, 16, 32>}, {pipeline_mode = #tpu.pipeline_mode<synchronous>, transform_indices = @transform_1, window_bounds = array<i64: 1, 32>}, {pipeline_mode = #tpu.pipeline_mode<synchronous>, transform_indices = @transform_2, window_bounds = array<i64: 1, 32>}, {pipeline_mode = #tpu.pipeline_mode<synchronous>, transform_indices = @transform_3, window_bounds = array<i64: 32, 96>}, {pipeline_mode = #tpu.pipeline_mode<synchronous>, transform_indices = @transform_4, window_bounds = array<i64: 1, 96>}, {transform_indices = @transform_5, window_bounds = array<i64: 1, 16, 32>}, {transform_indices = @transform_6, window_bounds = array<i64: 1, 16, 32>}, {transform_indices = @transform_7, window_bounds = array<i64: 1, 16, 32>}]} {
    %c0 = arith.constant 0 : index
    %c0_0 = arith.constant 0 : index
    %c0_1 = arith.constant 0 : index
    %0 = vector.load %arg2[%c0, %c0_0, %c0_1] : memref<1x16x32xbf16, #tpu.memory_space<vmem>>, vector<1x16x32xbf16>
    %1 = vector.shape_cast %0 : vector<1x16x32xbf16> to vector<16x32xbf16>
    %2 = arith.extf %1 : vector<16x32xbf16> to vector<16x32xf32>
    %c0_2 = arith.constant 0 : index
    %c0_3 = arith.constant 0 : index
    %3 = vector.load %arg3[%c0_2, %c0_3] : memref<1x32xf32, #tpu.memory_space<vmem>>, vector<1x32xf32>
    %c0_4 = arith.constant 0 : index
    %c0_5 = arith.constant 0 : index
    %4 = vector.load %arg4[%c0_4, %c0_5] : memref<1x32xf32, #tpu.memory_space<vmem>>, vector<1x32xf32>
    %cst = arith.constant dense<0.000000e+00> : vector<16xf32>
    %5 = vector.multi_reduction <add>, %2, %cst [1] : vector<16x32xf32> to vector<16xf32>
    %6 = vector.shape_cast %5 : vector<16xf32> to vector<16x1xf32>
    %cst_6 = arith.constant 3.200000e+01 : f32
    %7 = vector.broadcast %cst_6 : f32 to vector<16x1xf32>
    %8 = arith.divf %6, %7 : vector<16x1xf32>
    %9 = vector.broadcast %8 : vector<16x1xf32> to vector<16x32xf32>
    %10 = arith.subf %2, %9 : vector<16x32xf32>
    %11 = arith.mulf %10, %10 : vector<16x32xf32>
    %cst_7 = arith.constant dense<0.000000e+00> : vector<16xf32>
    %12 = vector.multi_reduction <add>, %11, %cst_7 [1] : vector<16x32xf32> to vector<16xf32>
    %13 = vector.shape_cast %12 : vector<16xf32> to vector<16x1xf32>
    %cst_8 = arith.constant 3.200000e+01 : f32
    %14 = vector.broadcast %cst_8 : f32 to vector<16x1xf32>
    %15 = arith.divf %13, %14 : vector<16x1xf32>
    %cst_9 = arith.constant 9.99999974E-6 : f32
    %16 = vector.broadcast %cst_9 : f32 to vector<16x1xf32>
    %17 = arith.addf %15, %16 : vector<16x1xf32>
    %18 = math.rsqrt %17 : vector<16x1xf32>
    %19 = vector.broadcast %18 : vector<16x1xf32> to vector<16x32xf32>
    %20 = arith.mulf %10, %19 : vector<16x32xf32>
    %21 = vector.broadcast %3 : vector<1x32xf32> to vector<16x32xf32>
    %22 = arith.mulf %20, %21 : vector<16x32xf32>
    %23 = vector.broadcast %4 : vector<1x32xf32> to vector<16x32xf32>
    %24 = arith.addf %22, %23 : vector<16x32xf32>
    %25 = arith.truncf %24 : vector<16x32xf32> to vector<16x32xbf16>
    %c0_10 = arith.constant 0 : index
    %c0_11 = arith.constant 0 : index
    %26 = vector.load %arg5[%c0_10, %c0_11] : memref<32x96xbf16, #tpu.memory_space<vmem>>, vector<32x96xbf16>
    %cst_12 = arith.constant dense<0.000000e+00> : vector<16x96xf32>
    %27 = tpu.matmul %25, %26, %cst_12 {dimension_numbers = #tpu.dot_dimension_numbers<[1], [0], [0], [1], [0, 0, 1, 1], [], []>} : vector<16x32xbf16>, vector<32x96xbf16>, vector<16x96xf32> -> vector<16x96xf32>
    %c0_13 = arith.constant 0 : index
    %c0_14 = arith.constant 0 : index
    %28 = vector.load %arg6[%c0_13, %c0_14] : memref<1x96xf32, #tpu.memory_space<vmem>>, vector<1x96xf32>
    %29 = vector.broadcast %28 : vector<1x96xf32> to vector<16x96xf32>
    %30 = arith.addf %27, %29 : vector<16x96xf32>
    %31 = arith.truncf %30 : vector<16x96xf32> to vector<16x96xbf16>
    %32 = vector.extract_strided_slice %31 {offsets = [0, 0], sizes = [16, 32], strides = [1, 1]} : vector<16x96xbf16> to vector<16x32xbf16>
    %c0_15 = arith.constant 0 : index
    %c0_16 = arith.constant 0 : index
    %c0_17 = arith.constant 0 : index
    %33 = vector.load %arg7[%c0_15, %c0_16, %c0_17] : memref<1x16x32xbf16, #tpu.memory_space<vmem>>, vector<1x16x32xbf16>
    %34 = vector.shape_cast %33 : vector<1x16x32xbf16> to vector<16x32xbf16>
    %35 = vector.shape_cast %32 : vector<16x32xbf16> to vector<1x16x32xbf16>
    tpu.vector_store %arg7[%c0_15, %c0_16, %c0_17], %35 {strides = array<i32>} : memref<1x16x32xbf16, #tpu.memory_space<vmem>>, vector<1x16x32xbf16>,
    %36 = vector.extract_strided_slice %31 {offsets = [0, 32], sizes = [16, 32], strides = [1, 1]} : vector<16x96xbf16> to vector<16x32xbf16>
    %c0_18 = arith.constant 0 : index
    %c0_19 = arith.constant 0 : index
    %c0_20 = arith.constant 0 : index
    %37 = vector.load %arg8[%c0_18, %c0_19, %c0_20] : memref<1x16x32xbf16, #tpu.memory_space<vmem>>, vector<1x16x32xbf16>
    %38 = vector.shape_cast %37 : vector<1x16x32xbf16> to vector<16x32xbf16>
    %39 = vector.shape_cast %36 : vector<16x32xbf16> to vector<1x16x32xbf16>
    tpu.vector_store %arg8[%c0_18, %c0_19, %c0_20], %39 {strides = array<i32>} : memref<1x16x32xbf16, #tpu.memory_space<vmem>>, vector<1x16x32xbf16>,
    %40 = vector.extract_strided_slice %31 {offsets = [0, 64], sizes = [16, 32], strides = [1, 1]} : vector<16x96xbf16> to vector<16x32xbf16>
    %c0_21 = arith.constant 0 : index
    %c0_22 = arith.constant 0 : index
    %c0_23 = arith.constant 0 : index
    %41 = vector.load %arg9[%c0_21, %c0_22, %c0_23] : memref<1x16x32xbf16, #tpu.memory_space<vmem>>, vector<1x16x32xbf16>
    %42 = vector.shape_cast %41 : vector<1x16x32xbf16> to vector<16x32xbf16>
    %43 = vector.shape_cast %40 : vector<16x32xbf16> to vector<1x16x32xbf16>
    tpu.vector_store %arg9[%c0_21, %c0_22, %c0_23], %43 {strides = array<i32>} : memref<1x16x32xbf16, #tpu.memory_space<vmem>>, vector<1x16x32xbf16>,
    return
  }
  func.func @transform_0(%arg0: i32, %arg1: i32) -> (i32, i32, i32) {
    %c0_i32 = arith.constant 0 : i32
    %c0_i32_0 = arith.constant 0 : i32
    return %arg0, %arg1, %c0_i32 : i32, i32, i32
  }
  func.func @transform_1(%arg0: i32, %arg1: i32) -> (i32, i32) {
    %c0_i32 = arith.constant 0 : i32
    %c0_i32_0 = arith.constant 0 : i32
    %c0_i32_1 = arith.constant 0 : i32
    return %c0_i32, %c0_i32_0 : i32, i32
  }
  func.func @transform_2(%arg0: i32, %arg1: i32) -> (i32, i32) {
    %c0_i32 = arith.constant 0 : i32
    %c0_i32_0 = arith.constant 0 : i32
    %c0_i32_1 = arith.constant 0 : i32
    return %c0_i32, %c0_i32_0 : i32, i32
  }
  func.func @transform_3(%arg0: i32, %arg1: i32) -> (i32, i32) {
    %c0_i32 = arith.constant 0 : i32
    %c0_i32_0 = arith.constant 0 : i32
    %c0_i32_1 = arith.constant 0 : i32
    return %c0_i32, %c0_i32_0 : i32, i32
  }
  func.func @transform_4(%arg0: i32, %arg1: i32) -> (i32, i32) {
    %c0_i32 = arith.constant 0 : i32
    %c0_i32_0 = arith.constant 0 : i32
    %c0_i32_1 = arith.constant 0 : i32
    return %c0_i32, %c0_i32_0 : i32, i32
  }
  func.func @transform_5(%arg0: i32, %arg1: i32) -> (i32, i32, i32) {
    %c0_i32 = arith.constant 0 : i32
    %c0_i32_0 = arith.constant 0 : i32
    return %arg0, %arg1, %c0_i32 : i32, i32, i32
  }
  func.func @transform_6(%arg0: i32, %arg1: i32) -> (i32, i32, i32) {
    %c0_i32 = arith.constant 0 : i32
    %c0_i32_0 = arith.constant 0 : i32
    return %arg0, %arg1, %c0_i32 : i32, i32, i32
  }
  func.func @transform_7(%arg0: i32, %arg1: i32) -> (i32, i32, i32) {
    %c0_i32 = arith.constant 0 : i32
    %c0_i32_0 = arith.constant 0 : i32
    return %arg0, %arg1, %c0_i32 : i32, i32, i32
  }
}

module attributes {stable_mosaic.version = 11 : i64} {
  func.func @_attn_kernel(%arg0: i32, %arg1: i32, %arg2: i32, %arg3: memref<1x16x32xbf16, #tpu.memory_space<vmem>>, %arg4: memref<1x16x32xbf16, #tpu.memory_space<vmem>>, %arg5: memref<1x16x32xbf16, #tpu.memory_space<vmem>>, %arg6: memref<1x16x32xbf16, #tpu.memory_space<vmem>>, %arg7: memref<4x16x1xf32, #tpu.memory_space<vmem>>, %arg8: memref<4x16x1xf32, #tpu.memory_space<vmem>>, %arg9: memref<4x16x8xf32, #tpu.memory_space<vmem>>) attributes {dimension_semantics = [#tpu.dimension_semantics<parallel>, #tpu.dimension_semantics<parallel>, #tpu.dimension_semantics<parallel>], iteration_bounds = array<i64: 2, 1, 1>, scalar_prefetch = 0 : i64, scratch_operands = 3 : i64, tpu.core_type = #tpu.core_type<tc>, window_params = [{transform_indices = @transform_0, window_bounds = array<i64: 1, 16, 32>}, {transform_indices = @transform_1, window_bounds = array<i64: 1, 16, 32>}, {transform_indices = @transform_2, window_bounds = array<i64: 1, 16, 32>}, {transform_indices = @transform_3, window_bounds = array<i64: 1, 16, 32>}]} {
    %c0 = arith.constant 0 : index
    %c0_0 = arith.constant 0 : index
    %c0_1 = arith.constant 0 : index
    %0 = vector.load %arg3[%c0, %c0_0, %c0_1] : memref<1x16x32xbf16, #tpu.memory_space<vmem>>, vector<1x16x32xbf16>
    %1 = vector.shape_cast %0 : vector<1x16x32xbf16> to vector<16x32xbf16>
    %cst = arith.constant -1.000000e+30 : f32
    %2 = vector.broadcast %cst : f32 to vector<4x16x1xf32>
    %c0_2 = arith.constant 0 : index
    %c0_3 = arith.constant 0 : index
    %c0_4 = arith.constant 0 : index
    %3 = vector.load %arg7[%c0_2, %c0_3, %c0_4] : memref<4x16x1xf32, #tpu.memory_space<vmem>>, vector<4x16x1xf32>
    tpu.vector_store %arg7[%c0_2, %c0_3, %c0_4], %2 {strides = array<i32>} : memref<4x16x1xf32, #tpu.memory_space<vmem>>, vector<4x16x1xf32>,
    %cst_5 = arith.constant 0.000000e+00 : f32
    %4 = vector.broadcast %cst_5 : f32 to vector<4x16x1xf32>
    %c0_6 = arith.constant 0 : index
    %c0_7 = arith.constant 0 : index
    %c0_8 = arith.constant 0 : index
    %5 = vector.load %arg8[%c0_6, %c0_7, %c0_8] : memref<4x16x1xf32, #tpu.memory_space<vmem>>, vector<4x16x1xf32>
    tpu.vector_store %arg8[%c0_6, %c0_7, %c0_8], %4 {strides = array<i32>} : memref<4x16x1xf32, #tpu.memory_space<vmem>>, vector<4x16x1xf32>,
    %cst_9 = arith.constant 0.000000e+00 : f32
    %6 = vector.broadcast %cst_9 : f32 to vector<4x16x8xf32>
    %c0_10 = arith.constant 0 : index
    %c0_11 = arith.constant 0 : index
    %c0_12 = arith.constant 0 : index
    %7 = vector.load %arg9[%c0_10, %c0_11, %c0_12] : memref<4x16x8xf32, #tpu.memory_space<vmem>>, vector<4x16x8xf32>
    tpu.vector_store %arg9[%c0_10, %c0_11, %c0_12], %6 {strides = array<i32>} : memref<4x16x8xf32, #tpu.memory_space<vmem>>, vector<4x16x8xf32>,
    %c0_i32 = arith.constant 0 : i32
    %c16_i32 = arith.constant 16 : i32
    %8 = arith.muli %c0_i32, %c16_i32 : i32
    %9 = tpu.assume_multiple %8, 16 : i32
    %c0_13 = arith.constant 0 : index
    %10 = arith.index_cast %9 : i32 to index
    %c0_14 = arith.constant 0 : index
    %11 = vector.load %arg4[%c0_13, %10, %c0_14] : memref<1x16x32xbf16, #tpu.memory_space<vmem>>, vector<1x16x32xbf16>
    %12 = vector.shape_cast %11 : vector<1x16x32xbf16> to vector<16x32xbf16>
    %c0_15 = arith.constant 0 : index
    %13 = arith.index_cast %9 : i32 to index
    %c0_16 = arith.constant 0 : index
    %14 = vector.load %arg5[%c0_15, %13, %c0_16] : memref<1x16x32xbf16, #tpu.memory_space<vmem>>, vector<1x16x32xbf16>
    %15 = vector.shape_cast %14 : vector<1x16x32xbf16> to vector<16x32xbf16>
    %16 = vector.extract_strided_slice %1 {offsets = [0, 0], sizes = [16, 8], strides = [1, 1]} : vector<16x32xbf16> to vector<16x8xbf16>
    %17 = vector.extract_strided_slice %12 {offsets = [0, 0], sizes = [16, 8], strides = [1, 1]} : vector<16x32xbf16> to vector<16x8xbf16>
    %18 = vector.extract_strided_slice %15 {offsets = [0, 0], sizes = [16, 8], strides = [1, 1]} : vector<16x32xbf16> to vector<16x8xbf16>
    %cst_17 = arith.constant dense<0.000000e+00> : vector<16x16xf32>
    %19 = tpu.matmul %16, %17, %cst_17 {dimension_numbers = #tpu.dot_dimension_numbers<[1], [1], [0], [0], [0, 0, 1, 0], [], []>} : vector<16x8xbf16>, vector<16x8xbf16>, vector<16x16xf32> -> vector<16x16xf32>
    %c0_18 = arith.constant 0 : index
    %c0_19 = arith.constant 0 : index
    %c0_20 = arith.constant 0 : index
    %20 = vector.load %arg7[%c0_18, %c0_19, %c0_20] : memref<4x16x1xf32, #tpu.memory_space<vmem>>, vector<1x16x1xf32>
    %21 = vector.shape_cast %20 : vector<1x16x1xf32> to vector<16x1xf32>
    %cst_21 = arith.constant dense<0xFF800000> : vector<16xf32>
    %22 = vector.multi_reduction <maximumf>, %19, %cst_21 [1] : vector<16x16xf32> to vector<16xf32>
    %23 = vector.shape_cast %22 : vector<16xf32> to vector<16x1xf32>
    %24 = arith.maximumf %21, %23 : vector<16x1xf32>
    %25 = arith.subf %21, %24 : vector<16x1xf32>
    %26 = math.exp %25 : vector<16x1xf32>
    %27 = vector.broadcast %24 : vector<16x1xf32> to vector<16x16xf32>
    %28 = arith.subf %19, %27 : vector<16x16xf32>
    %29 = math.exp %28 : vector<16x16xf32>
    %c0_22 = arith.constant 0 : index
    %c0_23 = arith.constant 0 : index
    %c0_24 = arith.constant 0 : index
    %30 = vector.load %arg8[%c0_22, %c0_23, %c0_24] : memref<4x16x1xf32, #tpu.memory_space<vmem>>, vector<1x16x1xf32>
    %31 = vector.shape_cast %30 : vector<1x16x1xf32> to vector<16x1xf32>
    %32 = arith.mulf %26, %31 : vector<16x1xf32>
    %cst_25 = arith.constant dense<0.000000e+00> : vector<16xf32>
    %33 = vector.multi_reduction <add>, %29, %cst_25 [1] : vector<16x16xf32> to vector<16xf32>
    %34 = vector.shape_cast %33 : vector<16xf32> to vector<16x1xf32>
    %35 = arith.addf %32, %34 : vector<16x1xf32>
    %c0_26 = arith.constant 0 : index
    %c0_27 = arith.constant 0 : index
    %c0_28 = arith.constant 0 : index
    %36 = vector.load %arg8[%c0_26, %c0_27, %c0_28] : memref<4x16x1xf32, #tpu.memory_space<vmem>>, vector<1x16x1xf32>
    %37 = vector.shape_cast %36 : vector<1x16x1xf32> to vector<16x1xf32>
    %38 = vector.shape_cast %35 : vector<16x1xf32> to vector<1x16x1xf32>
    tpu.vector_store %arg8[%c0_26, %c0_27, %c0_28], %38 {strides = array<i32>} : memref<4x16x1xf32, #tpu.memory_space<vmem>>, vector<1x16x1xf32>,
    %c0_29 = arith.constant 0 : index
    %c0_30 = arith.constant 0 : index
    %c0_31 = arith.constant 0 : index
    %39 = vector.load %arg9[%c0_29, %c0_30, %c0_31] : memref<4x16x8xf32, #tpu.memory_space<vmem>>, vector<1x16x8xf32>
    %40 = vector.shape_cast %39 : vector<1x16x8xf32> to vector<16x8xf32>
    %41 = vector.broadcast %26 : vector<16x1xf32> to vector<16x8xf32>
    %42 = arith.mulf %41, %40 : vector<16x8xf32>
    %43 = arith.truncf %29 : vector<16x16xf32> to vector<16x16xbf16>
    %cst_32 = arith.constant dense<0.000000e+00> : vector<16x8xf32>
    %44 = tpu.matmul %43, %18, %cst_32 {dimension_numbers = #tpu.dot_dimension_numbers<[1], [0], [0], [1], [0, 0, 1, 1], [], []>} : vector<16x16xbf16>, vector<16x8xbf16>, vector<16x8xf32> -> vector<16x8xf32>
    %45 = arith.addf %42, %44 : vector<16x8xf32>
    %c0_33 = arith.constant 0 : index
    %c0_34 = arith.constant 0 : index
    %c0_35 = arith.constant 0 : index
    %46 = vector.load %arg9[%c0_33, %c0_34, %c0_35] : memref<4x16x8xf32, #tpu.memory_space<vmem>>, vector<1x16x8xf32>
    %47 = vector.shape_cast %46 : vector<1x16x8xf32> to vector<16x8xf32>
    %48 = vector.shape_cast %45 : vector<16x8xf32> to vector<1x16x8xf32>
    tpu.vector_store %arg9[%c0_33, %c0_34, %c0_35], %48 {strides = array<i32>} : memref<4x16x8xf32, #tpu.memory_space<vmem>>, vector<1x16x8xf32>,
    %c0_36 = arith.constant 0 : index
    %c0_37 = arith.constant 0 : index
    %c0_38 = arith.constant 0 : index
    %49 = vector.load %arg7[%c0_36, %c0_37, %c0_38] : memref<4x16x1xf32, #tpu.memory_space<vmem>>, vector<1x16x1xf32>
    %50 = vector.shape_cast %49 : vector<1x16x1xf32> to vector<16x1xf32>
    %51 = vector.shape_cast %24 : vector<16x1xf32> to vector<1x16x1xf32>
    tpu.vector_store %arg7[%c0_36, %c0_37, %c0_38], %51 {strides = array<i32>} : memref<4x16x1xf32, #tpu.memory_space<vmem>>, vector<1x16x1xf32>,
    %52 = vector.extract_strided_slice %1 {offsets = [0, 8], sizes = [16, 8], strides = [1, 1]} : vector<16x32xbf16> to vector<16x8xbf16>
    %53 = vector.extract_strided_slice %12 {offsets = [0, 8], sizes = [16, 8], strides = [1, 1]} : vector<16x32xbf16> to vector<16x8xbf16>
    %54 = vector.extract_strided_slice %15 {offsets = [0, 8], sizes = [16, 8], strides = [1, 1]} : vector<16x32xbf16> to vector<16x8xbf16>
    %cst_39 = arith.constant dense<0.000000e+00> : vector<16x16xf32>
    %55 = tpu.matmul %52, %53, %cst_39 {dimension_numbers = #tpu.dot_dimension_numbers<[1], [1], [0], [0], [0, 0, 1, 0], [], []>} : vector<16x8xbf16>, vector<16x8xbf16>, vector<16x16xf32> -> vector<16x16xf32>
    %c1 = arith.constant 1 : index
    %c0_40 = arith.constant 0 : index
    %c0_41 = arith.constant 0 : index
    %56 = vector.load %arg7[%c1, %c0_40, %c0_41] : memref<4x16x1xf32, #tpu.memory_space<vmem>>, vector<1x16x1xf32>
    %57 = vector.shape_cast %56 : vector<1x16x1xf32> to vector<16x1xf32>
    %cst_42 = arith.constant dense<0xFF800000> : vector<16xf32>
    %58 = vector.multi_reduction <maximumf>, %55, %cst_42 [1] : vector<16x16xf32> to vector<16xf32>
    %59 = vector.shape_cast %58 : vector<16xf32> to vector<16x1xf32>
    %60 = arith.maximumf %57, %59 : vector<16x1xf32>
    %61 = arith.subf %57, %60 : vector<16x1xf32>
    %62 = math.exp %61 : vector<16x1xf32>
    %63 = vector.broadcast %60 : vector<16x1xf32> to vector<16x16xf32>
    %64 = arith.subf %55, %63 : vector<16x16xf32>
    %65 = math.exp %64 : vector<16x16xf32>
    %c1_43 = arith.constant 1 : index
    %c0_44 = arith.constant 0 : index
    %c0_45 = arith.constant 0 : index
    %66 = vector.load %arg8[%c1_43, %c0_44, %c0_45] : memref<4x16x1xf32, #tpu.memory_space<vmem>>, vector<1x16x1xf32>
    %67 = vector.shape_cast %66 : vector<1x16x1xf32> to vector<16x1xf32>
    %68 = arith.mulf %62, %67 : vector<16x1xf32>
    %cst_46 = arith.constant dense<0.000000e+00> : vector<16xf32>
    %69 = vector.multi_reduction <add>, %65, %cst_46 [1] : vector<16x16xf32> to vector<16xf32>
    %70 = vector.shape_cast %69 : vector<16xf32> to vector<16x1xf32>
    %71 = arith.addf %68, %70 : vector<16x1xf32>
    %c1_47 = arith.constant 1 : index
    %c0_48 = arith.constant 0 : index
    %c0_49 = arith.constant 0 : index
    %72 = vector.load %arg8[%c1_47, %c0_48, %c0_49] : memref<4x16x1xf32, #tpu.memory_space<vmem>>, vector<1x16x1xf32>
    %73 = vector.shape_cast %72 : vector<1x16x1xf32> to vector<16x1xf32>
    %74 = vector.shape_cast %71 : vector<16x1xf32> to vector<1x16x1xf32>
    tpu.vector_store %arg8[%c1_47, %c0_48, %c0_49], %74 {strides = array<i32>} : memref<4x16x1xf32, #tpu.memory_space<vmem>>, vector<1x16x1xf32>,
    %c1_50 = arith.constant 1 : index
    %c0_51 = arith.constant 0 : index
    %c0_52 = arith.constant 0 : index
    %75 = vector.load %arg9[%c1_50, %c0_51, %c0_52] : memref<4x16x8xf32, #tpu.memory_space<vmem>>, vector<1x16x8xf32>
    %76 = vector.shape_cast %75 : vector<1x16x8xf32> to vector<16x8xf32>
    %77 = vector.broadcast %62 : vector<16x1xf32> to vector<16x8xf32>
    %78 = arith.mulf %77, %76 : vector<16x8xf32>
    %79 = arith.truncf %65 : vector<16x16xf32> to vector<16x16xbf16>
    %cst_53 = arith.constant dense<0.000000e+00> : vector<16x8xf32>
    %80 = tpu.matmul %79, %54, %cst_53 {dimension_numbers = #tpu.dot_dimension_numbers<[1], [0], [0], [1], [0, 0, 1, 1], [], []>} : vector<16x16xbf16>, vector<16x8xbf16>, vector<16x8xf32> -> vector<16x8xf32>
    %81 = arith.addf %78, %80 : vector<16x8xf32>
    %c1_54 = arith.constant 1 : index
    %c0_55 = arith.constant 0 : index
    %c0_56 = arith.constant 0 : index
    %82 = vector.load %arg9[%c1_54, %c0_55, %c0_56] : memref<4x16x8xf32, #tpu.memory_space<vmem>>, vector<1x16x8xf32>
    %83 = vector.shape_cast %82 : vector<1x16x8xf32> to vector<16x8xf32>
    %84 = vector.shape_cast %81 : vector<16x8xf32> to vector<1x16x8xf32>
    tpu.vector_store %arg9[%c1_54, %c0_55, %c0_56], %84 {strides = array<i32>} : memref<4x16x8xf32, #tpu.memory_space<vmem>>, vector<1x16x8xf32>,
    %c1_57 = arith.constant 1 : index
    %c0_58 = arith.constant 0 : index
    %c0_59 = arith.constant 0 : index
    %85 = vector.load %arg7[%c1_57, %c0_58, %c0_59] : memref<4x16x1xf32, #tpu.memory_space<vmem>>, vector<1x16x1xf32>
    %86 = vector.shape_cast %85 : vector<1x16x1xf32> to vector<16x1xf32>
    %87 = vector.shape_cast %60 : vector<16x1xf32> to vector<1x16x1xf32>
    tpu.vector_store %arg7[%c1_57, %c0_58, %c0_59], %87 {strides = array<i32>} : memref<4x16x1xf32, #tpu.memory_space<vmem>>, vector<1x16x1xf32>,
    %88 = vector.extract_strided_slice %1 {offsets = [0, 16], sizes = [16, 8], strides = [1, 1]} : vector<16x32xbf16> to vector<16x8xbf16>
    %89 = vector.extract_strided_slice %12 {offsets = [0, 16], sizes = [16, 8], strides = [1, 1]} : vector<16x32xbf16> to vector<16x8xbf16>
    %90 = vector.extract_strided_slice %15 {offsets = [0, 16], sizes = [16, 8], strides = [1, 1]} : vector<16x32xbf16> to vector<16x8xbf16>
    %cst_60 = arith.constant dense<0.000000e+00> : vector<16x16xf32>
    %91 = tpu.matmul %88, %89, %cst_60 {dimension_numbers = #tpu.dot_dimension_numbers<[1], [1], [0], [0], [0, 0, 1, 0], [], []>} : vector<16x8xbf16>, vector<16x8xbf16>, vector<16x16xf32> -> vector<16x16xf32>
    %c2 = arith.constant 2 : index
    %c0_61 = arith.constant 0 : index
    %c0_62 = arith.constant 0 : index
    %92 = vector.load %arg7[%c2, %c0_61, %c0_62] : memref<4x16x1xf32, #tpu.memory_space<vmem>>, vector<1x16x1xf32>
    %93 = vector.shape_cast %92 : vector<1x16x1xf32> to vector<16x1xf32>
    %cst_63 = arith.constant dense<0xFF800000> : vector<16xf32>
    %94 = vector.multi_reduction <maximumf>, %91, %cst_63 [1] : vector<16x16xf32> to vector<16xf32>
    %95 = vector.shape_cast %94 : vector<16xf32> to vector<16x1xf32>
    %96 = arith.maximumf %93, %95 : vector<16x1xf32>
    %97 = arith.subf %93, %96 : vector<16x1xf32>
    %98 = math.exp %97 : vector<16x1xf32>
    %99 = vector.broadcast %96 : vector<16x1xf32> to vector<16x16xf32>
    %100 = arith.subf %91, %99 : vector<16x16xf32>
    %101 = math.exp %100 : vector<16x16xf32>
    %c2_64 = arith.constant 2 : index
    %c0_65 = arith.constant 0 : index
    %c0_66 = arith.constant 0 : index
    %102 = vector.load %arg8[%c2_64, %c0_65, %c0_66] : memref<4x16x1xf32, #tpu.memory_space<vmem>>, vector<1x16x1xf32>
    %103 = vector.shape_cast %102 : vector<1x16x1xf32> to vector<16x1xf32>
    %104 = arith.mulf %98, %103 : vector<16x1xf32>
    %cst_67 = arith.constant dense<0.000000e+00> : vector<16xf32>
    %105 = vector.multi_reduction <add>, %101, %cst_67 [1] : vector<16x16xf32> to vector<16xf32>
    %106 = vector.shape_cast %105 : vector<16xf32> to vector<16x1xf32>
    %107 = arith.addf %104, %106 : vector<16x1xf32>
    %c2_68 = arith.constant 2 : index
    %c0_69 = arith.constant 0 : index
    %c0_70 = arith.constant 0 : index
    %108 = vector.load %arg8[%c2_68, %c0_69, %c0_70] : memref<4x16x1xf32, #tpu.memory_space<vmem>>, vector<1x16x1xf32>
    %109 = vector.shape_cast %108 : vector<1x16x1xf32> to vector<16x1xf32>
    %110 = vector.shape_cast %107 : vector<16x1xf32> to vector<1x16x1xf32>
    tpu.vector_store %arg8[%c2_68, %c0_69, %c0_70], %110 {strides = array<i32>} : memref<4x16x1xf32, #tpu.memory_space<vmem>>, vector<1x16x1xf32>,
    %c2_71 = arith.constant 2 : index
    %c0_72 = arith.constant 0 : index
    %c0_73 = arith.constant 0 : index
    %111 = vector.load %arg9[%c2_71, %c0_72, %c0_73] : memref<4x16x8xf32, #tpu.memory_space<vmem>>, vector<1x16x8xf32>
    %112 = vector.shape_cast %111 : vector<1x16x8xf32> to vector<16x8xf32>
    %113 = vector.broadcast %98 : vector<16x1xf32> to vector<16x8xf32>
    %114 = arith.mulf %113, %112 : vector<16x8xf32>
    %115 = arith.truncf %101 : vector<16x16xf32> to vector<16x16xbf16>
    %cst_74 = arith.constant dense<0.000000e+00> : vector<16x8xf32>
    %116 = tpu.matmul %115, %90, %cst_74 {dimension_numbers = #tpu.dot_dimension_numbers<[1], [0], [0], [1], [0, 0, 1, 1], [], []>} : vector<16x16xbf16>, vector<16x8xbf16>, vector<16x8xf32> -> vector<16x8xf32>
    %117 = arith.addf %114, %116 : vector<16x8xf32>
    %c2_75 = arith.constant 2 : index
    %c0_76 = arith.constant 0 : index
    %c0_77 = arith.constant 0 : index
    %118 = vector.load %arg9[%c2_75, %c0_76, %c0_77] : memref<4x16x8xf32, #tpu.memory_space<vmem>>, vector<1x16x8xf32>
    %119 = vector.shape_cast %118 : vector<1x16x8xf32> to vector<16x8xf32>
    %120 = vector.shape_cast %117 : vector<16x8xf32> to vector<1x16x8xf32>
    tpu.vector_store %arg9[%c2_75, %c0_76, %c0_77], %120 {strides = array<i32>} : memref<4x16x8xf32, #tpu.memory_space<vmem>>, vector<1x16x8xf32>,
    %c2_78 = arith.constant 2 : index
    %c0_79 = arith.constant 0 : index
    %c0_80 = arith.constant 0 : index
    %121 = vector.load %arg7[%c2_78, %c0_79, %c0_80] : memref<4x16x1xf32, #tpu.memory_space<vmem>>, vector<1x16x1xf32>
    %122 = vector.shape_cast %121 : vector<1x16x1xf32> to vector<16x1xf32>
    %123 = vector.shape_cast %96 : vector<16x1xf32> to vector<1x16x1xf32>
    tpu.vector_store %arg7[%c2_78, %c0_79, %c0_80], %123 {strides = array<i32>} : memref<4x16x1xf32, #tpu.memory_space<vmem>>, vector<1x16x1xf32>,
    %124 = vector.extract_strided_slice %1 {offsets = [0, 24], sizes = [16, 8], strides = [1, 1]} : vector<16x32xbf16> to vector<16x8xbf16>
    %125 = vector.extract_strided_slice %12 {offsets = [0, 24], sizes = [16, 8], strides = [1, 1]} : vector<16x32xbf16> to vector<16x8xbf16>
    %126 = vector.extract_strided_slice %15 {offsets = [0, 24], sizes = [16, 8], strides = [1, 1]} : vector<16x32xbf16> to vector<16x8xbf16>
    %cst_81 = arith.constant dense<0.000000e+00> : vector<16x16xf32>
    %127 = tpu.matmul %124, %125, %cst_81 {dimension_numbers = #tpu.dot_dimension_numbers<[1], [1], [0], [0], [0, 0, 1, 0], [], []>} : vector<16x8xbf16>, vector<16x8xbf16>, vector<16x16xf32> -> vector<16x16xf32>
    %c3 = arith.constant 3 : index
    %c0_82 = arith.constant 0 : index
    %c0_83 = arith.constant 0 : index
    %128 = vector.load %arg7[%c3, %c0_82, %c0_83] : memref<4x16x1xf32, #tpu.memory_space<vmem>>, vector<1x16x1xf32>
    %129 = vector.shape_cast %128 : vector<1x16x1xf32> to vector<16x1xf32>
    %cst_84 = arith.constant dense<0xFF800000> : vector<16xf32>
    %130 = vector.multi_reduction <maximumf>, %127, %cst_84 [1] : vector<16x16xf32> to vector<16xf32>
    %131 = vector.shape_cast %130 : vector<16xf32> to vector<16x1xf32>
    %132 = arith.maximumf %129, %131 : vector<16x1xf32>
    %133 = arith.subf %129, %132 : vector<16x1xf32>
    %134 = math.exp %133 : vector<16x1xf32>
    %135 = vector.broadcast %132 : vector<16x1xf32> to vector<16x16xf32>
    %136 = arith.subf %127, %135 : vector<16x16xf32>
    %137 = math.exp %136 : vector<16x16xf32>
    %c3_85 = arith.constant 3 : index
    %c0_86 = arith.constant 0 : index
    %c0_87 = arith.constant 0 : index
    %138 = vector.load %arg8[%c3_85, %c0_86, %c0_87] : memref<4x16x1xf32, #tpu.memory_space<vmem>>, vector<1x16x1xf32>
    %139 = vector.shape_cast %138 : vector<1x16x1xf32> to vector<16x1xf32>
    %140 = arith.mulf %134, %139 : vector<16x1xf32>
    %cst_88 = arith.constant dense<0.000000e+00> : vector<16xf32>
    %141 = vector.multi_reduction <add>, %137, %cst_88 [1] : vector<16x16xf32> to vector<16xf32>
    %142 = vector.shape_cast %141 : vector<16xf32> to vector<16x1xf32>
    %143 = arith.addf %140, %142 : vector<16x1xf32>
    %c3_89 = arith.constant 3 : index
    %c0_90 = arith.constant 0 : index
    %c0_91 = arith.constant 0 : index
    %144 = vector.load %arg8[%c3_89, %c0_90, %c0_91] : memref<4x16x1xf32, #tpu.memory_space<vmem>>, vector<1x16x1xf32>
    %145 = vector.shape_cast %144 : vector<1x16x1xf32> to vector<16x1xf32>
    %146 = vector.shape_cast %143 : vector<16x1xf32> to vector<1x16x1xf32>
    tpu.vector_store %arg8[%c3_89, %c0_90, %c0_91], %146 {strides = array<i32>} : memref<4x16x1xf32, #tpu.memory_space<vmem>>, vector<1x16x1xf32>,
    %c3_92 = arith.constant 3 : index
    %c0_93 = arith.constant 0 : index
    %c0_94 = arith.constant 0 : index
    %147 = vector.load %arg9[%c3_92, %c0_93, %c0_94] : memref<4x16x8xf32, #tpu.memory_space<vmem>>, vector<1x16x8xf32>
    %148 = vector.shape_cast %147 : vector<1x16x8xf32> to vector<16x8xf32>
    %149 = vector.broadcast %134 : vector<16x1xf32> to vector<16x8xf32>
    %150 = arith.mulf %149, %148 : vector<16x8xf32>
    %151 = arith.truncf %137 : vector<16x16xf32> to vector<16x16xbf16>
    %cst_95 = arith.constant dense<0.000000e+00> : vector<16x8xf32>
    %152 = tpu.matmul %151, %126, %cst_95 {dimension_numbers = #tpu.dot_dimension_numbers<[1], [0], [0], [1], [0, 0, 1, 1], [], []>} : vector<16x16xbf16>, vector<16x8xbf16>, vector<16x8xf32> -> vector<16x8xf32>
    %153 = arith.addf %150, %152 : vector<16x8xf32>
    %c3_96 = arith.constant 3 : index
    %c0_97 = arith.constant 0 : index
    %c0_98 = arith.constant 0 : index
    %154 = vector.load %arg9[%c3_96, %c0_97, %c0_98] : memref<4x16x8xf32, #tpu.memory_space<vmem>>, vector<1x16x8xf32>
    %155 = vector.shape_cast %154 : vector<1x16x8xf32> to vector<16x8xf32>
    %156 = vector.shape_cast %153 : vector<16x8xf32> to vector<1x16x8xf32>
    tpu.vector_store %arg9[%c3_96, %c0_97, %c0_98], %156 {strides = array<i32>} : memref<4x16x8xf32, #tpu.memory_space<vmem>>, vector<1x16x8xf32>,
    %c3_99 = arith.constant 3 : index
    %c0_100 = arith.constant 0 : index
    %c0_101 = arith.constant 0 : index
    %157 = vector.load %arg7[%c3_99, %c0_100, %c0_101] : memref<4x16x1xf32, #tpu.memory_space<vmem>>, vector<1x16x1xf32>
    %158 = vector.shape_cast %157 : vector<1x16x1xf32> to vector<16x1xf32>
    %159 = vector.shape_cast %132 : vector<16x1xf32> to vector<1x16x1xf32>
    tpu.vector_store %arg7[%c3_99, %c0_100, %c0_101], %159 {strides = array<i32>} : memref<4x16x1xf32, #tpu.memory_space<vmem>>, vector<1x16x1xf32>,
    %c1_i32 = arith.constant 1 : i32
    %c0_102 = arith.constant 0 : index
    %c0_103 = arith.constant 0 : index
    %c0_104 = arith.constant 0 : index
    %160 = vector.load %arg9[%c0_102, %c0_103, %c0_104] : memref<4x16x8xf32, #tpu.memory_space<vmem>>, vector<1x16x8xf32>
    %161 = vector.shape_cast %160 : vector<1x16x8xf32> to vector<16x8xf32>
    %c0_105 = arith.constant 0 : index
    %c0_106 = arith.constant 0 : index
    %c0_107 = arith.constant 0 : index
    %162 = vector.load %arg8[%c0_105, %c0_106, %c0_107] : memref<4x16x1xf32, #tpu.memory_space<vmem>>, vector<1x16x1xf32>
    %163 = vector.shape_cast %162 : vector<1x16x1xf32> to vector<16x1xf32>
    %164 = tpu.reciprocal %163 {approx = true} : vector<16x1xf32> -> vector<16x1xf32>
    %165 = vector.broadcast %164 : vector<16x1xf32> to vector<16x8xf32>
    %166 = arith.mulf %161, %165 : vector<16x8xf32>
    %167 = arith.truncf %166 : vector<16x8xf32> to vector<16x8xbf16>
    %c1_108 = arith.constant 1 : index
    %c0_109 = arith.constant 0 : index
    %c0_110 = arith.constant 0 : index
    %168 = vector.load %arg9[%c1_108, %c0_109, %c0_110] : memref<4x16x8xf32, #tpu.memory_space<vmem>>, vector<1x16x8xf32>
    %169 = vector.shape_cast %168 : vector<1x16x8xf32> to vector<16x8xf32>
    %c1_111 = arith.constant 1 : index
    %c0_112 = arith.constant 0 : index
    %c0_113 = arith.constant 0 : index
    %170 = vector.load %arg8[%c1_111, %c0_112, %c0_113] : memref<4x16x1xf32, #tpu.memory_space<vmem>>, vector<1x16x1xf32>
    %171 = vector.shape_cast %170 : vector<1x16x1xf32> to vector<16x1xf32>
    %172 = tpu.reciprocal %171 {approx = true} : vector<16x1xf32> -> vector<16x1xf32>
    %173 = vector.broadcast %172 : vector<16x1xf32> to vector<16x8xf32>
    %174 = arith.mulf %169, %173 : vector<16x8xf32>
    %175 = arith.truncf %174 : vector<16x8xf32> to vector<16x8xbf16>
    %c2_114 = arith.constant 2 : index
    %c0_115 = arith.constant 0 : index
    %c0_116 = arith.constant 0 : index
    %176 = vector.load %arg9[%c2_114, %c0_115, %c0_116] : memref<4x16x8xf32, #tpu.memory_space<vmem>>, vector<1x16x8xf32>
    %177 = vector.shape_cast %176 : vector<1x16x8xf32> to vector<16x8xf32>
    %c2_117 = arith.constant 2 : index
    %c0_118 = arith.constant 0 : index
    %c0_119 = arith.constant 0 : index
    %178 = vector.load %arg8[%c2_117, %c0_118, %c0_119] : memref<4x16x1xf32, #tpu.memory_space<vmem>>, vector<1x16x1xf32>
    %179 = vector.shape_cast %178 : vector<1x16x1xf32> to vector<16x1xf32>
    %180 = tpu.reciprocal %179 {approx = true} : vector<16x1xf32> -> vector<16x1xf32>
    %181 = vector.broadcast %180 : vector<16x1xf32> to vector<16x8xf32>
    %182 = arith.mulf %177, %181 : vector<16x8xf32>
    %183 = arith.truncf %182 : vector<16x8xf32> to vector<16x8xbf16>
    %c3_120 = arith.constant 3 : index
    %c0_121 = arith.constant 0 : index
    %c0_122 = arith.constant 0 : index
    %184 = vector.load %arg9[%c3_120, %c0_121, %c0_122] : memref<4x16x8xf32, #tpu.memory_space<vmem>>, vector<1x16x8xf32>
    %185 = vector.shape_cast %184 : vector<1x16x8xf32> to vector<16x8xf32>
    %c3_123 = arith.constant 3 : index
    %c0_124 = arith.constant 0 : index
    %c0_125 = arith.constant 0 : index
    %186 = vector.load %arg8[%c3_123, %c0_124, %c0_125] : memref<4x16x1xf32, #tpu.memory_space<vmem>>, vector<1x16x1xf32>
    %187 = vector.shape_cast %186 : vector<1x16x1xf32> to vector<16x1xf32>
    %188 = tpu.reciprocal %187 {approx = true} : vector<16x1xf32> -> vector<16x1xf32>
    %189 = vector.broadcast %188 : vector<16x1xf32> to vector<16x8xf32>
    %190 = arith.mulf %185, %189 : vector<16x8xf32>
    %191 = arith.truncf %190 : vector<16x8xf32> to vector<16x8xbf16>
    %192 = tpu.concatenate %167, %175, %183, %191 in 1 : vector<16x8xbf16>, vector<16x8xbf16>, vector<16x8xbf16>, vector<16x8xbf16> -> vector<16x32xbf16>
    %c0_126 = arith.constant 0 : index
    %c0_127 = arith.constant 0 : index
    %c0_128 = arith.constant 0 : index
    %193 = vector.load %arg6[%c0_126, %c0_127, %c0_128] : memref<1x16x32xbf16, #tpu.memory_space<vmem>>, vector<1x16x32xbf16>
    %194 = vector.shape_cast %193 : vector<1x16x32xbf16> to vector<16x32xbf16>
    %195 = vector.shape_cast %192 : vector<16x32xbf16> to vector<1x16x32xbf16>
    tpu.vector_store %arg6[%c0_126, %c0_127, %c0_128], %195 {strides = array<i32>} : memref<1x16x32xbf16, #tpu.memory_space<vmem>>, vector<1x16x32xbf16>,
    return
  }
  func.func @transform_0(%arg0: i32, %arg1: i32, %arg2: i32) -> (i32, i32, i32) {
    %c0_i32 = arith.constant 0 : i32
    return %arg0, %arg2, %arg1 : i32, i32, i32
  }
  func.func @transform_1(%arg0: i32, %arg1: i32, %arg2: i32) -> (i32, i32, i32) {
    %c0_i32 = arith.constant 0 : i32
    %c0_i32_0 = arith.constant 0 : i32
    return %arg0, %c0_i32, %arg1 : i32, i32, i32
  }
  func.func @transform_2(%arg0: i32, %arg1: i32, %arg2: i32) -> (i32, i32, i32) {
    %c0_i32 = arith.constant 0 : i32
    %c0_i32_0 = arith.constant 0 : i32
    return %arg0, %c0_i32, %arg1 : i32, i32, i32
  }
  func.func @transform_3(%arg0: i32, %arg1: i32, %arg2: i32) -> (i32, i32, i32) {
    %c0_i32 = arith.constant 0 : i32
    return %arg0, %arg2, %arg1 : i32, i32, i32
  }
}

module attributes {stable_mosaic.version = 11 : i64} {
  func.func @_proj_mlp_kernel(%arg0: i32, %arg1: i32, %arg2: i32, %arg3: memref<1x16x32xbf16, #tpu.memory_space<vmem>>, %arg4: memref<1x16x32xbf16, #tpu.memory_space<vmem>>, %arg5: memref<32x32xbf16, #tpu.memory_space<vmem>>, %arg6: memref<1x32xf32, #tpu.memory_space<vmem>>, %arg7: memref<1x32xf32, #tpu.memory_space<vmem>>, %arg8: memref<1x32xf32, #tpu.memory_space<vmem>>, %arg9: memref<32x128xbf16, #tpu.memory_space<vmem>>, %arg10: memref<1x128xf32, #tpu.memory_space<vmem>>, %arg11: memref<128x32xbf16, #tpu.memory_space<vmem>>, %arg12: memref<1x32xf32, #tpu.memory_space<vmem>>, %arg13: memref<1x16x32xbf16, #tpu.memory_space<vmem>>, %arg14: memref<16x32xf32, #tpu.memory_space<vmem>>, %arg15: memref<16x32xbf16, #tpu.memory_space<vmem>>, %arg16: memref<16x32xf32, #tpu.memory_space<vmem>>) attributes {dimension_semantics = [#tpu.dimension_semantics<parallel>, #tpu.dimension_semantics<parallel>, #tpu.dimension_semantics<arbitrary>], iteration_bounds = array<i64: 2, 1, 1>, scalar_prefetch = 0 : i64, scratch_operands = 3 : i64, tpu.core_type = #tpu.core_type<tc>, window_params = [{transform_indices = @transform_0, window_bounds = array<i64: 1, 16, 32>}, {transform_indices = @transform_1, window_bounds = array<i64: 1, 16, 32>}, {pipeline_mode = #tpu.pipeline_mode<synchronous>, transform_indices = @transform_2, window_bounds = array<i64: 32, 32>}, {pipeline_mode = #tpu.pipeline_mode<synchronous>, transform_indices = @transform_3, window_bounds = array<i64: 1, 32>}, {pipeline_mode = #tpu.pipeline_mode<synchronous>, transform_indices = @transform_4, window_bounds = array<i64: 1, 32>}, {pipeline_mode = #tpu.pipeline_mode<synchronous>, transform_indices = @transform_5, window_bounds = array<i64: 1, 32>}, {transform_indices = @transform_6, window_bounds = array<i64: 32, 128>}, {transform_indices = @transform_7, window_bounds = array<i64: 1, 128>}, {transform_indices = @transform_8, window_bounds = array<i64: 128, 32>}, {pipeline_mode = #tpu.pipeline_mode<synchronous>, transform_indices = @transform_9, window_bounds = array<i64: 1, 32>}, {transform_indices = @transform_10, window_bounds = array<i64: 1, 16, 32>}]} {
    %c0_i32 = arith.constant 0 : i32
    %0 = arith.cmpi eq, %arg2, %c0_i32 : i32
    %1 = arith.extui %0 : i1 to i32
    %c0_i32_0 = arith.constant 0 : i32
    %2 = arith.cmpi ne, %1, %c0_i32_0 : i32
    scf.if %2 {
      %c0_19 = arith.constant 0 : index
      %c0_20 = arith.constant 0 : index
      %c0_21 = arith.constant 0 : index
      %31 = vector.load %arg3[%c0_19, %c0_20, %c0_21] : memref<1x16x32xbf16, #tpu.memory_space<vmem>>, vector<1x16x32xbf16>
      %32 = vector.shape_cast %31 : vector<1x16x32xbf16> to vector<16x32xbf16>
      %c0_22 = arith.constant 0 : index
      %c0_23 = arith.constant 0 : index
      %33 = vector.load %arg5[%c0_22, %c0_23] : memref<32x32xbf16, #tpu.memory_space<vmem>>, vector<32x32xbf16>
      %cst_24 = arith.constant dense<0.000000e+00> : vector<16x32xf32>
      %34 = tpu.matmul %32, %33, %cst_24 {dimension_numbers = #tpu.dot_dimension_numbers<[1], [0], [0], [1], [0, 0, 1, 1], [], []>} : vector<16x32xbf16>, vector<32x32xbf16>, vector<16x32xf32> -> vector<16x32xf32>
      %c0_25 = arith.constant 0 : index
      %c0_26 = arith.constant 0 : index
      %35 = vector.load %arg6[%c0_25, %c0_26] : memref<1x32xf32, #tpu.memory_space<vmem>>, vector<1x32xf32>
      %36 = vector.broadcast %35 : vector<1x32xf32> to vector<16x32xf32>
      %37 = arith.addf %34, %36 : vector<16x32xf32>
      %c0_27 = arith.constant 0 : index
      %c0_28 = arith.constant 0 : index
      %c0_29 = arith.constant 0 : index
      %38 = vector.load %arg4[%c0_27, %c0_28, %c0_29] : memref<1x16x32xbf16, #tpu.memory_space<vmem>>, vector<1x16x32xbf16>
      %39 = vector.shape_cast %38 : vector<1x16x32xbf16> to vector<16x32xbf16>
      %40 = arith.extf %39 : vector<16x32xbf16> to vector<16x32xf32>
      %41 = arith.addf %37, %40 : vector<16x32xf32>
      %c0_30 = arith.constant 0 : index
      %c0_31 = arith.constant 0 : index
      %42 = vector.load %arg14[%c0_30, %c0_31] : memref<16x32xf32, #tpu.memory_space<vmem>>, vector<16x32xf32>
      tpu.vector_store %arg14[%c0_30, %c0_31], %41 {strides = array<i32>} : memref<16x32xf32, #tpu.memory_space<vmem>>, vector<16x32xf32>,
      %c0_32 = arith.constant 0 : index
      %c0_33 = arith.constant 0 : index
      %43 = vector.load %arg7[%c0_32, %c0_33] : memref<1x32xf32, #tpu.memory_space<vmem>>, vector<1x32xf32>
      %c0_34 = arith.constant 0 : index
      %c0_35 = arith.constant 0 : index
      %44 = vector.load %arg8[%c0_34, %c0_35] : memref<1x32xf32, #tpu.memory_space<vmem>>, vector<1x32xf32>
      %cst_36 = arith.constant dense<0.000000e+00> : vector<16xf32>
      %45 = vector.multi_reduction <add>, %41, %cst_36 [1] : vector<16x32xf32> to vector<16xf32>
      %46 = vector.shape_cast %45 : vector<16xf32> to vector<16x1xf32>
      %cst_37 = arith.constant 3.200000e+01 : f32
      %47 = vector.broadcast %cst_37 : f32 to vector<16x1xf32>
      %48 = arith.divf %46, %47 : vector<16x1xf32>
      %49 = vector.broadcast %48 : vector<16x1xf32> to vector<16x32xf32>
      %50 = arith.subf %41, %49 : vector<16x32xf32>
      %51 = arith.mulf %50, %50 : vector<16x32xf32>
      %cst_38 = arith.constant dense<0.000000e+00> : vector<16xf32>
      %52 = vector.multi_reduction <add>, %51, %cst_38 [1] : vector<16x32xf32> to vector<16xf32>
      %53 = vector.shape_cast %52 : vector<16xf32> to vector<16x1xf32>
      %cst_39 = arith.constant 3.200000e+01 : f32
      %54 = vector.broadcast %cst_39 : f32 to vector<16x1xf32>
      %55 = arith.divf %53, %54 : vector<16x1xf32>
      %cst_40 = arith.constant 9.99999974E-6 : f32
      %56 = vector.broadcast %cst_40 : f32 to vector<16x1xf32>
      %57 = arith.addf %55, %56 : vector<16x1xf32>
      %58 = math.rsqrt %57 : vector<16x1xf32>
      %59 = vector.broadcast %58 : vector<16x1xf32> to vector<16x32xf32>
      %60 = arith.mulf %50, %59 : vector<16x32xf32>
      %61 = vector.broadcast %43 : vector<1x32xf32> to vector<16x32xf32>
      %62 = arith.mulf %60, %61 : vector<16x32xf32>
      %63 = vector.broadcast %44 : vector<1x32xf32> to vector<16x32xf32>
      %64 = arith.addf %62, %63 : vector<16x32xf32>
      %65 = arith.truncf %64 : vector<16x32xf32> to vector<16x32xbf16>
      %c0_41 = arith.constant 0 : index
      %c0_42 = arith.constant 0 : index
      %66 = vector.load %arg15[%c0_41, %c0_42] : memref<16x32xbf16, #tpu.memory_space<vmem>>, vector<16x32xbf16>
      tpu.vector_store %arg15[%c0_41, %c0_42], %65 {strides = array<i32>} : memref<16x32xbf16, #tpu.memory_space<vmem>>, vector<16x32xbf16>,
      %cst_43 = arith.constant 0.000000e+00 : f32
      %67 = vector.broadcast %cst_43 : f32 to vector<16x32xf32>
      %c0_44 = arith.constant 0 : index
      %c0_45 = arith.constant 0 : index
      %68 = vector.load %arg16[%c0_44, %c0_45] : memref<16x32xf32, #tpu.memory_space<vmem>>, vector<16x32xf32>
      tpu.vector_store %arg16[%c0_44, %c0_45], %67 {strides = array<i32>} : memref<16x32xf32, #tpu.memory_space<vmem>>, vector<16x32xf32>,
    } else {
    }
    %c0 = arith.constant 0 : index
    %c0_1 = arith.constant 0 : index
    %3 = vector.load %arg15[%c0, %c0_1] : memref<16x32xbf16, #tpu.memory_space<vmem>>, vector<16x32xbf16>
    %c0_2 = arith.constant 0 : index
    %c0_3 = arith.constant 0 : index
    %4 = vector.load %arg9[%c0_2, %c0_3] : memref<32x128xbf16, #tpu.memory_space<vmem>>, vector<32x128xbf16>
    %cst = arith.constant dense<0.000000e+00> : vector<16x128xf32>
    %5 = tpu.matmul %3, %4, %cst {dimension_numbers = #tpu.dot_dimension_numbers<[1], [0], [0], [1], [0, 0, 1, 1], [], []>} : vector<16x32xbf16>, vector<32x128xbf16>, vector<16x128xf32> -> vector<16x128xf32>
    %c0_4 = arith.constant 0 : index
    %c0_5 = arith.constant 0 : index
    %6 = vector.load %arg10[%c0_4, %c0_5] : memref<1x128xf32, #tpu.memory_space<vmem>>, vector<1x128xf32>
    %7 = vector.broadcast %6 : vector<1x128xf32> to vector<16x128xf32>
    %8 = arith.addf %5, %7 : vector<16x128xf32>
    %9 = arith.truncf %8 : vector<16x128xf32> to vector<16x128xbf16>
    %cst_6 = arith.constant 5.000000e-01 : bf16
    %10 = vector.broadcast %cst_6 : bf16 to vector<16x128xbf16>
    %11 = arith.mulf %10, %9 : vector<16x128xbf16>
    %cst_7 = arith.constant 4.467770e-02 : bf16
    %12 = vector.broadcast %cst_7 : bf16 to vector<16x128xbf16>
    %13 = arith.mulf %12, %9 : vector<16x128xbf16>
    %14 = arith.mulf %13, %9 : vector<16x128xbf16>
    %15 = arith.mulf %14, %9 : vector<16x128xbf16>
    %16 = arith.addf %9, %15 : vector<16x128xbf16>
    %cst_8 = arith.constant 7.968750e-01 : bf16
    %17 = vector.broadcast %cst_8 : bf16 to vector<16x128xbf16>
    %18 = arith.mulf %17, %16 : vector<16x128xbf16>
    %19 = math.tanh %18 : vector<16x128xbf16>
    %cst_9 = arith.constant 1.000000e+00 : bf16
    %20 = vector.broadcast %cst_9 : bf16 to vector<16x128xbf16>
    %21 = arith.addf %20, %19 : vector<16x128xbf16>
    %22 = arith.mulf %11, %21 : vector<16x128xbf16>
    %c0_10 = arith.constant 0 : index
    %c0_11 = arith.constant 0 : index
    %23 = vector.load %arg16[%c0_10, %c0_11] : memref<16x32xf32, #tpu.memory_space<vmem>>, vector<16x32xf32>
    %c0_12 = arith.constant 0 : index
    %c0_13 = arith.constant 0 : index
    %24 = vector.load %arg11[%c0_12, %c0_13] : memref<128x32xbf16, #tpu.memory_space<vmem>>, vector<128x32xbf16>
    %cst_14 = arith.constant dense<0.000000e+00> : vector<16x32xf32>
    %25 = tpu.matmul %22, %24, %cst_14 {dimension_numbers = #tpu.dot_dimension_numbers<[1], [0], [0], [1], [0, 0, 1, 1], [], []>} : vector<16x128xbf16>, vector<128x32xbf16>, vector<16x32xf32> -> vector<16x32xf32>
    %26 = arith.addf %23, %25 : vector<16x32xf32>
    %c0_15 = arith.constant 0 : index
    %c0_16 = arith.constant 0 : index
    %27 = vector.load %arg16[%c0_15, %c0_16] : memref<16x32xf32, #tpu.memory_space<vmem>>, vector<16x32xf32>
    tpu.vector_store %arg16[%c0_15, %c0_16], %26 {strides = array<i32>} : memref<16x32xf32, #tpu.memory_space<vmem>>, vector<16x32xf32>,
    %c0_i32_17 = arith.constant 0 : i32
    %28 = arith.cmpi eq, %arg2, %c0_i32_17 : i32
    %29 = arith.extui %28 : i1 to i32
    %c0_i32_18 = arith.constant 0 : i32
    %30 = arith.cmpi ne, %29, %c0_i32_18 : i32
    scf.if %30 {
      %c0_19 = arith.constant 0 : index
      %c0_20 = arith.constant 0 : index
      %31 = vector.load %arg14[%c0_19, %c0_20] : memref<16x32xf32, #tpu.memory_space<vmem>>, vector<16x32xf32>
      %c0_21 = arith.constant 0 : index
      %c0_22 = arith.constant 0 : index
      %32 = vector.load %arg16[%c0_21, %c0_22] : memref<16x32xf32, #tpu.memory_space<vmem>>, vector<16x32xf32>
      %33 = arith.addf %31, %32 : vector<16x32xf32>
      %c0_23 = arith.constant 0 : index
      %c0_24 = arith.constant 0 : index
      %34 = vector.load %arg12[%c0_23, %c0_24] : memref<1x32xf32, #tpu.memory_space<vmem>>, vector<1x32xf32>
      %35 = vector.broadcast %34 : vector<1x32xf32> to vector<16x32xf32>
      %36 = arith.addf %33, %35 : vector<16x32xf32>
      %37 = arith.truncf %36 : vector<16x32xf32> to vector<16x32xbf16>
      %c0_25 = arith.constant 0 : index
      %c0_26 = arith.constant 0 : index
      %c0_27 = arith.constant 0 : index
      %38 = vector.load %arg13[%c0_25, %c0_26, %c0_27] : memref<1x16x32xbf16, #tpu.memory_space<vmem>>, vector<1x16x32xbf16>
      %39 = vector.shape_cast %38 : vector<1x16x32xbf16> to vector<16x32xbf16>
      %40 = vector.shape_cast %37 : vector<16x32xbf16> to vector<1x16x32xbf16>
      tpu.vector_store %arg13[%c0_25, %c0_26, %c0_27], %40 {strides = array<i32>} : memref<1x16x32xbf16, #tpu.memory_space<vmem>>, vector<1x16x32xbf16>,
    } else {
    }
    return
  }
  func.func @transform_0(%arg0: i32, %arg1: i32, %arg2: i32) -> (i32, i32, i32) {
    %c0_i32 = arith.constant 0 : i32
    %c0_i32_0 = arith.constant 0 : i32
    return %arg0, %arg1, %c0_i32 : i32, i32, i32
  }
  func.func @transform_1(%arg0: i32, %arg1: i32, %arg2: i32) -> (i32, i32, i32) {
    %c0_i32 = arith.constant 0 : i32
    %c0_i32_0 = arith.constant 0 : i32
    return %arg0, %arg1, %c0_i32 : i32, i32, i32
  }
  func.func @transform_2(%arg0: i32, %arg1: i32, %arg2: i32) -> (i32, i32) {
    %c0_i32 = arith.constant 0 : i32
    %c0_i32_0 = arith.constant 0 : i32
    %c0_i32_1 = arith.constant 0 : i32
    return %c0_i32, %c0_i32_0 : i32, i32
  }
  func.func @transform_3(%arg0: i32, %arg1: i32, %arg2: i32) -> (i32, i32) {
    %c0_i32 = arith.constant 0 : i32
    %c0_i32_0 = arith.constant 0 : i32
    %c0_i32_1 = arith.constant 0 : i32
    return %c0_i32, %c0_i32_0 : i32, i32
  }
  func.func @transform_4(%arg0: i32, %arg1: i32, %arg2: i32) -> (i32, i32) {
    %c0_i32 = arith.constant 0 : i32
    %c0_i32_0 = arith.constant 0 : i32
    %c0_i32_1 = arith.constant 0 : i32
    return %c0_i32, %c0_i32_0 : i32, i32
  }
  func.func @transform_5(%arg0: i32, %arg1: i32, %arg2: i32) -> (i32, i32) {
    %c0_i32 = arith.constant 0 : i32
    %c0_i32_0 = arith.constant 0 : i32
    %c0_i32_1 = arith.constant 0 : i32
    return %c0_i32, %c0_i32_0 : i32, i32
  }
  func.func @transform_6(%arg0: i32, %arg1: i32, %arg2: i32) -> (i32, i32) {
    %c0_i32 = arith.constant 0 : i32
    %c0_i32_0 = arith.constant 0 : i32
    return %c0_i32, %arg2 : i32, i32
  }
  func.func @transform_7(%arg0: i32, %arg1: i32, %arg2: i32) -> (i32, i32) {
    %c0_i32 = arith.constant 0 : i32
    %c0_i32_0 = arith.constant 0 : i32
    return %c0_i32, %arg2 : i32, i32
  }
  func.func @transform_8(%arg0: i32, %arg1: i32, %arg2: i32) -> (i32, i32) {
    %c0_i32 = arith.constant 0 : i32
    %c0_i32_0 = arith.constant 0 : i32
    return %arg2, %c0_i32 : i32, i32
  }
  func.func @transform_9(%arg0: i32, %arg1: i32, %arg2: i32) -> (i32, i32) {
    %c0_i32 = arith.constant 0 : i32
    %c0_i32_0 = arith.constant 0 : i32
    %c0_i32_1 = arith.constant 0 : i32
    return %c0_i32, %c0_i32_0 : i32, i32
  }
  func.func @transform_10(%arg0: i32, %arg1: i32, %arg2: i32) -> (i32, i32, i32) {
    %c0_i32 = arith.constant 0 : i32
    %c0_i32_0 = arith.constant 0 : i32
    return %arg0, %arg1, %c0_i32 : i32, i32, i32
  }
}

</mosaic_0001>

<llo_original>
// kernel: vit_forward.8
$region0: #{vit_forward.8}
  #allocation0 [shape = 'u32[]', space=smem, size = 0x4, offset = 0x4, fixed_abs, tag = 'smem constant byte address 0x4 - core index']
  #allocation1 [shape = 'u32[144,128]{1,0:T(1,128)}', space=vmem, size = 0x12000, scoped, tag = 'internal scratch']
  %s0 = inlined_call_operand.vmem [shape: bf16[2,16,32], index: 0, kind: input, shape index: {}]
  %s1 = inlined_call_operand.vmem [shape: f32[1,32], index: 1, kind: input, shape index: {}]
  %s2 = inlined_call_operand.vmem [shape: f32[1,32], index: 2, kind: input, shape index: {}]
  %s3 = inlined_call_operand.vmem [shape: bf16[32,96], index: 3, kind: input, shape index: {}]
  %s4 = inlined_call_operand.vmem [shape: f32[1,96], index: 4, kind: input, shape index: {}]
  %s5 = inlined_call_operand.vmem [shape: bf16[2,16,32], index: 5, kind: output, shape index: {0}]
  %s6 = inlined_call_operand.vmem [shape: bf16[2,16,32], index: 6, kind: output, shape index: {1}]
  %s7 = inlined_call_operand.vmem [shape: bf16[2,16,32], index: 7, kind: output, shape index: {2}]
  %8 = xla_tuple %s5, %s6, %s7
  %s9 = sld [smem:[#allocation0]]
  $region69: #{vit_forward.8} parent=0
    _
  %s11 = ssub.s32 1, %s9
  %s12 = scalar_select 0, %s11, %s9
  loop: start=0, step=1, limit=4
  $region2: #{vit_forward.8} parent=0 // loop_pre_header
    _
  $region3: #{vit_forward.8} parent=0 // loop_header
    %s14 = sphi 0, %s18
    %p15 = scmp.ge.s32.totalorder %s14, 4
    %s21 = sphi 0, %s33
    %s22 = sphi 0, %s29
    %s23 = sphi 0, %s21
    %s24 = sphi 0, %s22
    %s25 = sphi 0, %s23
    %s26 = sphi 0, %s24
    %s38 = sphi 0, %s40
    %s41 = sphi 0, %s38
    %s42 = sphi 0, %s41
    %s58 = sphi 0, %s42
    %s62 = sphi 0, %s62
    %s64 = sphi 0, %s62
    %s65 = sphi 0, %s64
    %s79 = sphi 0, %s65
    %s83 = sphi 0, %s83
    %s85 = sphi 0, %s83
    %s86 = sphi 0, %s85
    %s100 = sphi 0, %s86
    %s104 = sphi 0, %s104
    %s106 = sphi 0, %s104
    %s107 = sphi 0, %s106
    %s121 = sphi 0, %s107
    %s125 = sphi 0, %s125
    %s127 = sphi 0, %s125
    %s128 = sphi 0, %s127
    %s142 = sphi 0, %s128
    %s150 = sphi 0, %s152
    %s153 = sphi 0, %s150
    %s154 = sphi 0, %s153
    %s170 = sphi 0, %s154
    %s178 = sphi 0, %s180
    %s181 = sphi 0, %s178
    %s182 = sphi 0, %s181
    %s198 = sphi 0, %s182
    %s206 = sphi 0, %s208
    %s209 = sphi 0, %s206
    %s210 = sphi 0, %s209
    %s226 = sphi 0, %s210
  $region4: #{vit_forward.8} parent=0 // loop_header_branch
    %17 = sbr.rel (%p15) target = $region8
  $region5: #{vit_forward.8} parent=0 // loop_body
    %s19 = ssub.s32 %s14, 1
    %s20 = ssub.s32 %s14, 2
    %s27 = sadd.s32 1, %s22
    %p28 = scmp.ge.s32.totalorder %s27, 1
    %s29 = scalar_select %p28, 0, %s27
    %s30 = sadd.s32 1, %s21
    %s31 = scalar_select %p28, %s30, %s21
    %p32 = scmp.ge.s32.totalorder %s31, 2
    %s33 = scalar_select %p32, 0, %s31
    %s34 = ssub.s32 %s21, %s33
    %s35 = ssub.s32 %s22, %s29
    %s36 = sor.u32 %s34, %s35
    %p37 = scmp.eq.s32.totalorder %s36, 0
    %s39 = sadd.s32 %s38, 1
    %s40 = scalar_select %p37, %s38, %s39
    %p43 = pneg %p37
    %p44 = scmp.eq.s32.totalorder %s14, 1
    %p45 = por %p43, %p44
    %p46 = scmp.ne.s32.totalorder %s38, %s41
    %p47 = scmp.eq.s32.totalorder %s14, 0
    %p48 = por %p46, %p47
    %p49 = scmp.ne.s32.totalorder %s38, %s41
    %p50 = scmp.eq.s32.totalorder %s19, 1
    %p51 = por %p49, %p50
    %p52 = scmp.ne.s32.totalorder %s41, %s42
    %p53 = scmp.eq.s32.totalorder %s19, 0
    %p54 = por %p52, %p53
    %p55 = scmp.ne.s32.totalorder %s41, %s42
    %p56 = scmp.eq.s32.totalorder %s20, 1
    %p57 = por %p55, %p56
    %p59 = scmp.ne.s32.totalorder %s42, %s58
    %p60 = scmp.eq.s32.totalorder %s20, 0
    %p61 = por %p59, %p60
    %s63 = sadd.s32 %s62, 1
    %p66 = scmp.eq.s32.totalorder %s14, 1
    %p67 = scmp.ne.s32.totalorder %s62, %s64
    %p68 = scmp.eq.s32.totalorder %s14, 0
    %p69 = por %p67, %p68
    %p70 = scmp.ne.s32.totalorder %s62, %s64
    %p71 = scmp.eq.s32.totalorder %s19, 1
    %p72 = por %p70, %p71
    %p73 = scmp.ne.s32.totalorder %s64, %s65
    %p74 = scmp.eq.s32.totalorder %s19, 0
    %p75 = por %p73, %p74
    %p76 = scmp.ne.s32.totalorder %s64, %s65
    %p77 = scmp.eq.s32.totalorder %s20, 1
    %p78 = por %p76, %p77
    %p80 = scmp.ne.s32.totalorder %s65, %s79
    %p81 = scmp.eq.s32.totalorder %s20, 0
    %p82 = por %p80, %p81
    %s84 = sadd.s32 %s83, 1
    %p87 = scmp.eq.s32.totalorder %s14, 1
    %p88 = scmp.ne.s32.totalorder %s83, %s85
    %p89 = scmp.eq.s32.totalorder %s14, 0
    %p90 = por %p88, %p89
    %p91 = scmp.ne.s32.totalorder %s83, %s85
    %p92 = scmp.eq.s32.totalorder %s19, 1
    %p93 = por %p91, %p92
    %p94 = scmp.ne.s32.totalorder %s85, %s86
    %p95 = scmp.eq.s32.totalorder %s19, 0
    %p96 = por %p94, %p95
    %p97 = scmp.ne.s32.totalorder %s85, %s86
    %p98 = scmp.eq.s32.totalorder %s20, 1
    %p99 = por %p97, %p98
    %p101 = scmp.ne.s32.totalorder %s86, %s100
    %p102 = scmp.eq.s32.totalorder %s20, 0
    %p103 = por %p101, %p102
    %s105 = sadd.s32 %s104, 1
    %p108 = scmp.eq.s32.totalorder %s14, 1
    %p109 = scmp.ne.s32.totalorder %s104, %s106
    %p110 = scmp.eq.s32.totalorder %s14, 0
    %p111 = por %p109, %p110
    %p112 = scmp.ne.s32.totalorder %s104, %s106
    %p113 = scmp.eq.s32.totalorder %s19, 1
    %p114 = por %p112, %p113
    %p115 = scmp.ne.s32.totalorder %s106, %s107
    %p116 = scmp.eq.s32.totalorder %s19, 0
    %p117 = por %p115, %p116
    %p118 = scmp.ne.s32.totalorder %s106, %s107
    %p119 = scmp.eq.s32.totalorder %s20, 1
    %p120 = por %p118, %p119
    %p122 = scmp.ne.s32.totalorder %s107, %s121
    %p123 = scmp.eq.s32.totalorder %s20, 0
    %p124 = por %p122, %p123
    %s126 = sadd.s32 %s125, 1
    %p129 = scmp.eq.s32.totalorder %s14, 1
    %p130 = scmp.ne.s32.totalorder %s125, %s127
    %p131 = scmp.eq.s32.totalorder %s14, 0
    %p132 = por %p130, %p131
    %p133 = scmp.ne.s32.totalorder %s125, %s127
    %p134 = scmp.eq.s32.totalorder %s19, 1
    %p135 = por %p133, %p134
    %p136 = scmp.ne.s32.totalorder %s127, %s128
    %p137 = scmp.eq.s32.totalorder %s19, 0
    %p138 = por %p136, %p137
    %p139 = scmp.ne.s32.totalorder %s127, %s128
    %p140 = scmp.eq.s32.totalorder %s20, 1
    %p141 = por %p139, %p140
    %p143 = scmp.ne.s32.totalorder %s128, %s142
    %p144 = scmp.eq.s32.totalorder %s20, 0
    %p145 = por %p143, %p144
    %s146 = ssub.s32 %s21, %s33
    %s147 = ssub.s32 %s22, %s29
    %s148 = sor.u32 %s146, %s147
    %p149 = scmp.eq.s32.totalorder %s148, 0
    %s151 = sadd.s32 %s150, 1
    %s152 = scalar_select %p149, %s150, %s151
    %p155 = pneg %p149
    %p156 = scmp.eq.s32.totalorder %s14, 1
    %p157 = por %p155, %p156
    %p158 = scmp.ne.s32.totalorder %s150, %s153
    %p159 = scmp.eq.s32.totalorder %s14, 0
    %p160 = por %p158, %p159
    %p161 = scmp.ne.s32.totalorder %s150, %s153
    %p162 = scmp.eq.s32.totalorder %s19, 1
    %p163 = por %p161, %p162
    %p164 = scmp.ne.s32.totalorder %s153, %s154
    %p165 = scmp.eq.s32.totalorder %s19, 0
    %p166 = por %p164, %p165
    %p167 = scmp.ne.s32.totalorder %s153, %s154
    %p168 = scmp.eq.s32.totalorder %s20, 1
    %p169 = por %p167, %p168
    %p171 = scmp.ne.s32.totalorder %s154, %s170
    %p172 = scmp.eq.s32.totalorder %s20, 0
    %p173 = por %p171, %p172
    %s174 = ssub.s32 %s21, %s33
    %s175 = ssub.s32 %s22, %s29
    %s176 = sor.u32 %s174, %s175
    %p177 = scmp.eq.s32.totalorder %s176, 0
    %s179 = sadd.s32 %s178, 1
    %s180 = scalar_select %p177, %s178, %s179
    %p183 = pneg %p177
    %p184 = scmp.eq.s32.totalorder %s14, 1
    %p185 = por %p183, %p184
    %p186 = scmp.ne.s32.totalorder %s178, %s181
    %p187 = scmp.eq.s32.totalorder %s14, 0
    %p188 = por %p186, %p187
    %p189 = scmp.ne.s32.totalorder %s178, %s181
    %p190 = scmp.eq.s32.totalorder %s19, 1
    %p191 = por %p189, %p190
    %p192 = scmp.ne.s32.totalorder %s181, %s182
    %p193 = scmp.eq.s32.totalorder %s19, 0
    %p194 = por %p192, %p193
    %p195 = scmp.ne.s32.totalorder %s181, %s182
    %p196 = scmp.eq.s32.totalorder %s20, 1
    %p197 = por %p195, %p196
    %p199 = scmp.ne.s32.totalorder %s182, %s198
    %p200 = scmp.eq.s32.totalorder %s20, 0
    %p201 = por %p199, %p200
    %s202 = ssub.s32 %s21, %s33
    %s203 = ssub.s32 %s22, %s29
    %s204 = sor.u32 %s202, %s203
    %p205 = scmp.eq.s32.totalorder %s204, 0
    %s207 = sadd.s32 %s206, 1
    %s208 = scalar_select %p205, %s206, %s207
    %p211 = pneg %p205
    %p212 = scmp.eq.s32.totalorder %s14, 1
    %p213 = por %p211, %p212
    %p214 = scmp.ne.s32.totalorder %s206, %s209
    %p215 = scmp.eq.s32.totalorder %s14, 0
    %p216 = por %p214, %p215
    %p217 = scmp.ne.s32.totalorder %s206, %s209
    %p218 = scmp.eq.s32.totalorder %s19, 1
    %p219 = por %p217, %p218
    %p220 = scmp.ne.s32.totalorder %s209, %s210
    %p221 = scmp.eq.s32.totalorder %s19, 0
    %p222 = por %p220, %p221
    %p223 = scmp.ne.s32.totalorder %s209, %s210
    %p224 = scmp.eq.s32.totalorder %s20, 1
    %p225 = por %p223, %p224
    %p227 = scmp.ne.s32.totalorder %s210, %s226
    %p228 = scmp.eq.s32.totalorder %s20, 0
    %p229 = por %p227, %p228
    %p230 = scmp.le.s32.totalorder 1, %s14
    %p231 = scmp.lt.s32.totalorder %s14, 3
    %p232 = pnand %p230, %p231
    %p233 = pneg %p232
    // Predicated region
    $region9: #{vit_forward.8} parent=5 // pred_check
      _
    $region10: #{vit_forward.8} parent=5 // pred_check_branch
      %235 = sbr.rel (%p232) target = $region12
    $region11: #{vit_forward.8} parent=5 // pred_region
      %s236 = ssub.s32 %s14, 1
      // Predicated region
      $region13: #{vit_forward.8} parent=11 // pred_check
        %p237 = pneg %p75
      $region14: #{vit_forward.8} parent=11 // pred_check_branch
        %239 = sbr.rel (%p237) target = $region16
      $region15: #{vit_forward.8} parent=11 // pred_region
        _
      $region16: #{vit_forward.8} parent=11 // pred_fallthru
        _
      // Predicated region
      $region17: #{vit_forward.8} parent=11 // pred_check
        %p240 = pneg %p96
      $region18: #{vit_forward.8} parent=11 // pred_check_branch
        %242 = sbr.rel (%p240) target = $region20
      $region19: #{vit_forward.8} parent=11 // pred_region
        _
      $region20: #{vit_forward.8} parent=11 // pred_fallthru
        _
      // Predicated region
      $region21: #{vit_forward.8} parent=11 // pred_check
        %p243 = pneg %p117
      $region22: #{vit_forward.8} parent=11 // pred_check_branch
        %245 = sbr.rel (%p243) target = $region24
      $region23: #{vit_forward.8} parent=11 // pred_region
        _
      $region24: #{vit_forward.8} parent=11 // pred_fallthru
        _
      // Predicated region
      $region25: #{vit_forward.8} parent=11 // pred_check
        %p246 = pneg %p138
      $region26: #{vit_forward.8} parent=11 // pred_check_branch
        %248 = sbr.rel (%p246) target = $region28
      $region27: #{vit_forward.8} parent=11 // pred_region
        _
      $region28: #{vit_forward.8} parent=11 // pred_fallthru
        _
    $region12: #{vit_forward.8} parent=5 // pred_fallthru
      _
    %p249 = scmp.lt.s32.totalorder %s14, 2
    // Predicated region
    $region29: #{vit_forward.8} parent=5 // pred_check
      %p250 = pneg %p249
    $region30: #{vit_forward.8} parent=5 // pred_check_branch
      %252 = sbr.rel (%p250) target = $region32
    $region31: #{vit_forward.8} parent=5 // pred_region
      // Predicated region
      $region33: #{vit_forward.8} parent=31 // pred_check
        %p253 = pneg %p48
      $region34: #{vit_forward.8} parent=31 // pred_check_branch
        %255 = sbr.rel (%p253) target = $region36
      $region35: #{vit_forward.8} parent=31 // pred_region
        %s256 = smul.u32 2, %s22
        %p257 = scmp.lt.s32.totalorder %s21, 1
        %s258 = scalar_select %p257, %s21, 1
        %p259 = scmp.lt.s32.totalorder %s256, 1
        %s260 = scalar_select %p259, %s256, 1
        %s261 = smul.addr %s258, 2
        %s262 = sadd.s32 %s260, %s261
        %s263 = smul.addr %s262, 4
        %s264 = scalar_lea.vmem %s0, %s263
        %s265 = smul.u32 2, %s22
      $region36: #{vit_forward.8} parent=31 // pred_fallthru
        _
    $region32: #{vit_forward.8} parent=5 // pred_fallthru
      _
    %p266 = scmp.le.s32.totalorder 1, %s14
    %p267 = scmp.lt.s32.totalorder %s14, 3
    %p268 = pnand %p266, %p267
    %p269 = pneg %p268
    // Predicated region
    $region37: #{vit_forward.8} parent=5 // pred_check
      _
    $region38: #{vit_forward.8} parent=5 // pred_check_branch
      %271 = sbr.rel (%p268) target = $region40
    $region39: #{vit_forward.8} parent=5 // pred_region
      %s272 = ssub.s32 %s14, 1
      %s273 = smul.u32 2, %s24
      %p274 = scmp.lt.s32.totalorder %s23, 1
      %s275 = scalar_select %p274, %s23, 1
      %p276 = scmp.lt.s32.totalorder %s273, 1
      %s277 = scalar_select %p276, %s273, 1
      %s278 = smul.addr %s275, 2
      %s279 = sadd.s32 %s277, %s278
      %s280 = smul.addr %s279, 4
      %s281 = scalar_lea.vmem %s0, %s280
      %p282 = pneg %p54
      %p283 = pneg %p51
      %p284 = pneg %p75
      %p285 = pneg %p72
      %p286 = pneg %p96
      %p287 = pneg %p93
      %p288 = pneg %p117
      %p289 = pneg %p114
      %p290 = pneg %p138
      %p291 = pneg %p135
      %p292 = pneg %p166
      %p293 = pneg %p163
      %s294 = smul.u32 2, %s24
      %p295 = scmp.lt.s32.totalorder %s23, 1
      %s296 = scalar_select %p295, %s23, 1
      %p297 = scmp.lt.s32.totalorder %s294, 1
      %s298 = scalar_select %p297, %s294, 1
      %s299 = smul.addr %s296, 2
      %s300 = sadd.s32 %s298, %s299
      %s301 = smul.addr %s300, 4
      %s302 = scalar_lea.vmem %s5, %s301
      %p303 = pneg %p194
      %p304 = pneg %p191
      %s305 = smul.u32 2, %s24
      %p306 = scmp.lt.s32.totalorder %s23, 1
      %s307 = scalar_select %p306, %s23, 1
      %p308 = scmp.lt.s32.totalorder %s305, 1
      %s309 = scalar_select %p308, %s305, 1
      %s310 = smul.addr %s307, 2
      %s311 = sadd.s32 %s309, %s310
      %s312 = smul.addr %s311, 4
      %s313 = scalar_lea.vmem %s6, %s312
      %p314 = pneg %p222
      %p315 = pneg %p219
      %s316 = smul.u32 2, %s24
      %p317 = scmp.lt.s32.totalorder %s23, 1
      %s318 = scalar_select %p317, %s23, 1
      %p319 = scmp.lt.s32.totalorder %s316, 1
      %s320 = scalar_select %p319, %s316, 1
      %s321 = smul.addr %s318, 2
      %s322 = sadd.s32 %s320, %s321
      %s323 = smul.addr %s322, 4
      %s324 = scalar_lea.vmem %s7, %s323
      %s325 = smul.u32 2, %s24
      %p326 = scmp.lt.s32.totalorder %s23, 1
      %s327 = scalar_select %p326, %s23, 1
      %p328 = scmp.lt.s32.totalorder %s325, 1
      %s329 = scalar_select %p328, %s325, 1
      %s330 = smul.addr %s327, 2
      %s331 = sadd.s32 %s329, %s330
      %s332 = smul.addr %s331, 4
      %s333 = scalar_lea.vmem %s0, %s332
      %s334 = smul.u32 2, %s24
      %s335 = smul.u32 2, %s24
      %p336 = scmp.lt.s32.totalorder %s23, 1
      %s337 = scalar_select %p336, %s23, 1
      %p338 = scmp.lt.s32.totalorder %s335, 1
      %s339 = scalar_select %p338, %s335, 1
      %s340 = smul.addr %s337, 2
      %s341 = sadd.s32 %s339, %s340
      %s342 = smul.addr %s341, 4
      %s343 = scalar_lea.vmem %s5, %s342
      %s344 = smul.u32 2, %s24
      %s345 = smul.u32 2, %s24
      %p346 = scmp.lt.s32.totalorder %s23, 1
      %s347 = scalar_select %p346, %s23, 1
      %p348 = scmp.lt.s32.totalorder %s345, 1
      %s349 = scalar_select %p348, %s345, 1
      %s350 = smul.addr %s347, 2
      %s351 = sadd.s32 %s349, %s350
      %s352 = smul.addr %s351, 4
      %s353 = scalar_lea.vmem %s6, %s352
      %s354 = smul.u32 2, %s24
      %s355 = smul.u32 2, %s24
      %p356 = scmp.lt.s32.totalorder %s23, 1
      %s357 = scalar_select %p356, %s23, 1
      %p358 = scmp.lt.s32.totalorder %s355, 1
      %s359 = scalar_select %p358, %s355, 1
      %s360 = smul.addr %s357, 2
      %s361 = sadd.s32 %s359, %s360
      %s362 = smul.addr %s361, 4
      %s363 = scalar_lea.vmem %s7, %s362
      %s364 = smul.u32 2, %s24
      %v366 = vld [vmem:[%s333] sm:$0xf]
      %v367 = vld [vmem:[%s333 + $0x4] sm:$0xf]
      %v368 = vunpack.c.l.bf16 %v366
      %v369 = vunpack.c.l.bf16 %v367
      %v370 = vld [vmem:[%s1] sm:$0x1]
      %v371 = vld [vmem:[%s2] sm:$0x1]
      %vm372 = vcmask 261120
      %v373 = vsel %vm372, %v368, 0.0
      %374 = vadd.xlane.f32.xlu0 %v373
      %v375 = vpop.xlane.xlu0 %374
      %v376 = vsel %vm372, %v369, 0.0
      %377 = vadd.xlane.f32.xlu0 %v376
      %v378 = vpop.xlane.xlu0 %377
      %v379 = vrcp.pop 32.0
      %v380 = vmul.f32 %v375, %v379
      %v381 = vmul.f32 %v378, %v379
      %v382 = vsub.f32 %v368, %v380
      %v383 = vsub.f32 %v369, %v381
      %v384 = vmul.f32 %v382, %v382
      %v385 = vmul.f32 %v383, %v383
      %v386 = vsel %vm372, %v384, 0.0
      %387 = vadd.xlane.f32.xlu0 %v386
      %v388 = vpop.xlane.xlu0 %387
      %v389 = vsel %vm372, %v385, 0.0
      %390 = vadd.xlane.f32.xlu0 %v389
      %v391 = vpop.xlane.xlu0 %390
      %v392 = vmul.f32 %v388, %v379
      %v393 = vmul.f32 %v391, %v379
      %v394 = vadd.f32 %v392, 1e-05
      %v395 = vadd.f32 %v393, 1e-05
      %v396 = vrsqrt.pop %v394
      %v397 = vrsqrt.pop %v395
      %v398 = vmul.f32 %v382, %v396
      %v399 = vmul.f32 %v383, %v397
      %v401 = vlaneseq
      %v402 = vshrl.u32 %v401, 7
      %v403 = vsub.s32 0, %v402
      %v404 = vrot.slane %v370, %v403
      %v406 = vmul.f32 %v398, %v404
      %v407 = vmul.f32 %v399, %v404
      %v409 = vlaneseq
      %v410 = vshrl.u32 %v409, 7
      %v411 = vsub.s32 0, %v410
      %v412 = vrot.slane %v371, %v411
      %v414 = vadd.f32 %v406, %v412
      %v415 = vadd.f32 %v407, %v412
      %v416 = vpack.c.bf16 %v415, %v414
      %v417 = vld [vmem:[%s3] sm:$0xf]
      %v418 = vld [vmem:[%s3 + $0x4] sm:$0xf]
      %v419 = vld [vmem:[%s3 + $0x8] sm:$0xf]
      %v420 = vld [vmem:[%s3 + $0xc] sm:$0xf]
      %v421 = vld [vmem:[%s4] sm:$0x1]
      %v423 = vlaneseq
      %v424 = vshrl.u32 %v423, 7
      %v425 = vsub.s32 0, %v424
      %v426 = vrot.slane %v421, %v425
      %v432 = vunpack.c.l.b16 %v417
      %v433 = vunpack.c.l.b16 %v418
      %v434 = vunpack.c.l.b16 %v419
      %v435 = vunpack.c.l.b16 %v420
      %v436 = vpack.c.b16 %v433, %v432
      %v437 = vpack.c.b16 %v435, %v434
      %v441 = vsel %vm372, %v416, 0
      %443 = vmatprep.subr.bf16.mxu0 0
      %444 = vmatpush1.bf16.msra.mxu0 %v436
      %445 = vmatprep.subr.bf16.mxu0 0
      %446 = vmatpush1.bf16.msra.mxu0 %v437
      %447 = vmatprep.subr.bf16.mxu0 0
      %448 = vmatpush1.bf16.msra.mxu0 0
      %449 = vmatprep.subr.bf16.mxu0 0
      %450 = vmatpush1.bf16.msra.mxu0 0
      %451 = vmatprep.subr.bf16.mxu0 0
      %452 = vmatpush1.bf16.msra.mxu0 0
      %453 = vmatprep.subr.bf16.mxu0 0
      %454 = vmatpush1.bf16.msra.mxu0 0
      %455 = vmatprep.subr.bf16.mxu0 0
      %456 = vmatpush1.bf16.msra.mxu0 0
      %457 = vmatprep.subr.bf16.mxu0 0
      %458 = vmatpush1.bf16.msra.mxu0 0
      %459 = vmatprep.subr.bf16.mxu0 0
      %460 = vmatpush1.bf16.msra.mxu0 0
      %461 = vmatprep.subr.bf16.mxu0 0
      %462 = vmatpush1.bf16.msra.mxu0 0
      %463 = vmatprep.subr.bf16.mxu0 0
      %464 = vmatpush1.bf16.msra.mxu0 0
      %465 = vmatprep.subr.bf16.mxu0 0
      %466 = vmatpush1.bf16.msra.mxu0 0
      %467 = vmatprep.subr.bf16.mxu0 0
      %468 = vmatpush1.bf16.msra.mxu0 0
      %469 = vmatprep.subr.bf16.mxu0 0
      %470 = vmatpush1.bf16.msra.mxu0 0
      %471 = vmatprep.subr.bf16.mxu0 0
      %472 = vmatpush1.bf16.msra.mxu0 0
      %473 = vmatprep.subr.bf16.mxu0 0
      %474 = vmatpush1.bf16.msra.mxu0 0
      %475 = vmatprep.mubr.bf16.mxu0 0
      %476 = vmatmul.mubr.bf16.gmra.mrb[0].mxu0 %v441
      %v477 = vpop.f32.mrb[0].mxu0
      %v478 = vadd.f32 %v426, %v477
      %v479 = vpop.f32.mrb[0].mxu0
      %v480 = vpop.f32.mrb[0].mxu0
      %v481 = vadd.f32 %v426, %v480
      %v482 = vpop.f32.mrb[0].mxu0
      %483 = vdwg.mxu0
      %v484 = vpack.c.bf16 %v481, %v478
      %v486 = vunpack.c.l.b16 %v484
      %v487 = vunpack.c.h.b16 %v484
      %v488 = vpack.c.b16 %v486, %v486
      %v489 = vpack.c.b16 %v487, %v487
      %vm492 = vcmask 257024
      %493 = vst.msk [vmem:[%s343] sm:$0xf] %vm492, %v488
      %494 = vst.msk [vmem:[%s343 + $0x4] sm:$0xf] %vm492, %v489
      %495 = vrot.lane.b32.xlu0 %v488, 96
      %v496 = vpop.permute.xlu0 %495
      %497 = vrot.lane.b32.xlu0 %v489, 96
      %v498 = vpop.permute.xlu0 %497
      %501 = vst.msk [vmem:[%s353] sm:$0xf] %vm492, %v496
      %502 = vst.msk [vmem:[%s353 + $0x4] sm:$0xf] %vm492, %v498
      %503 = vrot.lane.b32.xlu0 %v488, 64
      %v504 = vpop.permute.xlu0 %503
      %505 = vrot.lane.b32.xlu0 %v489, 64
      %v506 = vpop.permute.xlu0 %505
      %509 = vst.msk [vmem:[%s363] sm:$0xf] %vm492, %v504
      %510 = vst.msk [vmem:[%s363 + $0x4] sm:$0xf] %vm492, %v506
      %s511 = smul.u32 2, %s24
      %p512 = scmp.lt.s32.totalorder %s23, 1
      %s513 = scalar_select %p512, %s23, 1
      %p514 = scmp.lt.s32.totalorder %s511, 1
      %s515 = scalar_select %p514, %s511, 1
      %s516 = smul.addr %s513, 2
      %s517 = sadd.s32 %s515, %s516
      %s518 = smul.addr %s517, 4
      %s519 = scalar_lea.vmem %s5, %s518
      %s520 = smul.u32 2, %s24
      %p521 = scmp.lt.s32.totalorder %s23, 1
      %s522 = scalar_select %p521, %s23, 1
      %p523 = scmp.lt.s32.totalorder %s520, 1
      %s524 = scalar_select %p523, %s520, 1
      %s525 = smul.addr %s522, 2
      %s526 = sadd.s32 %s524, %s525
      %s527 = smul.addr %s526, 4
      %s528 = scalar_lea.vmem %s6, %s527
      %s529 = smul.u32 2, %s24
      %p530 = scmp.lt.s32.totalorder %s23, 1
      %s531 = scalar_select %p530, %s23, 1
      %p532 = scmp.lt.s32.totalorder %s529, 1
      %s533 = scalar_select %p532, %s529, 1
      %s534 = smul.addr %s531, 2
      %s535 = sadd.s32 %s533, %s534
      %s536 = smul.addr %s535, 4
      %s537 = scalar_lea.vmem %s7, %s536
      // Predicated region
      $region41: #{vit_forward.8} parent=39 // pred_check
        %p538 = pneg %p163
      $region42: #{vit_forward.8} parent=39 // pred_check_branch
        %540 = sbr.rel (%p538) target = $region44
      $region43: #{vit_forward.8} parent=39 // pred_region
        %s541 = smul.u32 2, %s24
      $region44: #{vit_forward.8} parent=39 // pred_fallthru
        _
      // Predicated region
      $region45: #{vit_forward.8} parent=39 // pred_check
        %p542 = pneg %p191
      $region46: #{vit_forward.8} parent=39 // pred_check_branch
        %544 = sbr.rel (%p542) target = $region48
      $region47: #{vit_forward.8} parent=39 // pred_region
        %s545 = smul.u32 2, %s24
      $region48: #{vit_forward.8} parent=39 // pred_fallthru
        _
      // Predicated region
      $region49: #{vit_forward.8} parent=39 // pred_check
        %p546 = pneg %p219
      $region50: #{vit_forward.8} parent=39 // pred_check_branch
        %548 = sbr.rel (%p546) target = $region52
      $region51: #{vit_forward.8} parent=39 // pred_region
        %s549 = smul.u32 2, %s24
      $region52: #{vit_forward.8} parent=39 // pred_fallthru
        _
    $region40: #{vit_forward.8} parent=5 // pred_fallthru
      _
    %p550 = scmp.le.s32.totalorder 2, %s14
    // Predicated region
    $region53: #{vit_forward.8} parent=5 // pred_check
      %p551 = pneg %p550
    $region54: #{vit_forward.8} parent=5 // pred_check_branch
      %553 = sbr.rel (%p551) target = $region56
    $region55: #{vit_forward.8} parent=5 // pred_region
      %s554 = ssub.s32 %s14, 2
      // Predicated region
      $region57: #{vit_forward.8} parent=55 // pred_check
        %p555 = pneg %p169
      $region58: #{vit_forward.8} parent=55 // pred_check_branch
        %557 = sbr.rel (%p555) target = $region60
      $region59: #{vit_forward.8} parent=55 // pred_region
        %s558 = smul.u32 2, %s26
        %p559 = scmp.lt.s32.totalorder %s25, 1
        %s560 = scalar_select %p559, %s25, 1
        %p561 = scmp.lt.s32.totalorder %s558, 1
        %s562 = scalar_select %p561, %s558, 1
        %s563 = smul.addr %s560, 2
        %s564 = sadd.s32 %s562, %s563
        %s565 = smul.addr %s564, 4
        %s566 = scalar_lea.vmem %s5, %s565
      $region60: #{vit_forward.8} parent=55 // pred_fallthru
        _
      // Predicated region
      $region61: #{vit_forward.8} parent=55 // pred_check
        %p567 = pneg %p197
      $region62: #{vit_forward.8} parent=55 // pred_check_branch
        %569 = sbr.rel (%p567) target = $region64
      $region63: #{vit_forward.8} parent=55 // pred_region
        %s570 = smul.u32 2, %s26
        %p571 = scmp.lt.s32.totalorder %s25, 1
        %s572 = scalar_select %p571, %s25, 1
        %p573 = scmp.lt.s32.totalorder %s570, 1
        %s574 = scalar_select %p573, %s570, 1
        %s575 = smul.addr %s572, 2
        %s576 = sadd.s32 %s574, %s575
        %s577 = smul.addr %s576, 4
        %s578 = scalar_lea.vmem %s6, %s577
      $region64: #{vit_forward.8} parent=55 // pred_fallthru
        _
      // Predicated region
      $region65: #{vit_forward.8} parent=55 // pred_check
        %p579 = pneg %p225
      $region66: #{vit_forward.8} parent=55 // pred_check_branch
        %581 = sbr.rel (%p579) target = $region68
      $region67: #{vit_forward.8} parent=55 // pred_region
        %s582 = smul.u32 2, %s26
        %p583 = scmp.lt.s32.totalorder %s25, 1
        %s584 = scalar_select %p583, %s25, 1
        %p585 = scmp.lt.s32.totalorder %s582, 1
        %s586 = scalar_select %p585, %s582, 1
        %s587 = smul.addr %s584, 2
        %s588 = sadd.s32 %s586, %s587
        %s589 = smul.addr %s588, 4
        %s590 = scalar_lea.vmem %s7, %s589
      $region68: #{vit_forward.8} parent=55 // pred_fallthru
        _
    $region56: #{vit_forward.8} parent=5 // pred_fallthru
      _
  $region6: #{vit_forward.8} parent=0 // loop_footer
    %s18 = sadd.s32 1, %s14
  $region7: #{vit_forward.8} parent=0 // loop_footer_branch
    %13 = sbr.rel target = $region3
  $region8: #{vit_forward.8} parent=0 // loop_exit
    _

// kernel: vit_forward.7
$region0: #{vit_forward.7}
  #allocation0 [shape = 'u32[]', space=smem, size = 0x4, offset = 0x4, fixed_abs, tag = 'smem constant byte address 0x4 - core index']
  #allocation1 [shape = 'u32[144,128]{1,0:T(1,128)}', space=vmem, size = 0x12000, scoped, tag = 'internal scratch']
  %s0 = inlined_call_operand.vmem [shape: bf16[2,16,768], index: 0, kind: input, shape index: {}]
  %s1 = inlined_call_operand.vmem [shape: bf16[768,32], index: 1, kind: input, shape index: {}]
  %s2 = inlined_call_operand.vmem [shape: f32[1,32], index: 2, kind: input, shape index: {}]
  %s3 = inlined_call_operand.vmem [shape: f32[16,32], index: 3, kind: input, shape index: {}]
  %s4 = inlined_call_operand.vmem [shape: bf16[2,16,32], index: 4, kind: output, shape index: {}]
  %s5 = sld [smem:[#allocation0]]
  $region49: #{vit_forward.7} parent=0
    _
  %s7 = ssub.s32 1, %s5
  %s8 = scalar_select 0, %s7, %s5
  loop: start=0, step=1, limit=4
  $region2: #{vit_forward.7} parent=0 // loop_pre_header
    _
  $region3: #{vit_forward.7} parent=0 // loop_header
    %s10 = sphi 0, %s14
    %p11 = scmp.ge.s32.totalorder %s10, 4
    %s17 = sphi 0, %s29
    %s18 = sphi 0, %s25
    %s19 = sphi 0, %s17
    %s20 = sphi 0, %s18
    %s21 = sphi 0, %s19
    %s22 = sphi 0, %s20
    %s34 = sphi 0, %s36
    %s37 = sphi 0, %s34
    %s38 = sphi 0, %s37
    %s54 = sphi 0, %s38
    %s58 = sphi 0, %s58
    %s60 = sphi 0, %s58
    %s61 = sphi 0, %s60
    %s75 = sphi 0, %s61
    %s79 = sphi 0, %s79
    %s81 = sphi 0, %s79
    %s82 = sphi 0, %s81
    %s96 = sphi 0, %s82
    %s102 = sphi 0, %s104
    %s105 = sphi 0, %s102
    %s106 = sphi 0, %s105
    %s122 = sphi 0, %s106
    %s130 = sphi 0, %s132
    %s133 = sphi 0, %s130
    %s134 = sphi 0, %s133
    %s150 = sphi 0, %s134
  $region4: #{vit_forward.7} parent=0 // loop_header_branch
    %13 = sbr.rel (%p11) target = $region8
  $region5: #{vit_forward.7} parent=0 // loop_body
    %s15 = ssub.s32 %s10, 1
    %s16 = ssub.s32 %s10, 2
    %s23 = sadd.s32 1, %s18
    %p24 = scmp.ge.s32.totalorder %s23, 1
    %s25 = scalar_select %p24, 0, %s23
    %s26 = sadd.s32 1, %s17
    %s27 = scalar_select %p24, %s26, %s17
    %p28 = scmp.ge.s32.totalorder %s27, 2
    %s29 = scalar_select %p28, 0, %s27
    %s30 = ssub.s32 %s17, %s29
    %s31 = ssub.s32 %s18, %s25
    %s32 = sor.u32 %s30, %s31
    %p33 = scmp.eq.s32.totalorder %s32, 0
    %s35 = sadd.s32 %s34, 1
    %s36 = scalar_select %p33, %s34, %s35
    %p39 = pneg %p33
    %p40 = scmp.eq.s32.totalorder %s10, 1
    %p41 = por %p39, %p40
    %p42 = scmp.ne.s32.totalorder %s34, %s37
    %p43 = scmp.eq.s32.totalorder %s10, 0
    %p44 = por %p42, %p43
    %p45 = scmp.ne.s32.totalorder %s34, %s37
    %p46 = scmp.eq.s32.totalorder %s15, 1
    %p47 = por %p45, %p46
    %p48 = scmp.ne.s32.totalorder %s37, %s38
    %p49 = scmp.eq.s32.totalorder %s15, 0
    %p50 = por %p48, %p49
    %p51 = scmp.ne.s32.totalorder %s37, %s38
    %p52 = scmp.eq.s32.totalorder %s16, 1
    %p53 = por %p51, %p52
    %p55 = scmp.ne.s32.totalorder %s38, %s54
    %p56 = scmp.eq.s32.totalorder %s16, 0
    %p57 = por %p55, %p56
    %s59 = sadd.s32 %s58, 1
    %p62 = scmp.eq.s32.totalorder %s10, 1
    %p63 = scmp.ne.s32.totalorder %s58, %s60
    %p64 = scmp.eq.s32.totalorder %s10, 0
    %p65 = por %p63, %p64
    %p66 = scmp.ne.s32.totalorder %s58, %s60
    %p67 = scmp.eq.s32.totalorder %s15, 1
    %p68 = por %p66, %p67
    %p69 = scmp.ne.s32.totalorder %s60, %s61
    %p70 = scmp.eq.s32.totalorder %s15, 0
    %p71 = por %p69, %p70
    %p72 = scmp.ne.s32.totalorder %s60, %s61
    %p73 = scmp.eq.s32.totalorder %s16, 1
    %p74 = por %p72, %p73
    %p76 = scmp.ne.s32.totalorder %s61, %s75
    %p77 = scmp.eq.s32.totalorder %s16, 0
    %p78 = por %p76, %p77
    %s80 = sadd.s32 %s79, 1
    %p83 = scmp.eq.s32.totalorder %s10, 1
    %p84 = scmp.ne.s32.totalorder %s79, %s81
    %p85 = scmp.eq.s32.totalorder %s10, 0
    %p86 = por %p84, %p85
    %p87 = scmp.ne.s32.totalorder %s79, %s81
    %p88 = scmp.eq.s32.totalorder %s15, 1
    %p89 = por %p87, %p88
    %p90 = scmp.ne.s32.totalorder %s81, %s82
    %p91 = scmp.eq.s32.totalorder %s15, 0
    %p92 = por %p90, %p91
    %p93 = scmp.ne.s32.totalorder %s81, %s82
    %p94 = scmp.eq.s32.totalorder %s16, 1
    %p95 = por %p93, %p94
    %p97 = scmp.ne.s32.totalorder %s82, %s96
    %p98 = scmp.eq.s32.totalorder %s16, 0
    %p99 = por %p97, %p98
    %s100 = ssub.s32 %s18, %s25
    %p101 = scmp.eq.s32.totalorder %s100, 0
    %s103 = sadd.s32 %s102, 1
    %s104 = scalar_select %p101, %s102, %s103
    %p107 = pneg %p101
    %p108 = scmp.eq.s32.totalorder %s10, 1
    %p109 = por %p107, %p108
    %p110 = scmp.ne.s32.totalorder %s102, %s105
    %p111 = scmp.eq.s32.totalorder %s10, 0
    %p112 = por %p110, %p111
    %p113 = scmp.ne.s32.totalorder %s102, %s105
    %p114 = scmp.eq.s32.totalorder %s15, 1
    %p115 = por %p113, %p114
    %p116 = scmp.ne.s32.totalorder %s105, %s106
    %p117 = scmp.eq.s32.totalorder %s15, 0
    %p118 = por %p116, %p117
    %p119 = scmp.ne.s32.totalorder %s105, %s106
    %p120 = scmp.eq.s32.totalorder %s16, 1
    %p121 = por %p119, %p120
    %p123 = scmp.ne.s32.totalorder %s106, %s122
    %p124 = scmp.eq.s32.totalorder %s16, 0
    %p125 = por %p123, %p124
    %s126 = ssub.s32 %s17, %s29
    %s127 = ssub.s32 %s18, %s25
    %s128 = sor.u32 %s126, %s127
    %p129 = scmp.eq.s32.totalorder %s128, 0
    %s131 = sadd.s32 %s130, 1
    %s132 = scalar_select %p129, %s130, %s131
    %p135 = pneg %p129
    %p136 = scmp.eq.s32.totalorder %s10, 1
    %p137 = por %p135, %p136
    %p138 = scmp.ne.s32.totalorder %s130, %s133
    %p139 = scmp.eq.s32.totalorder %s10, 0
    %p140 = por %p138, %p139
    %p141 = scmp.ne.s32.totalorder %s130, %s133
    %p142 = scmp.eq.s32.totalorder %s15, 1
    %p143 = por %p141, %p142
    %p144 = scmp.ne.s32.totalorder %s133, %s134
    %p145 = scmp.eq.s32.totalorder %s15, 0
    %p146 = por %p144, %p145
    %p147 = scmp.ne.s32.totalorder %s133, %s134
    %p148 = scmp.eq.s32.totalorder %s16, 1
    %p149 = por %p147, %p148
    %p151 = scmp.ne.s32.totalorder %s134, %s150
    %p152 = scmp.eq.s32.totalorder %s16, 0
    %p153 = por %p151, %p152
    %p154 = scmp.le.s32.totalorder 1, %s10
    %p155 = scmp.lt.s32.totalorder %s10, 3
    %p156 = pnand %p154, %p155
    %p157 = pneg %p156
    // Predicated region
    $region9: #{vit_forward.7} parent=5 // pred_check
      _
    $region10: #{vit_forward.7} parent=5 // pred_check_branch
      %159 = sbr.rel (%p156) target = $region12
    $region11: #{vit_forward.7} parent=5 // pred_region
      %s160 = ssub.s32 %s10, 1
      // Predicated region
      $region13: #{vit_forward.7} parent=11 // pred_check
        %p161 = pneg %p71
      $region14: #{vit_forward.7} parent=11 // pred_check_branch
        %163 = sbr.rel (%p161) target = $region16
      $region15: #{vit_forward.7} parent=11 // pred_region
        _
      $region16: #{vit_forward.7} parent=11 // pred_fallthru
        _
      // Predicated region
      $region17: #{vit_forward.7} parent=11 // pred_check
        %p164 = pneg %p92
      $region18: #{vit_forward.7} parent=11 // pred_check_branch
        %166 = sbr.rel (%p164) target = $region20
      $region19: #{vit_forward.7} parent=11 // pred_region
        _
      $region20: #{vit_forward.7} parent=11 // pred_fallthru
        _
      // Predicated region
      $region21: #{vit_forward.7} parent=11 // pred_check
        %p167 = pneg %p118
      $region22: #{vit_forward.7} parent=11 // pred_check_branch
        %169 = sbr.rel (%p167) target = $region24
      $region23: #{vit_forward.7} parent=11 // pred_region
        %s170 = smul.u32 2, %s20
        %p171 = scmp.lt.s32.totalorder %s170, 1
        %s172 = scalar_select %p171, %s170, 1
        %s173 = smul.addr %s172, 8
        %s174 = scalar_lea.vmem %s3, %s173
        %s175 = smul.u32 2, %s20
      $region24: #{vit_forward.7} parent=11 // pred_fallthru
        _
    $region12: #{vit_forward.7} parent=5 // pred_fallthru
      _
    %p176 = scmp.lt.s32.totalorder %s10, 2
    // Predicated region
    $region25: #{vit_forward.7} parent=5 // pred_check
      %p177 = pneg %p176
    $region26: #{vit_forward.7} parent=5 // pred_check_branch
      %179 = sbr.rel (%p177) target = $region28
    $region27: #{vit_forward.7} parent=5 // pred_region
      // Predicated region
      $region29: #{vit_forward.7} parent=27 // pred_check
        %p180 = pneg %p44
      $region30: #{vit_forward.7} parent=27 // pred_check_branch
        %182 = sbr.rel (%p180) target = $region32
      $region31: #{vit_forward.7} parent=27 // pred_region
        %s183 = smul.u32 2, %s18
        %p184 = scmp.lt.s32.totalorder %s17, 1
        %s185 = scalar_select %p184, %s17, 1
        %p186 = scmp.lt.s32.totalorder %s183, 1
        %s187 = scalar_select %p186, %s183, 1
        %s188 = smul.addr %s187, 6
        %s189 = smul.addr %s185, 12
        %s190 = sadd.s32 %s188, %s189
        %s191 = smul.addr %s190, 4
        %s192 = scalar_lea.vmem %s0, %s191
        %s193 = smul.u32 2, %s18
      $region32: #{vit_forward.7} parent=27 // pred_fallthru
        _
    $region28: #{vit_forward.7} parent=5 // pred_fallthru
      _
    %p194 = scmp.le.s32.totalorder 1, %s10
    %p195 = scmp.lt.s32.totalorder %s10, 3
    %p196 = pnand %p194, %p195
    %p197 = pneg %p196
    // Predicated region
    $region33: #{vit_forward.7} parent=5 // pred_check
      _
    $region34: #{vit_forward.7} parent=5 // pred_check_branch
      %199 = sbr.rel (%p196) target = $region36
    $region35: #{vit_forward.7} parent=5 // pred_region
      %s200 = ssub.s32 %s10, 1
      %s201 = smul.u32 2, %s20
      %p202 = scmp.lt.s32.totalorder %s19, 1
      %s203 = scalar_select %p202, %s19, 1
      %p204 = scmp.lt.s32.totalorder %s201, 1
      %s205 = scalar_select %p204, %s201, 1
      %s206 = smul.addr %s205, 6
      %s207 = smul.addr %s203, 12
      %s208 = sadd.s32 %s206, %s207
      %s209 = smul.addr %s208, 4
      %s210 = scalar_lea.vmem %s0, %s209
      %p211 = pneg %p50
      %p212 = pneg %p47
      %p213 = pneg %p71
      %p214 = pneg %p68
      %p215 = pneg %p92
      %p216 = pneg %p89
      %s217 = smul.u32 2, %s20
      %p218 = scmp.lt.s32.totalorder %s217, 1
      %s219 = scalar_select %p218, %s217, 1
      %s220 = smul.addr %s219, 8
      %s221 = scalar_lea.vmem %s3, %s220
      %p222 = pneg %p118
      %p223 = pneg %p115
      %p224 = pneg %p146
      %p225 = pneg %p143
      %s226 = smul.u32 2, %s20
      %p227 = scmp.lt.s32.totalorder %s19, 1
      %s228 = scalar_select %p227, %s19, 1
      %p229 = scmp.lt.s32.totalorder %s226, 1
      %s230 = scalar_select %p229, %s226, 1
      %s231 = smul.addr %s228, 2
      %s232 = sadd.s32 %s230, %s231
      %s233 = smul.addr %s232, 4
      %s234 = scalar_lea.vmem %s4, %s233
      %s235 = smul.u32 2, %s20
      %p236 = scmp.lt.s32.totalorder %s19, 1
      %s237 = scalar_select %p236, %s19, 1
      %p238 = scmp.lt.s32.totalorder %s235, 1
      %s239 = scalar_select %p238, %s235, 1
      %s240 = smul.addr %s239, 6
      %s241 = smul.addr %s237, 12
      %s242 = sadd.s32 %s240, %s241
      %s243 = smul.addr %s242, 4
      %s244 = scalar_lea.vmem %s0, %s243
      %s245 = smul.u32 2, %s20
      %s246 = smul.u32 2, %s20
      %p247 = scmp.lt.s32.totalorder %s246, 1
      %s248 = scalar_select %p247, %s246, 1
      %s249 = smul.addr %s248, 8
      %s250 = scalar_lea.vmem %s3, %s249
      %s251 = smul.u32 2, %s20
      %s252 = smul.u32 2, %s20
      %p253 = scmp.lt.s32.totalorder %s19, 1
      %s254 = scalar_select %p253, %s19, 1
      %p255 = scmp.lt.s32.totalorder %s252, 1
      %s256 = scalar_select %p255, %s252, 1
      %s257 = smul.addr %s254, 2
      %s258 = sadd.s32 %s256, %s257
      %s259 = smul.addr %s258, 4
      %s260 = scalar_lea.vmem %s4, %s259
      %s261 = smul.u32 2, %s20
      %v263 = vld [vmem:[%s244] sm:$0xff]
      %v264 = vld [vmem:[%s244 + $0x8] sm:$0xff]
      %v265 = vld [vmem:[%s244 + $0x10] sm:$0xff]
      %v266 = vld [vmem:[%s244 + $0x18] sm:$0xff]
      %v267 = vld [vmem:[%s244 + $0x20] sm:$0xff]
      %v268 = vld [vmem:[%s244 + $0x28] sm:$0xff]
      %v269 = vld [vmem:[%s1] sm:$0xf]
      %v270 = vld [vmem:[%s1 + $0x4] sm:$0xf]
      %v271 = vld [vmem:[%s1 + $0x8] sm:$0xf]
      %v272 = vld [vmem:[%s1 + $0xc] sm:$0xf]
      %v273 = vld [vmem:[%s1 + $0x10] sm:$0xf]
      %v274 = vld [vmem:[%s1 + $0x14] sm:$0xf]
      %v275 = vld [vmem:[%s1 + $0x18] sm:$0xf]
      %v276 = vld [vmem:[%s1 + $0x1c] sm:$0xf]
      %v277 = vld [vmem:[%s1 + $0x20] sm:$0xf]
      %v278 = vld [vmem:[%s1 + $0x24] sm:$0xf]
      %v279 = vld [vmem:[%s1 + $0x28] sm:$0xf]
      %v280 = vld [vmem:[%s1 + $0x2c] sm:$0xf]
      %v281 = vld [vmem:[%s1 + $0x30] sm:$0xf]
      %v282 = vld [vmem:[%s1 + $0x34] sm:$0xf]
      %v283 = vld [vmem:[%s1 + $0x38] sm:$0xf]
      %v284 = vld [vmem:[%s1 + $0x3c] sm:$0xf]
      %v285 = vld [vmem:[%s1 + $0x40] sm:$0xf]
      %v286 = vld [vmem:[%s1 + $0x44] sm:$0xf]
      %v287 = vld [vmem:[%s1 + $0x48] sm:$0xf]
      %v288 = vld [vmem:[%s1 + $0x4c] sm:$0xf]
      %v289 = vld [vmem:[%s1 + $0x50] sm:$0xf]
      %v290 = vld [vmem:[%s1 + $0x54] sm:$0xf]
      %v291 = vld [vmem:[%s1 + $0x58] sm:$0xf]
      %v292 = vld [vmem:[%s1 + $0x5c] sm:$0xf]
      %v293 = vld [vmem:[%s1 + $0x60] sm:$0xf]
      %v294 = vld [vmem:[%s1 + $0x64] sm:$0xf]
      %v295 = vld [vmem:[%s1 + $0x68] sm:$0xf]
      %v296 = vld [vmem:[%s1 + $0x6c] sm:$0xf]
      %v297 = vld [vmem:[%s1 + $0x70] sm:$0xf]
      %v298 = vld [vmem:[%s1 + $0x74] sm:$0xf]
      %v299 = vld [vmem:[%s1 + $0x78] sm:$0xf]
      %v300 = vld [vmem:[%s1 + $0x7c] sm:$0xf]
      %v301 = vld [vmem:[%s1 + $0x80] sm:$0xf]
      %v302 = vld [vmem:[%s1 + $0x84] sm:$0xf]
      %v303 = vld [vmem:[%s1 + $0x88] sm:$0xf]
      %v304 = vld [vmem:[%s1 + $0x8c] sm:$0xf]
      %v305 = vld [vmem:[%s1 + $0x90] sm:$0xf]
      %v306 = vld [vmem:[%s1 + $0x94] sm:$0xf]
      %v307 = vld [vmem:[%s1 + $0x98] sm:$0xf]
      %v308 = vld [vmem:[%s1 + $0x9c] sm:$0xf]
      %v309 = vld [vmem:[%s1 + $0xa0] sm:$0xf]
      %v310 = vld [vmem:[%s1 + $0xa4] sm:$0xf]
      %v311 = vld [vmem:[%s1 + $0xa8] sm:$0xf]
      %v312 = vld [vmem:[%s1 + $0xac] sm:$0xf]
      %v313 = vld [vmem:[%s1 + $0xb0] sm:$0xf]
      %v314 = vld [vmem:[%s1 + $0xb4] sm:$0xf]
      %v315 = vld [vmem:[%s1 + $0xb8] sm:$0xf]
      %v316 = vld [vmem:[%s1 + $0xbc] sm:$0xf]
      %v317 = vld [vmem:[%s1 + $0xc0] sm:$0xf]
      %v318 = vld [vmem:[%s1 + $0xc4] sm:$0xf]
      %v319 = vld [vmem:[%s1 + $0xc8] sm:$0xf]
      %v320 = vld [vmem:[%s1 + $0xcc] sm:$0xf]
      %v321 = vld [vmem:[%s1 + $0xd0] sm:$0xf]
      %v322 = vld [vmem:[%s1 + $0xd4] sm:$0xf]
      %v323 = vld [vmem:[%s1 + $0xd8] sm:$0xf]
      %v324 = vld [vmem:[%s1 + $0xdc] sm:$0xf]
      %v325 = vld [vmem:[%s1 + $0xe0] sm:$0xf]
      %v326 = vld [vmem:[%s1 + $0xe4] sm:$0xf]
      %v327 = vld [vmem:[%s1 + $0xe8] sm:$0xf]
      %v328 = vld [vmem:[%s1 + $0xec] sm:$0xf]
      %v329 = vld [vmem:[%s1 + $0xf0] sm:$0xf]
      %v330 = vld [vmem:[%s1 + $0xf4] sm:$0xf]
      %v331 = vld [vmem:[%s1 + $0xf8] sm:$0xf]
      %v332 = vld [vmem:[%s1 + $0xfc] sm:$0xf]
      %v333 = vld [vmem:[%s1 + $0x100] sm:$0xf]
      %v334 = vld [vmem:[%s1 + $0x104] sm:$0xf]
      %v335 = vld [vmem:[%s1 + $0x108] sm:$0xf]
      %v336 = vld [vmem:[%s1 + $0x10c] sm:$0xf]
      %v337 = vld [vmem:[%s1 + $0x110] sm:$0xf]
      %v338 = vld [vmem:[%s1 + $0x114] sm:$0xf]
      %v339 = vld [vmem:[%s1 + $0x118] sm:$0xf]
      %v340 = vld [vmem:[%s1 + $0x11c] sm:$0xf]
      %v341 = vld [vmem:[%s1 + $0x120] sm:$0xf]
      %v342 = vld [vmem:[%s1 + $0x124] sm:$0xf]
      %v343 = vld [vmem:[%s1 + $0x128] sm:$0xf]
      %v344 = vld [vmem:[%s1 + $0x12c] sm:$0xf]
      %v345 = vld [vmem:[%s1 + $0x130] sm:$0xf]
      %v346 = vld [vmem:[%s1 + $0x134] sm:$0xf]
      %v347 = vld [vmem:[%s1 + $0x138] sm:$0xf]
      %v348 = vld [vmem:[%s1 + $0x13c] sm:$0xf]
      %v349 = vld [vmem:[%s1 + $0x140] sm:$0xf]
      %v350 = vld [vmem:[%s1 + $0x144] sm:$0xf]
      %v351 = vld [vmem:[%s1 + $0x148] sm:$0xf]
      %v352 = vld [vmem:[%s1 + $0x14c] sm:$0xf]
      %v353 = vld [vmem:[%s1 + $0x150] sm:$0xf]
      %v354 = vld [vmem:[%s1 + $0x154] sm:$0xf]
      %v355 = vld [vmem:[%s1 + $0x158] sm:$0xf]
      %v356 = vld [vmem:[%s1 + $0x15c] sm:$0xf]
      %v357 = vld [vmem:[%s1 + $0x160] sm:$0xf]
      %v358 = vld [vmem:[%s1 + $0x164] sm:$0xf]
      %v359 = vld [vmem:[%s1 + $0x168] sm:$0xf]
      %v360 = vld [vmem:[%s1 + $0x16c] sm:$0xf]
      %v361 = vld [vmem:[%s1 + $0x170] sm:$0xf]
      %v362 = vld [vmem:[%s1 + $0x174] sm:$0xf]
      %v363 = vld [vmem:[%s1 + $0x178] sm:$0xf]
      %v364 = vld [vmem:[%s1 + $0x17c] sm:$0xf]
      %v365 = vld [vmem:[%s2] sm:$0x1]
      %v367 = vlaneseq
      %v368 = vshrl.u32 %v367, 7
      %v369 = vsub.s32 0, %v368
      %v370 = vrot.slane %v365, %v369
      %v378 = vunpack.c.l.b16 %v263
      %v379 = vunpack.c.h.b16 %v263
      %v380 = vunpack.c.l.b16 %v264
      %v381 = vunpack.c.h.b16 %v264
      %v382 = vunpack.c.l.b16 %v265
      %v383 = vunpack.c.h.b16 %v265
      %v384 = vunpack.c.l.b16 %v266
      %v385 = vunpack.c.h.b16 %v266
      %v386 = vunpack.c.l.b16 %v267
      %v387 = vunpack.c.h.b16 %v267
      %v388 = vunpack.c.l.b16 %v268
      %v389 = vunpack.c.h.b16 %v268
      %v390 = vpack.c.b16 %v384, %v378
      %v391 = vpack.c.b16 %v385, %v379
      %v392 = vpack.c.b16 %v386, %v380
      %v393 = vpack.c.b16 %v387, %v381
      %v394 = vpack.c.b16 %v388, %v382
      %v395 = vpack.c.b16 %v389, %v383
      %v498 = vunpack.c.l.b16 %v269
      %v499 = vunpack.c.l.b16 %v270
      %v500 = vunpack.c.l.b16 %v271
      %v501 = vunpack.c.l.b16 %v272
      %v502 = vunpack.c.l.b16 %v273
      %v503 = vunpack.c.l.b16 %v274
      %v504 = vunpack.c.l.b16 %v275
      %v505 = vunpack.c.l.b16 %v276
      %v506 = vunpack.c.l.b16 %v277
      %v507 = vunpack.c.l.b16 %v278
      %v508 = vunpack.c.l.b16 %v279
      %v509 = vunpack.c.l.b16 %v280
      %v510 = vunpack.c.l.b16 %v281
      %v511 = vunpack.c.l.b16 %v282
      %v512 = vunpack.c.l.b16 %v283
      %v513 = vunpack.c.l.b16 %v284
      %v514 = vunpack.c.l.b16 %v285
      %v515 = vunpack.c.l.b16 %v286
      %v516 = vunpack.c.l.b16 %v287
      %v517 = vunpack.c.l.b16 %v288
      %v518 = vunpack.c.l.b16 %v289
      %v519 = vunpack.c.l.b16 %v290
      %v520 = vunpack.c.l.b16 %v291
      %v521 = vunpack.c.l.b16 %v292
      %v522 = vunpack.c.l.b16 %v293
      %v523 = vunpack.c.l.b16 %v294
      %v524 = vunpack.c.l.b16 %v295
      %v525 = vunpack.c.l.b16 %v296
      %v526 = vunpack.c.l.b16 %v297
      %v527 = vunpack.c.l.b16 %v298
      %v528 = vunpack.c.l.b16 %v299
      %v529 = vunpack.c.l.b16 %v300
      %v530 = vunpack.c.l.b16 %v301
      %v531 = vunpack.c.l.b16 %v302
      %v532 = vunpack.c.l.b16 %v303
      %v533 = vunpack.c.l.b16 %v304
      %v534 = vunpack.c.l.b16 %v305
      %v535 = vunpack.c.l.b16 %v306
      %v536 = vunpack.c.l.b16 %v307
      %v537 = vunpack.c.l.b16 %v308
      %v538 = vunpack.c.l.b16 %v309
      %v539 = vunpack.c.l.b16 %v310
      %v540 = vunpack.c.l.b16 %v311
      %v541 = vunpack.c.l.b16 %v312
      %v542 = vunpack.c.l.b16 %v313
      %v543 = vunpack.c.l.b16 %v314
      %v544 = vunpack.c.l.b16 %v315
      %v545 = vunpack.c.l.b16 %v316
      %v546 = vunpack.c.l.b16 %v317
      %v547 = vunpack.c.l.b16 %v318
      %v548 = vunpack.c.l.b16 %v319
      %v549 = vunpack.c.l.b16 %v320
      %v550 = vunpack.c.l.b16 %v321
      %v551 = vunpack.c.l.b16 %v322
      %v552 = vunpack.c.l.b16 %v323
      %v553 = vunpack.c.l.b16 %v324
      %v554 = vunpack.c.l.b16 %v325
      %v555 = vunpack.c.l.b16 %v326
      %v556 = vunpack.c.l.b16 %v327
      %v557 = vunpack.c.l.b16 %v328
      %v558 = vunpack.c.l.b16 %v329
      %v559 = vunpack.c.l.b16 %v330
      %v560 = vunpack.c.l.b16 %v331
      %v561 = vunpack.c.l.b16 %v332
      %v562 = vunpack.c.l.b16 %v333
      %v563 = vunpack.c.l.b16 %v334
      %v564 = vunpack.c.l.b16 %v335
      %v565 = vunpack.c.l.b16 %v336
      %v566 = vunpack.c.l.b16 %v337
      %v567 = vunpack.c.l.b16 %v338
      %v568 = vunpack.c.l.b16 %v339
      %v569 = vunpack.c.l.b16 %v340
      %v570 = vunpack.c.l.b16 %v341
      %v571 = vunpack.c.l.b16 %v342
      %v572 = vunpack.c.l.b16 %v343
      %v573 = vunpack.c.l.b16 %v344
      %v574 = vunpack.c.l.b16 %v345
      %v575 = vunpack.c.l.b16 %v346
      %v576 = vunpack.c.l.b16 %v347
      %v577 = vunpack.c.l.b16 %v348
      %v578 = vunpack.c.l.b16 %v349
      %v579 = vunpack.c.l.b16 %v350
      %v580 = vunpack.c.l.b16 %v351
      %v581 = vunpack.c.l.b16 %v352
      %v582 = vunpack.c.l.b16 %v353
      %v583 = vunpack.c.l.b16 %v354
      %v584 = vunpack.c.l.b16 %v355
      %v585 = vunpack.c.l.b16 %v356
      %v586 = vunpack.c.l.b16 %v357
      %v587 = vunpack.c.l.b16 %v358
      %v588 = vunpack.c.l.b16 %v359
      %v589 = vunpack.c.l.b16 %v360
      %v590 = vunpack.c.l.b16 %v361
      %v591 = vunpack.c.l.b16 %v362
      %v592 = vunpack.c.l.b16 %v363
      %v593 = vunpack.c.l.b16 %v364
      %v594 = vpack.c.b16 %v499, %v498
      %v595 = vpack.c.b16 %v501, %v500
      %v596 = vpack.c.b16 %v503, %v502
      %v597 = vpack.c.b16 %v505, %v504
      %v598 = vpack.c.b16 %v507, %v506
      %v599 = vpack.c.b16 %v509, %v508
      %v600 = vpack.c.b16 %v511, %v510
      %v601 = vpack.c.b16 %v513, %v512
      %v602 = vpack.c.b16 %v515, %v514
      %v603 = vpack.c.b16 %v517, %v516
      %v604 = vpack.c.b16 %v519, %v518
      %v605 = vpack.c.b16 %v521, %v520
      %v606 = vpack.c.b16 %v523, %v522
      %v607 = vpack.c.b16 %v525, %v524
      %v608 = vpack.c.b16 %v527, %v526
      %v609 = vpack.c.b16 %v529, %v528
      %v610 = vpack.c.b16 %v531, %v530
      %v611 = vpack.c.b16 %v533, %v532
      %v612 = vpack.c.b16 %v535, %v534
      %v613 = vpack.c.b16 %v537, %v536
      %v614 = vpack.c.b16 %v539, %v538
      %v615 = vpack.c.b16 %v541, %v540
      %v616 = vpack.c.b16 %v543, %v542
      %v617 = vpack.c.b16 %v545, %v544
      %v618 = vpack.c.b16 %v547, %v546
      %v619 = vpack.c.b16 %v549, %v548
      %v620 = vpack.c.b16 %v551, %v550
      %v621 = vpack.c.b16 %v553, %v552
      %v622 = vpack.c.b16 %v555, %v554
      %v623 = vpack.c.b16 %v557, %v556
      %v624 = vpack.c.b16 %v559, %v558
      %v625 = vpack.c.b16 %v561, %v560
      %v626 = vpack.c.b16 %v563, %v562
      %v627 = vpack.c.b16 %v565, %v564
      %v628 = vpack.c.b16 %v567, %v566
      %v629 = vpack.c.b16 %v569, %v568
      %v630 = vpack.c.b16 %v571, %v570
      %v631 = vpack.c.b16 %v573, %v572
      %v632 = vpack.c.b16 %v575, %v574
      %v633 = vpack.c.b16 %v577, %v576
      %v634 = vpack.c.b16 %v579, %v578
      %v635 = vpack.c.b16 %v581, %v580
      %v636 = vpack.c.b16 %v583, %v582
      %v637 = vpack.c.b16 %v585, %v584
      %v638 = vpack.c.b16 %v587, %v586
      %v639 = vpack.c.b16 %v589, %v588
      %v640 = vpack.c.b16 %v591, %v590
      %v641 = vpack.c.b16 %v593, %v592
      %690 = vmatprep.subr.bf16.mxu0 0
      %691 = vmatpush1.bf16.msra.mxu0 %v594
      %692 = vmatprep.subr.bf16.mxu0 0
      %693 = vmatpush1.bf16.msra.mxu0 %v595
      %694 = vmatprep.subr.bf16.mxu0 0
      %695 = vmatpush1.bf16.msra.mxu0 %v596
      %696 = vmatprep.subr.bf16.mxu0 0
      %697 = vmatpush1.bf16.msra.mxu0 %v597
      %698 = vmatprep.subr.bf16.mxu0 0
      %699 = vmatpush1.bf16.msra.mxu0 %v598
      %700 = vmatprep.subr.bf16.mxu0 0
      %701 = vmatpush1.bf16.msra.mxu0 %v599
      %702 = vmatprep.subr.bf16.mxu0 0
      %703 = vmatpush1.bf16.msra.mxu0 %v600
      %704 = vmatprep.subr.bf16.mxu0 0
      %705 = vmatpush1.bf16.msra.mxu0 %v601
      %706 = vmatprep.subr.bf16.mxu0 0
      %707 = vmatpush1.bf16.msra.mxu0 %v602
      %708 = vmatprep.subr.bf16.mxu0 0
      %709 = vmatpush1.bf16.msra.mxu0 %v603
      %710 = vmatprep.subr.bf16.mxu0 0
      %711 = vmatpush1.bf16.msra.mxu0 %v604
      %712 = vmatprep.subr.bf16.mxu0 0
      %713 = vmatpush1.bf16.msra.mxu0 %v605
      %714 = vmatprep.subr.bf16.mxu0 0
      %715 = vmatpush1.bf16.msra.mxu0 %v606
      %716 = vmatprep.subr.bf16.mxu0 0
      %717 = vmatpush1.bf16.msra.mxu0 %v607
      %718 = vmatprep.subr.bf16.mxu0 0
      %719 = vmatpush1.bf16.msra.mxu0 %v608
      %720 = vmatprep.subr.bf16.mxu0 0
      %721 = vmatpush1.bf16.msra.mxu0 %v609
      %722 = vmatprep.mubr.bf16.mxu0 %v391
      %723 = vmatmul.mubr.bf16.gmra.mrb[0].mxu0 %v390
      %v724 = vpop.f32.mrb[0].mxu0
      %v725 = vadd.f32 %v370, %v724
      %v726 = vpop.f32.mrb[0].mxu0
      %v727 = vpop.f32.mrb[0].mxu0
      %v728 = vadd.f32 %v370, %v727
      %v729 = vpop.f32.mrb[0].mxu0
      %730 = vdwg.mxu0
      %731 = vmatprep.subr.bf16.mxu0 0
      %732 = vmatpush1.bf16.msra.mxu0 %v610
      %733 = vmatprep.subr.bf16.mxu0 0
      %734 = vmatpush1.bf16.msra.mxu0 %v611
      %735 = vmatprep.subr.bf16.mxu0 0
      %736 = vmatpush1.bf16.msra.mxu0 %v612
      %737 = vmatprep.subr.bf16.mxu0 0
      %738 = vmatpush1.bf16.msra.mxu0 %v613
      %739 = vmatprep.subr.bf16.mxu0 0
      %740 = vmatpush1.bf16.msra.mxu0 %v614
      %741 = vmatprep.subr.bf16.mxu0 0
      %742 = vmatpush1.bf16.msra.mxu0 %v615
      %743 = vmatprep.subr.bf16.mxu0 0
      %744 = vmatpush1.bf16.msra.mxu0 %v616
      %745 = vmatprep.subr.bf16.mxu0 0
      %746 = vmatpush1.bf16.msra.mxu0 %v617
      %747 = vmatprep.subr.bf16.mxu0 0
      %748 = vmatpush1.bf16.msra.mxu0 %v618
      %749 = vmatprep.subr.bf16.mxu0 0
      %750 = vmatpush1.bf16.msra.mxu0 %v619
      %751 = vmatprep.subr.bf16.mxu0 0
      %752 = vmatpush1.bf16.msra.mxu0 %v620
      %753 = vmatprep.subr.bf16.mxu0 0
      %754 = vmatpush1.bf16.msra.mxu0 %v621
      %755 = vmatprep.subr.bf16.mxu0 0
      %756 = vmatpush1.bf16.msra.mxu0 %v622
      %757 = vmatprep.subr.bf16.mxu0 0
      %758 = vmatpush1.bf16.msra.mxu0 %v623
      %759 = vmatprep.subr.bf16.mxu0 0
      %760 = vmatpush1.bf16.msra.mxu0 %v624
      %761 = vmatprep.subr.bf16.mxu0 0
      %762 = vmatpush1.bf16.msra.mxu0 %v625
      %763 = vmatprep.mubr.bf16.mxu0 %v393
      %764 = vmatmul.mubr.bf16.gmra.mrb[0].mxu0 %v392
      %v765 = vpop.f32.mrb[0].mxu0
      %v766 = vadd.f32 %v725, %v765
      %v767 = vpop.f32.mrb[0].mxu0
      %v768 = vpop.f32.mrb[0].mxu0
      %v769 = vadd.f32 %v728, %v768
      %v770 = vpop.f32.mrb[0].mxu0
      %771 = vdwg.mxu0
      %772 = vmatprep.subr.bf16.mxu0 0
      %773 = vmatpush1.bf16.msra.mxu0 %v626
      %774 = vmatprep.subr.bf16.mxu0 0
      %775 = vmatpush1.bf16.msra.mxu0 %v627
      %776 = vmatprep.subr.bf16.mxu0 0
      %777 = vmatpush1.bf16.msra.mxu0 %v628
      %778 = vmatprep.subr.bf16.mxu0 0
      %779 = vmatpush1.bf16.msra.mxu0 %v629
      %780 = vmatprep.subr.bf16.mxu0 0
      %781 = vmatpush1.bf16.msra.mxu0 %v630
      %782 = vmatprep.subr.bf16.mxu0 0
      %783 = vmatpush1.bf16.msra.mxu0 %v631
      %784 = vmatprep.subr.bf16.mxu0 0
      %785 = vmatpush1.bf16.msra.mxu0 %v632
      %786 = vmatprep.subr.bf16.mxu0 0
      %787 = vmatpush1.bf16.msra.mxu0 %v633
      %788 = vmatprep.subr.bf16.mxu0 0
      %789 = vmatpush1.bf16.msra.mxu0 %v634
      %790 = vmatprep.subr.bf16.mxu0 0
      %791 = vmatpush1.bf16.msra.mxu0 %v635
      %792 = vmatprep.subr.bf16.mxu0 0
      %793 = vmatpush1.bf16.msra.mxu0 %v636
      %794 = vmatprep.subr.bf16.mxu0 0
      %795 = vmatpush1.bf16.msra.mxu0 %v637
      %796 = vmatprep.subr.bf16.mxu0 0
      %797 = vmatpush1.bf16.msra.mxu0 %v638
      %798 = vmatprep.subr.bf16.mxu0 0
      %799 = vmatpush1.bf16.msra.mxu0 %v639
      %800 = vmatprep.subr.bf16.mxu0 0
      %801 = vmatpush1.bf16.msra.mxu0 %v640
      %802 = vmatprep.subr.bf16.mxu0 0
      %803 = vmatpush1.bf16.msra.mxu0 %v641
      %804 = vmatprep.mubr.bf16.mxu0 %v395
      %805 = vmatmul.mubr.bf16.gmra.mrb[0].mxu0 %v394
      %v806 = vpop.f32.mrb[0].mxu0
      %v807 = vadd.f32 %v766, %v806
      %v808 = vpop.f32.mrb[0].mxu0
      %v809 = vpop.f32.mrb[0].mxu0
      %v810 = vadd.f32 %v769, %v809
      %v811 = vpop.f32.mrb[0].mxu0
      %812 = vdwg.mxu0
      %v813 = vld [vmem:[%s250] sm:$0xff]
      %v814 = vld [vmem:[%s250 + $0x8] sm:$0xff]
      %v815 = vadd.f32 %v807, %v813
      %v816 = vadd.f32 %v810, %v814
      %v817 = vpack.c.bf16 %v816, %v815
      %v819 = vunpack.c.l.b16 %v817
      %v820 = vunpack.c.h.b16 %v817
      %v821 = vpack.c.b16 %v819, %v819
      %v822 = vpack.c.b16 %v820, %v820
      %vm825 = vcmask 257024
      %826 = vst.msk [vmem:[%s260] sm:$0xf] %vm825, %v821
      %827 = vst.msk [vmem:[%s260 + $0x4] sm:$0xf] %vm825, %v822
      %s828 = smul.u32 2, %s20
      %p829 = scmp.lt.s32.totalorder %s19, 1
      %s830 = scalar_select %p829, %s19, 1
      %p831 = scmp.lt.s32.totalorder %s828, 1
      %s832 = scalar_select %p831, %s828, 1
      %s833 = smul.addr %s830, 2
      %s834 = sadd.s32 %s832, %s833
      %s835 = smul.addr %s834, 4
      %s836 = scalar_lea.vmem %s4, %s835
      // Predicated region
      $region37: #{vit_forward.7} parent=35 // pred_check
        %p837 = pneg %p143
      $region38: #{vit_forward.7} parent=35 // pred_check_branch
        %839 = sbr.rel (%p837) target = $region40
      $region39: #{vit_forward.7} parent=35 // pred_region
        %s840 = smul.u32 2, %s20
      $region40: #{vit_forward.7} parent=35 // pred_fallthru
        _
    $region36: #{vit_forward.7} parent=5 // pred_fallthru
      _
    %p841 = scmp.le.s32.totalorder 2, %s10
    // Predicated region
    $region41: #{vit_forward.7} parent=5 // pred_check
      %p842 = pneg %p841
    $region42: #{vit_forward.7} parent=5 // pred_check_branch
      %844 = sbr.rel (%p842) target = $region44
    $region43: #{vit_forward.7} parent=5 // pred_region
      %s845 = ssub.s32 %s10, 2
      // Predicated region
      $region45: #{vit_forward.7} parent=43 // pred_check
        %p846 = pneg %p149
      $region46: #{vit_forward.7} parent=43 // pred_check_branch
        %848 = sbr.rel (%p846) target = $region48
      $region47: #{vit_forward.7} parent=43 // pred_region
        %s849 = smul.u32 2, %s22
        %p850 = scmp.lt.s32.totalorder %s21, 1
        %s851 = scalar_select %p850, %s21, 1
        %p852 = scmp.lt.s32.totalorder %s849, 1
        %s853 = scalar_select %p852, %s849, 1
        %s854 = smul.addr %s851, 2
        %s855 = sadd.s32 %s853, %s854
        %s856 = smul.addr %s855, 4
        %s857 = scalar_lea.vmem %s4, %s856
      $region48: #{vit_forward.7} parent=43 // pred_fallthru
        _
    $region44: #{vit_forward.7} parent=5 // pred_fallthru
      _
  $region6: #{vit_forward.7} parent=0 // loop_footer
    %s14 = sadd.s32 1, %s10
  $region7: #{vit_forward.7} parent=0 // loop_footer_branch
    %9 = sbr.rel target = $region3
  $region8: #{vit_forward.7} parent=0 // loop_exit
    _

// kernel: vit_forward.10
$region0: #{vit_forward.10}
  #allocation0 [shape = 'u32[]', space=smem, size = 0x4, offset = 0x4, fixed_abs, tag = 'smem constant byte address 0x4 - core index']
  #allocation1 [shape = 'u32[144,128]{1,0:T(1,128)}', space=vmem, size = 0x12000, scoped, tag = 'internal scratch']
  #allocation2 [shape = 'f32[16,32]{1,0:T(8,128)}', space=vmem, size = 0x2000, scoped, tag = 'scratch operand']
  #allocation3 [shape = 'bf16[16,32]{1,0:T(16,128)(2,1)}', space=vmem, size = 0x1000, scoped, tag = 'scratch operand']
  #allocation4 [shape = 'f32[16,32]{1,0:T(8,128)}', space=vmem, size = 0x2000, scoped, tag = 'scratch operand']
  %s0 = inlined_call_operand.vmem [shape: bf16[2,16,32], index: 0, kind: input, shape index: {}]
  %s1 = inlined_call_operand.vmem [shape: bf16[2,16,32], index: 1, kind: input, shape index: {}]
  %s2 = inlined_call_operand.vmem [shape: bf16[32,32], index: 2, kind: input, shape index: {}]
  %s3 = inlined_call_operand.vmem [shape: f32[1,32], index: 3, kind: input, shape index: {}]
  %s4 = inlined_call_operand.vmem [shape: f32[1,32], index: 4, kind: input, shape index: {}]
  %s5 = inlined_call_operand.vmem [shape: f32[1,32], index: 5, kind: input, shape index: {}]
  %s6 = inlined_call_operand.vmem [shape: bf16[32,128], index: 6, kind: input, shape index: {}]
  %s7 = inlined_call_operand.vmem [shape: f32[1,128], index: 7, kind: input, shape index: {}]
  %s8 = inlined_call_operand.vmem [shape: bf16[128,32], index: 8, kind: input, shape index: {}]
  %s9 = inlined_call_operand.vmem [shape: f32[1,32], index: 9, kind: input, shape index: {}]
  %s10 = inlined_call_operand.vmem [shape: bf16[2,16,32], index: 10, kind: output, shape index: {}]
  %s11 = sld [smem:[#allocation0]]
  $region81: #{vit_forward.10} parent=0
    _
  %s13 = ssub.s32 1, %s11
  %s14 = scalar_select 0, %s13, %s11
  loop: start=0, step=1, limit=4
  $region2: #{vit_forward.10} parent=0 // loop_pre_header
    _
  $region3: #{vit_forward.10} parent=0 // loop_header
    %s16 = sphi 0, %s20
    %p17 = scmp.ge.s32.totalorder %s16, 4
    %s23 = sphi 0, %s42
    %s24 = sphi 0, %s38
    %s25 = sphi 0, %s34
    %s26 = sphi 0, %s23
    %s27 = sphi 0, %s24
    %s28 = sphi 0, %s25
    %s29 = sphi 0, %s26
    %s30 = sphi 0, %s27
    %s31 = sphi 0, %s28
    %s47 = sphi 0, %s49
    %s50 = sphi 0, %s47
    %s51 = sphi 0, %s50
    %s67 = sphi 0, %s51
    %s75 = sphi 0, %s77
    %s78 = sphi 0, %s75
    %s79 = sphi 0, %s78
    %s95 = sphi 0, %s79
    %s99 = sphi 0, %s99
    %s101 = sphi 0, %s99
    %s102 = sphi 0, %s101
    %s116 = sphi 0, %s102
    %s120 = sphi 0, %s120
    %s122 = sphi 0, %s120
    %s123 = sphi 0, %s122
    %s137 = sphi 0, %s123
    %s141 = sphi 0, %s141
    %s143 = sphi 0, %s141
    %s144 = sphi 0, %s143
    %s158 = sphi 0, %s144
    %s162 = sphi 0, %s162
    %s164 = sphi 0, %s162
    %s165 = sphi 0, %s164
    %s179 = sphi 0, %s165
    %s185 = sphi 0, %s187
    %s188 = sphi 0, %s185
    %s189 = sphi 0, %s188
    %s205 = sphi 0, %s189
    %s211 = sphi 0, %s213
    %s214 = sphi 0, %s211
    %s215 = sphi 0, %s214
    %s231 = sphi 0, %s215
    %s237 = sphi 0, %s239
    %s240 = sphi 0, %s237
    %s241 = sphi 0, %s240
    %s257 = sphi 0, %s241
    %s261 = sphi 0, %s261
    %s263 = sphi 0, %s261
    %s264 = sphi 0, %s263
    %s278 = sphi 0, %s264
    %s286 = sphi 0, %s288
    %s289 = sphi 0, %s286
    %s290 = sphi 0, %s289
    %s306 = sphi 0, %s290
  $region4: #{vit_forward.10} parent=0 // loop_header_branch
    %19 = sbr.rel (%p17) target = $region8
  $region5: #{vit_forward.10} parent=0 // loop_body
    %s21 = ssub.s32 %s16, 1
    %s22 = ssub.s32 %s16, 2
    %s32 = sadd.s32 1, %s25
    %p33 = scmp.ge.s32.totalorder %s32, 1
    %s34 = scalar_select %p33, 0, %s32
    %s35 = sadd.s32 1, %s24
    %s36 = scalar_select %p33, %s35, %s24
    %p37 = scmp.ge.s32.totalorder %s36, 1
    %s38 = scalar_select %p37, 0, %s36
    %s39 = sadd.s32 1, %s23
    %s40 = scalar_select %p37, %s39, %s23
    %p41 = scmp.ge.s32.totalorder %s40, 2
    %s42 = scalar_select %p41, 0, %s40
    %s43 = ssub.s32 %s23, %s42
    %s44 = ssub.s32 %s24, %s38
    %s45 = sor.u32 %s43, %s44
    %p46 = scmp.eq.s32.totalorder %s45, 0
    %s48 = sadd.s32 %s47, 1
    %s49 = scalar_select %p46, %s47, %s48
    %p52 = pneg %p46
    %p53 = scmp.eq.s32.totalorder %s16, 1
    %p54 = por %p52, %p53
    %p55 = scmp.ne.s32.totalorder %s47, %s50
    %p56 = scmp.eq.s32.totalorder %s16, 0
    %p57 = por %p55, %p56
    %p58 = scmp.ne.s32.totalorder %s47, %s50
    %p59 = scmp.eq.s32.totalorder %s21, 1
    %p60 = por %p58, %p59
    %p61 = scmp.ne.s32.totalorder %s50, %s51
    %p62 = scmp.eq.s32.totalorder %s21, 0
    %p63 = por %p61, %p62
    %p64 = scmp.ne.s32.totalorder %s50, %s51
    %p65 = scmp.eq.s32.totalorder %s22, 1
    %p66 = por %p64, %p65
    %p68 = scmp.ne.s32.totalorder %s51, %s67
    %p69 = scmp.eq.s32.totalorder %s22, 0
    %p70 = por %p68, %p69
    %s71 = ssub.s32 %s23, %s42
    %s72 = ssub.s32 %s24, %s38
    %s73 = sor.u32 %s71, %s72
    %p74 = scmp.eq.s32.totalorder %s73, 0
    %s76 = sadd.s32 %s75, 1
    %s77 = scalar_select %p74, %s75, %s76
    %p80 = pneg %p74
    %p81 = scmp.eq.s32.totalorder %s16, 1
    %p82 = por %p80, %p81
    %p83 = scmp.ne.s32.totalorder %s75, %s78
    %p84 = scmp.eq.s32.totalorder %s16, 0
    %p85 = por %p83, %p84
    %p86 = scmp.ne.s32.totalorder %s75, %s78
    %p87 = scmp.eq.s32.totalorder %s21, 1
    %p88 = por %p86, %p87
    %p89 = scmp.ne.s32.totalorder %s78, %s79
    %p90 = scmp.eq.s32.totalorder %s21, 0
    %p91 = por %p89, %p90
    %p92 = scmp.ne.s32.totalorder %s78, %s79
    %p93 = scmp.eq.s32.totalorder %s22, 1
    %p94 = por %p92, %p93
    %p96 = scmp.ne.s32.totalorder %s79, %s95
    %p97 = scmp.eq.s32.totalorder %s22, 0
    %p98 = por %p96, %p97
    %s100 = sadd.s32 %s99, 1
    %p103 = scmp.eq.s32.totalorder %s16, 1
    %p104 = scmp.ne.s32.totalorder %s99, %s101
    %p105 = scmp.eq.s32.totalorder %s16, 0
    %p106 = por %p104, %p105
    %p107 = scmp.ne.s32.totalorder %s99, %s101
    %p108 = scmp.eq.s32.totalorder %s21, 1
    %p109 = por %p107, %p108
    %p110 = scmp.ne.s32.totalorder %s101, %s102
    %p111 = scmp.eq.s32.totalorder %s21, 0
    %p112 = por %p110, %p111
    %p113 = scmp.ne.s32.totalorder %s101, %s102
    %p114 = scmp.eq.s32.totalorder %s22, 1
    %p115 = por %p113, %p114
    %p117 = scmp.ne.s32.totalorder %s102, %s116
    %p118 = scmp.eq.s32.totalorder %s22, 0
    %p119 = por %p117, %p118
    %s121 = sadd.s32 %s120, 1
    %p124 = scmp.eq.s32.totalorder %s16, 1
    %p125 = scmp.ne.s32.totalorder %s120, %s122
    %p126 = scmp.eq.s32.totalorder %s16, 0
    %p127 = por %p125, %p126
    %p128 = scmp.ne.s32.totalorder %s120, %s122
    %p129 = scmp.eq.s32.totalorder %s21, 1
    %p130 = por %p128, %p129
    %p131 = scmp.ne.s32.totalorder %s122, %s123
    %p132 = scmp.eq.s32.totalorder %s21, 0
    %p133 = por %p131, %p132
    %p134 = scmp.ne.s32.totalorder %s122, %s123
    %p135 = scmp.eq.s32.totalorder %s22, 1
    %p136 = por %p134, %p135
    %p138 = scmp.ne.s32.totalorder %s123, %s137
    %p139 = scmp.eq.s32.totalorder %s22, 0
    %p140 = por %p138, %p139
    %s142 = sadd.s32 %s141, 1
    %p145 = scmp.eq.s32.totalorder %s16, 1
    %p146 = scmp.ne.s32.totalorder %s141, %s143
    %p147 = scmp.eq.s32.totalorder %s16, 0
    %p148 = por %p146, %p147
    %p149 = scmp.ne.s32.totalorder %s141, %s143
    %p150 = scmp.eq.s32.totalorder %s21, 1
    %p151 = por %p149, %p150
    %p152 = scmp.ne.s32.totalorder %s143, %s144
    %p153 = scmp.eq.s32.totalorder %s21, 0
    %p154 = por %p152, %p153
    %p155 = scmp.ne.s32.totalorder %s143, %s144
    %p156 = scmp.eq.s32.totalorder %s22, 1
    %p157 = por %p155, %p156
    %p159 = scmp.ne.s32.totalorder %s144, %s158
    %p160 = scmp.eq.s32.totalorder %s22, 0
    %p161 = por %p159, %p160
    %s163 = sadd.s32 %s162, 1
    %p166 = scmp.eq.s32.totalorder %s16, 1
    %p167 = scmp.ne.s32.totalorder %s162, %s164
    %p168 = scmp.eq.s32.totalorder %s16, 0
    %p169 = por %p167, %p168
    %p170 = scmp.ne.s32.totalorder %s162, %s164
    %p171 = scmp.eq.s32.totalorder %s21, 1
    %p172 = por %p170, %p171
    %p173 = scmp.ne.s32.totalorder %s164, %s165
    %p174 = scmp.eq.s32.totalorder %s21, 0
    %p175 = por %p173, %p174
    %p176 = scmp.ne.s32.totalorder %s164, %s165
    %p177 = scmp.eq.s32.totalorder %s22, 1
    %p178 = por %p176, %p177
    %p180 = scmp.ne.s32.totalorder %s165, %s179
    %p181 = scmp.eq.s32.totalorder %s22, 0
    %p182 = por %p180, %p181
    %s183 = ssub.s32 %s25, %s34
    %p184 = scmp.eq.s32.totalorder %s183, 0
    %s186 = sadd.s32 %s185, 1
    %s187 = scalar_select %p184, %s185, %s186
    %p190 = pneg %p184
    %p191 = scmp.eq.s32.totalorder %s16, 1
    %p192 = por %p190, %p191
    %p193 = scmp.ne.s32.totalorder %s185, %s188
    %p194 = scmp.eq.s32.totalorder %s16, 0
    %p195 = por %p193, %p194
    %p196 = scmp.ne.s32.totalorder %s185, %s188
    %p197 = scmp.eq.s32.totalorder %s21, 1
    %p198 = por %p196, %p197
    %p199 = scmp.ne.s32.totalorder %s188, %s189
    %p200 = scmp.eq.s32.totalorder %s21, 0
    %p201 = por %p199, %p200
    %p202 = scmp.ne.s32.totalorder %s188, %s189
    %p203 = scmp.eq.s32.totalorder %s22, 1
    %p204 = por %p202, %p203
    %p206 = scmp.ne.s32.totalorder %s189, %s205
    %p207 = scmp.eq.s32.totalorder %s22, 0
    %p208 = por %p206, %p207
    %s209 = ssub.s32 %s25, %s34
    %p210 = scmp.eq.s32.totalorder %s209, 0
    %s212 = sadd.s32 %s211, 1
    %s213 = scalar_select %p210, %s211, %s212
    %p216 = pneg %p210
    %p217 = scmp.eq.s32.totalorder %s16, 1
    %p218 = por %p216, %p217
    %p219 = scmp.ne.s32.totalorder %s211, %s214
    %p220 = scmp.eq.s32.totalorder %s16, 0
    %p221 = por %p219, %p220
    %p222 = scmp.ne.s32.totalorder %s211, %s214
    %p223 = scmp.eq.s32.totalorder %s21, 1
    %p224 = por %p222, %p223
    %p225 = scmp.ne.s32.totalorder %s214, %s215
    %p226 = scmp.eq.s32.totalorder %s21, 0
    %p227 = por %p225, %p226
    %p228 = scmp.ne.s32.totalorder %s214, %s215
    %p229 = scmp.eq.s32.totalorder %s22, 1
    %p230 = por %p228, %p229
    %p232 = scmp.ne.s32.totalorder %s215, %s231
    %p233 = scmp.eq.s32.totalorder %s22, 0
    %p234 = por %p232, %p233
    %s235 = ssub.s32 %s25, %s34
    %p236 = scmp.eq.s32.totalorder %s235, 0
    %s238 = sadd.s32 %s237, 1
    %s239 = scalar_select %p236, %s237, %s238
    %p242 = pneg %p236
    %p243 = scmp.eq.s32.totalorder %s16, 1
    %p244 = por %p242, %p243
    %p245 = scmp.ne.s32.totalorder %s237, %s240
    %p246 = scmp.eq.s32.totalorder %s16, 0
    %p247 = por %p245, %p246
    %p248 = scmp.ne.s32.totalorder %s237, %s240
    %p249 = scmp.eq.s32.totalorder %s21, 1
    %p250 = por %p248, %p249
    %p251 = scmp.ne.s32.totalorder %s240, %s241
    %p252 = scmp.eq.s32.totalorder %s21, 0
    %p253 = por %p251, %p252
    %p254 = scmp.ne.s32.totalorder %s240, %s241
    %p255 = scmp.eq.s32.totalorder %s22, 1
    %p256 = por %p254, %p255
    %p258 = scmp.ne.s32.totalorder %s241, %s257
    %p259 = scmp.eq.s32.totalorder %s22, 0
    %p260 = por %p258, %p259
    %s262 = sadd.s32 %s261, 1
    %p265 = scmp.eq.s32.totalorder %s16, 1
    %p266 = scmp.ne.s32.totalorder %s261, %s263
    %p267 = scmp.eq.s32.totalorder %s16, 0
    %p268 = por %p266, %p267
    %p269 = scmp.ne.s32.totalorder %s261, %s263
    %p270 = scmp.eq.s32.totalorder %s21, 1
    %p271 = por %p269, %p270
    %p272 = scmp.ne.s32.totalorder %s263, %s264
    %p273 = scmp.eq.s32.totalorder %s21, 0
    %p274 = por %p272, %p273
    %p275 = scmp.ne.s32.totalorder %s263, %s264
    %p276 = scmp.eq.s32.totalorder %s22, 1
    %p277 = por %p275, %p276
    %p279 = scmp.ne.s32.totalorder %s264, %s278
    %p280 = scmp.eq.s32.totalorder %s22, 0
    %p281 = por %p279, %p280
    %s282 = ssub.s32 %s23, %s42
    %s283 = ssub.s32 %s24, %s38
    %s284 = sor.u32 %s282, %s283
    %p285 = scmp.eq.s32.totalorder %s284, 0
    %s287 = sadd.s32 %s286, 1
    %s288 = scalar_select %p285, %s286, %s287
    %p291 = pneg %p285
    %p292 = scmp.eq.s32.totalorder %s16, 1
    %p293 = por %p291, %p292
    %p294 = scmp.ne.s32.totalorder %s286, %s289
    %p295 = scmp.eq.s32.totalorder %s16, 0
    %p296 = por %p294, %p295
    %p297 = scmp.ne.s32.totalorder %s286, %s289
    %p298 = scmp.eq.s32.totalorder %s21, 1
    %p299 = por %p297, %p298
    %p300 = scmp.ne.s32.totalorder %s289, %s290
    %p301 = scmp.eq.s32.totalorder %s21, 0
    %p302 = por %p300, %p301
    %p303 = scmp.ne.s32.totalorder %s289, %s290
    %p304 = scmp.eq.s32.totalorder %s22, 1
    %p305 = por %p303, %p304
    %p307 = scmp.ne.s32.totalorder %s290, %s306
    %p308 = scmp.eq.s32.totalorder %s22, 0
    %p309 = por %p307, %p308
    %p310 = scmp.le.s32.totalorder 1, %s16
    %p311 = scmp.lt.s32.totalorder %s16, 3
    %p312 = pnand %p310, %p311
    %p313 = pneg %p312
    // Predicated region
    $region9: #{vit_forward.10} parent=5 // pred_check
      _
    $region10: #{vit_forward.10} parent=5 // pred_check_branch
      %315 = sbr.rel (%p312) target = $region12
    $region11: #{vit_forward.10} parent=5 // pred_region
      %s316 = ssub.s32 %s16, 1
      // Predicated region
      $region13: #{vit_forward.10} parent=11 // pred_check
        %p317 = pneg %p112
      $region14: #{vit_forward.10} parent=11 // pred_check_branch
        %319 = sbr.rel (%p317) target = $region16
      $region15: #{vit_forward.10} parent=11 // pred_region
        _
      $region16: #{vit_forward.10} parent=11 // pred_fallthru
        _
      // Predicated region
      $region17: #{vit_forward.10} parent=11 // pred_check
        %p320 = pneg %p133
      $region18: #{vit_forward.10} parent=11 // pred_check_branch
        %322 = sbr.rel (%p320) target = $region20
      $region19: #{vit_forward.10} parent=11 // pred_region
        _
      $region20: #{vit_forward.10} parent=11 // pred_fallthru
        _
      // Predicated region
      $region21: #{vit_forward.10} parent=11 // pred_check
        %p323 = pneg %p154
      $region22: #{vit_forward.10} parent=11 // pred_check_branch
        %325 = sbr.rel (%p323) target = $region24
      $region23: #{vit_forward.10} parent=11 // pred_region
        _
      $region24: #{vit_forward.10} parent=11 // pred_fallthru
        _
      // Predicated region
      $region25: #{vit_forward.10} parent=11 // pred_check
        %p326 = pneg %p175
      $region26: #{vit_forward.10} parent=11 // pred_check_branch
        %328 = sbr.rel (%p326) target = $region28
      $region27: #{vit_forward.10} parent=11 // pred_region
        _
      $region28: #{vit_forward.10} parent=11 // pred_fallthru
        _
      // Predicated region
      $region29: #{vit_forward.10} parent=11 // pred_check
        %p329 = pneg %p201
      $region30: #{vit_forward.10} parent=11 // pred_check_branch
        %331 = sbr.rel (%p329) target = $region32
      $region31: #{vit_forward.10} parent=11 // pred_region
        %p332 = scmp.lt.s32.totalorder %s28, 0
        %s333 = scalar_select %p332, %s28, 0
        %s334 = smul.addr %s333, 4
        %s335 = scalar_lea.vmem %s6, %s334
      $region32: #{vit_forward.10} parent=11 // pred_fallthru
        _
      // Predicated region
      $region33: #{vit_forward.10} parent=11 // pred_check
        %p336 = pneg %p227
      $region34: #{vit_forward.10} parent=11 // pred_check_branch
        %338 = sbr.rel (%p336) target = $region36
      $region35: #{vit_forward.10} parent=11 // pred_region
        %p339 = scmp.lt.s32.totalorder %s28, 0
        %s340 = scalar_select %p339, %s28, 0
        %s341 = scalar_lea.vmem %s7, %s340
      $region36: #{vit_forward.10} parent=11 // pred_fallthru
        _
      // Predicated region
      $region37: #{vit_forward.10} parent=11 // pred_check
        %p342 = pneg %p253
      $region38: #{vit_forward.10} parent=11 // pred_check_branch
        %344 = sbr.rel (%p342) target = $region40
      $region39: #{vit_forward.10} parent=11 // pred_region
        %s345 = smul.u32 16, %s28
        %p346 = scmp.lt.s32.totalorder %s345, 15
        %s347 = scalar_select %p346, %s345, 15
        %s348 = smul.addr %s347, 4
        %s349 = scalar_lea.vmem %s8, %s348
        %s350 = smul.u32 16, %s28
      $region40: #{vit_forward.10} parent=11 // pred_fallthru
        _
      // Predicated region
      $region41: #{vit_forward.10} parent=11 // pred_check
        %p351 = pneg %p274
      $region42: #{vit_forward.10} parent=11 // pred_check_branch
        %353 = sbr.rel (%p351) target = $region44
      $region43: #{vit_forward.10} parent=11 // pred_region
        _
      $region44: #{vit_forward.10} parent=11 // pred_fallthru
        _
    $region12: #{vit_forward.10} parent=5 // pred_fallthru
      _
    %p354 = scmp.lt.s32.totalorder %s16, 2
    // Predicated region
    $region45: #{vit_forward.10} parent=5 // pred_check
      %p355 = pneg %p354
    $region46: #{vit_forward.10} parent=5 // pred_check_branch
      %357 = sbr.rel (%p355) target = $region48
    $region47: #{vit_forward.10} parent=5 // pred_region
      // Predicated region
      $region49: #{vit_forward.10} parent=47 // pred_check
        %p358 = pneg %p57
      $region50: #{vit_forward.10} parent=47 // pred_check_branch
        %360 = sbr.rel (%p358) target = $region52
      $region51: #{vit_forward.10} parent=47 // pred_region
        %s361 = smul.u32 2, %s24
        %p362 = scmp.lt.s32.totalorder %s23, 1
        %s363 = scalar_select %p362, %s23, 1
        %p364 = scmp.lt.s32.totalorder %s361, 1
        %s365 = scalar_select %p364, %s361, 1
        %s366 = smul.addr %s363, 2
        %s367 = sadd.s32 %s365, %s366
        %s368 = smul.addr %s367, 4
        %s369 = scalar_lea.vmem %s0, %s368
        %s370 = smul.u32 2, %s24
      $region52: #{vit_forward.10} parent=47 // pred_fallthru
        _
      // Predicated region
      $region53: #{vit_forward.10} parent=47 // pred_check
        %p371 = pneg %p85
      $region54: #{vit_forward.10} parent=47 // pred_check_branch
        %373 = sbr.rel (%p371) target = $region56
      $region55: #{vit_forward.10} parent=47 // pred_region
        %s374 = smul.u32 2, %s24
        %p375 = scmp.lt.s32.totalorder %s23, 1
        %s376 = scalar_select %p375, %s23, 1
        %p377 = scmp.lt.s32.totalorder %s374, 1
        %s378 = scalar_select %p377, %s374, 1
        %s379 = smul.addr %s376, 2
        %s380 = sadd.s32 %s378, %s379
        %s381 = smul.addr %s380, 4
        %s382 = scalar_lea.vmem %s1, %s381
        %s383 = smul.u32 2, %s24
      $region56: #{vit_forward.10} parent=47 // pred_fallthru
        _
    $region48: #{vit_forward.10} parent=5 // pred_fallthru
      _
    %p384 = scmp.le.s32.totalorder 1, %s16
    %p385 = scmp.lt.s32.totalorder %s16, 3
    %p386 = pnand %p384, %p385
    %p387 = pneg %p386
    // Predicated region
    $region57: #{vit_forward.10} parent=5 // pred_check
      _
    $region58: #{vit_forward.10} parent=5 // pred_check_branch
      %389 = sbr.rel (%p386) target = $region60
    $region59: #{vit_forward.10} parent=5 // pred_region
      %s390 = ssub.s32 %s16, 1
      %s391 = smul.u32 2, %s27
      %p392 = scmp.lt.s32.totalorder %s26, 1
      %s393 = scalar_select %p392, %s26, 1
      %p394 = scmp.lt.s32.totalorder %s391, 1
      %s395 = scalar_select %p394, %s391, 1
      %s396 = smul.addr %s393, 2
      %s397 = sadd.s32 %s395, %s396
      %s398 = smul.addr %s397, 4
      %s399 = scalar_lea.vmem %s0, %s398
      %p400 = pneg %p63
      %p401 = pneg %p60
      %s402 = smul.u32 2, %s27
      %p403 = scmp.lt.s32.totalorder %s26, 1
      %s404 = scalar_select %p403, %s26, 1
      %p405 = scmp.lt.s32.totalorder %s402, 1
      %s406 = scalar_select %p405, %s402, 1
      %s407 = smul.addr %s404, 2
      %s408 = sadd.s32 %s406, %s407
      %s409 = smul.addr %s408, 4
      %s410 = scalar_lea.vmem %s1, %s409
      %p411 = pneg %p91
      %p412 = pneg %p88
      %p413 = pneg %p112
      %p414 = pneg %p109
      %p415 = pneg %p133
      %p416 = pneg %p130
      %p417 = pneg %p154
      %p418 = pneg %p151
      %p419 = pneg %p175
      %p420 = pneg %p172
      %p421 = scmp.lt.s32.totalorder %s28, 0
      %s422 = scalar_select %p421, %s28, 0
      %s423 = smul.addr %s422, 4
      %s424 = scalar_lea.vmem %s6, %s423
      %p425 = pneg %p201
      %p426 = pneg %p198
      %p427 = scmp.lt.s32.totalorder %s28, 0
      %s428 = scalar_select %p427, %s28, 0
      %s429 = scalar_lea.vmem %s7, %s428
      %p430 = pneg %p227
      %p431 = pneg %p224
      %s432 = smul.u32 16, %s28
      %p433 = scmp.lt.s32.totalorder %s432, 15
      %s434 = scalar_select %p433, %s432, 15
      %s435 = smul.addr %s434, 4
      %s436 = scalar_lea.vmem %s8, %s435
      %p437 = pneg %p253
      %p438 = pneg %p250
      %p439 = pneg %p274
      %p440 = pneg %p271
      %p441 = pneg %p302
      %p442 = pneg %p299
      %s443 = smul.u32 2, %s27
      %p444 = scmp.lt.s32.totalorder %s26, 1
      %s445 = scalar_select %p444, %s26, 1
      %p446 = scmp.lt.s32.totalorder %s443, 1
      %s447 = scalar_select %p446, %s443, 1
      %s448 = smul.addr %s445, 2
      %s449 = sadd.s32 %s447, %s448
      %s450 = smul.addr %s449, 4
      %s451 = scalar_lea.vmem %s10, %s450
      %s452 = smul.u32 2, %s27
      %p453 = scmp.lt.s32.totalorder %s26, 1
      %s454 = scalar_select %p453, %s26, 1
      %p455 = scmp.lt.s32.totalorder %s452, 1
      %s456 = scalar_select %p455, %s452, 1
      %s457 = smul.addr %s454, 2
      %s458 = sadd.s32 %s456, %s457
      %s459 = smul.addr %s458, 4
      %s460 = scalar_lea.vmem %s0, %s459
      %s461 = smul.u32 2, %s27
      %s462 = smul.u32 2, %s27
      %p463 = scmp.lt.s32.totalorder %s26, 1
      %s464 = scalar_select %p463, %s26, 1
      %p465 = scmp.lt.s32.totalorder %s462, 1
      %s466 = scalar_select %p465, %s462, 1
      %s467 = smul.addr %s464, 2
      %s468 = sadd.s32 %s466, %s467
      %s469 = smul.addr %s468, 4
      %s470 = scalar_lea.vmem %s1, %s469
      %s471 = smul.u32 2, %s27
      %p472 = scmp.lt.s32.totalorder %s28, 0
      %s473 = scalar_select %p472, %s28, 0
      %s474 = smul.addr %s473, 4
      %s475 = scalar_lea.vmem %s6, %s474
      %p476 = scmp.lt.s32.totalorder %s28, 0
      %s477 = scalar_select %p476, %s28, 0
      %s478 = scalar_lea.vmem %s7, %s477
      %s479 = smul.u32 16, %s28
      %p480 = scmp.lt.s32.totalorder %s479, 15
      %s481 = scalar_select %p480, %s479, 15
      %s482 = smul.addr %s481, 4
      %s483 = scalar_lea.vmem %s8, %s482
      %s484 = smul.u32 16, %s28
      %s485 = smul.u32 2, %s27
      %p486 = scmp.lt.s32.totalorder %s26, 1
      %s487 = scalar_select %p486, %s26, 1
      %p488 = scmp.lt.s32.totalorder %s485, 1
      %s489 = scalar_select %p488, %s485, 1
      %s490 = smul.addr %s487, 2
      %s491 = sadd.s32 %s489, %s490
      %s492 = smul.addr %s491, 4
      %s493 = scalar_lea.vmem %s10, %s492
      %s494 = smul.u32 2, %s27
      %p500 = scmp.eq.s32.totalorder %s28, 0
      // Predicated region
      $region61: #{vit_forward.10} parent=59 // pred_check
        %p501 = pneg %p500
      $region62: #{vit_forward.10} parent=59 // pred_check_branch
        %503 = sbr.rel (%p501) target = $region64
      $region63: #{vit_forward.10} parent=59 // pred_region
        %v504 = vld [vmem:[%s460] sm:$0xf]
        %v505 = vld [vmem:[%s460 + $0x4] sm:$0xf]
        %v506 = vld [vmem:[%s2] sm:$0xf]
        %v507 = vld [vmem:[%s2 + $0x4] sm:$0xf]
        %v508 = vld [vmem:[%s2 + $0x8] sm:$0xf]
        %v509 = vld [vmem:[%s2 + $0xc] sm:$0xf]
        %v510 = vld [vmem:[%s3] sm:$0x1]
        %v512 = vlaneseq
        %v513 = vshrl.u32 %v512, 7
        %v514 = vsub.s32 0, %v513
        %v515 = vrot.slane %v510, %v514
        %v519 = vunpack.c.l.b16 %v504
        %v520 = vunpack.c.l.b16 %v505
        %v521 = vpack.c.b16 %v520, %v519
        %v526 = vunpack.c.l.b16 %v506
        %v527 = vunpack.c.l.b16 %v507
        %v528 = vunpack.c.l.b16 %v508
        %v529 = vunpack.c.l.b16 %v509
        %v530 = vpack.c.b16 %v527, %v526
        %v531 = vpack.c.b16 %v529, %v528
        %vm534 = vcmask 261120
        %v536 = vsel %vm534, %v521, 0
        %538 = vmatprep.subr.bf16.mxu0 0
        %539 = vmatpush1.bf16.msra.mxu0 %v530
        %540 = vmatprep.subr.bf16.mxu0 0
        %541 = vmatpush1.bf16.msra.mxu0 %v531
        %542 = vmatprep.subr.bf16.mxu0 0
        %543 = vmatpush1.bf16.msra.mxu0 0
        %544 = vmatprep.subr.bf16.mxu0 0
        %545 = vmatpush1.bf16.msra.mxu0 0
        %546 = vmatprep.subr.bf16.mxu0 0
        %547 = vmatpush1.bf16.msra.mxu0 0
        %548 = vmatprep.subr.bf16.mxu0 0
        %549 = vmatpush1.bf16.msra.mxu0 0
        %550 = vmatprep.subr.bf16.mxu0 0
        %551 = vmatpush1.bf16.msra.mxu0 0
        %552 = vmatprep.subr.bf16.mxu0 0
        %553 = vmatpush1.bf16.msra.mxu0 0
        %554 = vmatprep.subr.bf16.mxu0 0
        %555 = vmatpush1.bf16.msra.mxu0 0
        %556 = vmatprep.subr.bf16.mxu0 0
        %557 = vmatpush1.bf16.msra.mxu0 0
        %558 = vmatprep.subr.bf16.mxu0 0
        %559 = vmatpush1.bf16.msra.mxu0 0
        %560 = vmatprep.subr.bf16.mxu0 0
        %561 = vmatpush1.bf16.msra.mxu0 0
        %562 = vmatprep.subr.bf16.mxu0 0
        %563 = vmatpush1.bf16.msra.mxu0 0
        %564 = vmatprep.subr.bf16.mxu0 0
        %565 = vmatpush1.bf16.msra.mxu0 0
        %566 = vmatprep.subr.bf16.mxu0 0
        %567 = vmatpush1.bf16.msra.mxu0 0
        %568 = vmatprep.subr.bf16.mxu0 0
        %569 = vmatpush1.bf16.msra.mxu0 0
        %570 = vmatprep.mubr.bf16.mxu0 0
        %571 = vmatmul.mubr.bf16.gmra.mrb[0].mxu0 %v536
        %v572 = vpop.f32.mrb[0].mxu0
        %v573 = vadd.f32 %v515, %v572
        %v574 = vpop.f32.mrb[0].mxu0
        %v575 = vpop.f32.mrb[0].mxu0
        %v576 = vadd.f32 %v515, %v575
        %v577 = vpop.f32.mrb[0].mxu0
        %578 = vdwg.mxu0
        %v579 = vld [vmem:[%s470] sm:$0xf]
        %v580 = vld [vmem:[%s470 + $0x4] sm:$0xf]
        %v581 = vunpack.c.l.bf16 %v579
        %v582 = vunpack.c.l.bf16 %v580
        %v583 = vadd.f32 %v573, %v581
        %v584 = vadd.f32 %v576, %v582
        %585 = vst.msk [vmem:[#allocation2] sm:$0xff] %vm534, %v583
        %586 = vst.msk [vmem:[#allocation2 + $0x8] sm:$0xff] %vm534, %v584
        %v587 = vld [vmem:[%s4] sm:$0x1]
        %v588 = vld [vmem:[%s5] sm:$0x1]
        %v589 = vsel %vm534, %v583, 0.0
        %590 = vadd.xlane.f32.xlu0 %v589
        %v591 = vpop.xlane.xlu0 %590
        %v592 = vsel %vm534, %v584, 0.0
        %593 = vadd.xlane.f32.xlu0 %v592
        %v594 = vpop.xlane.xlu0 %593
        %v595 = vrcp.pop 32.0
        %v596 = vmul.f32 %v591, %v595
        %v597 = vmul.f32 %v594, %v595
        %v598 = vsub.f32 %v583, %v596
        %v599 = vsub.f32 %v584, %v597
        %v600 = vmul.f32 %v598, %v598
        %v601 = vmul.f32 %v599, %v599
        %v602 = vsel %vm534, %v600, 0.0
        %603 = vadd.xlane.f32.xlu0 %v602
        %v604 = vpop.xlane.xlu0 %603
        %v605 = vsel %vm534, %v601, 0.0
        %606 = vadd.xlane.f32.xlu0 %v605
        %v607 = vpop.xlane.xlu0 %606
        %v608 = vmul.f32 %v604, %v595
        %v609 = vmul.f32 %v607, %v595
        %v610 = vadd.f32 %v608, 1e-05
        %v611 = vadd.f32 %v609, 1e-05
        %v612 = vrsqrt.pop %v610
        %v613 = vrsqrt.pop %v611
        %v614 = vmul.f32 %v598, %v612
        %v615 = vmul.f32 %v599, %v613
        %v617 = vlaneseq
        %v618 = vshrl.u32 %v617, 7
        %v619 = vsub.s32 0, %v618
        %v620 = vrot.slane %v587, %v619
        %v622 = vmul.f32 %v614, %v620
        %v623 = vmul.f32 %v615, %v620
        %v625 = vlaneseq
        %v626 = vshrl.u32 %v625, 7
        %v627 = vsub.s32 0, %v626
        %v628 = vrot.slane %v588, %v627
        %v630 = vadd.f32 %v622, %v628
        %v631 = vadd.f32 %v623, %v628
        %v632 = vpack.c.bf16 %v631, %v630
        %633 = vst.msk [vmem:[#allocation3] sm:$0xff] %vm534, %v632
        %634 = vst.msk [vmem:[#allocation4] sm:$0xff] %vm534, 0.0
        %635 = vst.msk [vmem:[#allocation4 + $0x8] sm:$0xff] %vm534, 0.0
      $region64: #{vit_forward.10} parent=59 // pred_fallthru
        _
      %v636 = vld [vmem:[#allocation3] sm:$0xff]
      %v637 = vld [vmem:[%s475] sm:$0xf]
      %v638 = vld [vmem:[%s475 + $0x4] sm:$0xf]
      %v639 = vld [vmem:[%s475 + $0x8] sm:$0xf]
      %v640 = vld [vmem:[%s475 + $0xc] sm:$0xf]
      %v641 = vld [vmem:[%s478] sm:$0x1]
      %v643 = vlaneseq
      %v644 = vshrl.u32 %v643, 7
      %v645 = vsub.s32 0, %v644
      %v646 = vrot.slane %v641, %v645
      %v652 = vunpack.c.l.b16 %v637
      %v653 = vunpack.c.l.b16 %v638
      %v654 = vunpack.c.l.b16 %v639
      %v655 = vunpack.c.l.b16 %v640
      %v656 = vpack.c.b16 %v653, %v652
      %v657 = vpack.c.b16 %v655, %v654
      %vm660 = vcmask 261120
      %v662 = vsel %vm660, %v636, 0
      %664 = vmatprep.subr.bf16.mxu0 0
      %665 = vmatpush1.bf16.msra.mxu0 %v656
      %666 = vmatprep.subr.bf16.mxu0 0
      %667 = vmatpush1.bf16.msra.mxu0 %v657
      %668 = vmatprep.subr.bf16.mxu0 0
      %669 = vmatpush1.bf16.msra.mxu0 0
      %670 = vmatprep.subr.bf16.mxu0 0
      %671 = vmatpush1.bf16.msra.mxu0 0
      %672 = vmatprep.subr.bf16.mxu0 0
      %673 = vmatpush1.bf16.msra.mxu0 0
      %674 = vmatprep.subr.bf16.mxu0 0
      %675 = vmatpush1.bf16.msra.mxu0 0
      %676 = vmatprep.subr.bf16.mxu0 0
      %677 = vmatpush1.bf16.msra.mxu0 0
      %678 = vmatprep.subr.bf16.mxu0 0
      %679 = vmatpush1.bf16.msra.mxu0 0
      %680 = vmatprep.subr.bf16.mxu0 0
      %681 = vmatpush1.bf16.msra.mxu0 0
      %682 = vmatprep.subr.bf16.mxu0 0
      %683 = vmatpush1.bf16.msra.mxu0 0
      %684 = vmatprep.subr.bf16.mxu0 0
      %685 = vmatpush1.bf16.msra.mxu0 0
      %686 = vmatprep.subr.bf16.mxu0 0
      %687 = vmatpush1.bf16.msra.mxu0 0
      %688 = vmatprep.subr.bf16.mxu0 0
      %689 = vmatpush1.bf16.msra.mxu0 0
      %690 = vmatprep.subr.bf16.mxu0 0
      %691 = vmatpush1.bf16.msra.mxu0 0
      %692 = vmatprep.subr.bf16.mxu0 0
      %693 = vmatpush1.bf16.msra.mxu0 0
      %694 = vmatprep.subr.bf16.mxu0 0
      %695 = vmatpush1.bf16.msra.mxu0 0
      %696 = vmatprep.mubr.bf16.mxu0 0
      %697 = vmatmul.mubr.bf16.gmra.mrb[0].mxu0 %v662
      %v698 = vpop.f32.mrb[0].mxu0
      %v699 = vadd.f32 %v646, %v698
      %v700 = vpop.f32.mrb[0].mxu0
      %v701 = vpop.f32.mrb[0].mxu0
      %v702 = vadd.f32 %v646, %v701
      %v703 = vpop.f32.mrb[0].mxu0
      %704 = vdwg.mxu0
      %v705 = vpack.c.bf16 %v702, %v699
      %v706 = vmul.bf16 %v705, 1056980736
      %v707 = vmul.bf16 %v705, 1027030327
      %v708 = vmul.bf16 %v707, %v705
      %v709 = vmul.bf16 %v708, %v705
      %v710 = vadd.bf16 %v705, %v709
      %v711 = vmul.bf16 %v710, 1061961548
      %v712 = vtanh.bf16.pop %v711
      %v713 = vadd.bf16 %v712, 1065369472
      %v714 = vmul.bf16 %v706, %v713
      %v715 = vld [vmem:[#allocation4] sm:$0xff]
      %v716 = vld [vmem:[#allocation4 + $0x8] sm:$0xff]
      %v717 = vld [vmem:[%s483] sm:$0xf]
      %v718 = vld [vmem:[%s483 + $0x4] sm:$0xf]
      %v719 = vld [vmem:[%s483 + $0x8] sm:$0xf]
      %v720 = vld [vmem:[%s483 + $0xc] sm:$0xf]
      %v721 = vld [vmem:[%s483 + $0x10] sm:$0xf]
      %v722 = vld [vmem:[%s483 + $0x14] sm:$0xf]
      %v723 = vld [vmem:[%s483 + $0x18] sm:$0xf]
      %v724 = vld [vmem:[%s483 + $0x1c] sm:$0xf]
      %v725 = vld [vmem:[%s483 + $0x20] sm:$0xf]
      %v726 = vld [vmem:[%s483 + $0x24] sm:$0xf]
      %v727 = vld [vmem:[%s483 + $0x28] sm:$0xf]
      %v728 = vld [vmem:[%s483 + $0x2c] sm:$0xf]
      %v729 = vld [vmem:[%s483 + $0x30] sm:$0xf]
      %v730 = vld [vmem:[%s483 + $0x34] sm:$0xf]
      %v731 = vld [vmem:[%s483 + $0x38] sm:$0xf]
      %v732 = vld [vmem:[%s483 + $0x3c] sm:$0xf]
      %v749 = vunpack.c.l.b16 %v717
      %v750 = vunpack.c.l.b16 %v718
      %v751 = vunpack.c.l.b16 %v719
      %v752 = vunpack.c.l.b16 %v720
      %v753 = vunpack.c.l.b16 %v721
      %v754 = vunpack.c.l.b16 %v722
      %v755 = vunpack.c.l.b16 %v723
      %v756 = vunpack.c.l.b16 %v724
      %v757 = vunpack.c.l.b16 %v725
      %v758 = vunpack.c.l.b16 %v726
      %v759 = vunpack.c.l.b16 %v727
      %v760 = vunpack.c.l.b16 %v728
      %v761 = vunpack.c.l.b16 %v729
      %v762 = vunpack.c.l.b16 %v730
      %v763 = vunpack.c.l.b16 %v731
      %v764 = vunpack.c.l.b16 %v732
      %v765 = vpack.c.b16 %v750, %v749
      %v766 = vpack.c.b16 %v752, %v751
      %v767 = vpack.c.b16 %v754, %v753
      %v768 = vpack.c.b16 %v756, %v755
      %v769 = vpack.c.b16 %v758, %v757
      %v770 = vpack.c.b16 %v760, %v759
      %v771 = vpack.c.b16 %v762, %v761
      %v772 = vpack.c.b16 %v764, %v763
      %781 = vmatprep.subr.bf16.mxu0 0
      %782 = vmatpush1.bf16.msra.mxu0 %v765
      %783 = vmatprep.subr.bf16.mxu0 0
      %784 = vmatpush1.bf16.msra.mxu0 %v766
      %785 = vmatprep.subr.bf16.mxu0 0
      %786 = vmatpush1.bf16.msra.mxu0 %v767
      %787 = vmatprep.subr.bf16.mxu0 0
      %788 = vmatpush1.bf16.msra.mxu0 %v768
      %789 = vmatprep.subr.bf16.mxu0 0
      %790 = vmatpush1.bf16.msra.mxu0 %v769
      %791 = vmatprep.subr.bf16.mxu0 0
      %792 = vmatpush1.bf16.msra.mxu0 %v770
      %793 = vmatprep.subr.bf16.mxu0 0
      %794 = vmatpush1.bf16.msra.mxu0 %v771
      %795 = vmatprep.subr.bf16.mxu0 0
      %796 = vmatpush1.bf16.msra.mxu0 %v772
      %797 = vmatprep.subr.bf16.mxu0 0
      %798 = vmatpush1.bf16.msra.mxu0 0
      %799 = vmatprep.subr.bf16.mxu0 0
      %800 = vmatpush1.bf16.msra.mxu0 0
      %801 = vmatprep.subr.bf16.mxu0 0
      %802 = vmatpush1.bf16.msra.mxu0 0
      %803 = vmatprep.subr.bf16.mxu0 0
      %804 = vmatpush1.bf16.msra.mxu0 0
      %805 = vmatprep.subr.bf16.mxu0 0
      %806 = vmatpush1.bf16.msra.mxu0 0
      %807 = vmatprep.subr.bf16.mxu0 0
      %808 = vmatpush1.bf16.msra.mxu0 0
      %809 = vmatprep.subr.bf16.mxu0 0
      %810 = vmatpush1.bf16.msra.mxu0 0
      %811 = vmatprep.subr.bf16.mxu0 0
      %812 = vmatpush1.bf16.msra.mxu0 0
      %813 = vmatprep.mubr.bf16.mxu0 0
      %814 = vmatmul.mubr.bf16.gmra.mrb[0].mxu0 %v714
      %v815 = vpop.f32.mrb[0].mxu0
      %v816 = vadd.f32 0.0, %v815
      %v817 = vpop.f32.mrb[0].mxu0
      %v818 = vpop.f32.mrb[0].mxu0
      %v819 = vadd.f32 0.0, %v818
      %v820 = vpop.f32.mrb[0].mxu0
      %821 = vdwg.mxu0
      %v822 = vadd.f32 %v715, %v816
      %v823 = vadd.f32 %v716, %v819
      %824 = vst.msk [vmem:[#allocation4] sm:$0xff] %vm660, %v822
      %825 = vst.msk [vmem:[#allocation4 + $0x8] sm:$0xff] %vm660, %v823
      // Predicated region
      $region65: #{vit_forward.10} parent=59 // pred_check
        %p826 = pneg %p500
      $region66: #{vit_forward.10} parent=59 // pred_check_branch
        %828 = sbr.rel (%p826) target = $region68
      $region67: #{vit_forward.10} parent=59 // pred_region
        %v829 = vld [vmem:[#allocation2] sm:$0xff]
        %v830 = vld [vmem:[#allocation2 + $0x8] sm:$0xff]
        %v831 = vld [vmem:[#allocation4] sm:$0xff]
        %v832 = vld [vmem:[#allocation4 + $0x8] sm:$0xff]
        %v833 = vadd.f32 %v829, %v831
        %v834 = vadd.f32 %v830, %v832
        %v835 = vld [vmem:[%s9] sm:$0x1]
        %v837 = vlaneseq
        %v838 = vshrl.u32 %v837, 7
        %v839 = vsub.s32 0, %v838
        %v840 = vrot.slane %v835, %v839
        %v842 = vadd.f32 %v833, %v840
        %v843 = vadd.f32 %v834, %v840
        %v844 = vpack.c.bf16 %v843, %v842
        %v846 = vunpack.c.l.b16 %v844
        %v847 = vunpack.c.h.b16 %v844
        %v848 = vpack.c.b16 %v846, %v846
        %v849 = vpack.c.b16 %v847, %v847
        %vm852 = vcmask 257024
        %853 = vst.msk [vmem:[%s493] sm:$0xf] %vm852, %v848
        %854 = vst.msk [vmem:[%s493 + $0x4] sm:$0xf] %vm852, %v849
      $region68: #{vit_forward.10} parent=59 // pred_fallthru
        _
      %s855 = smul.u32 2, %s27
      %p856 = scmp.lt.s32.totalorder %s26, 1
      %s857 = scalar_select %p856, %s26, 1
      %p858 = scmp.lt.s32.totalorder %s855, 1
      %s859 = scalar_select %p858, %s855, 1
      %s860 = smul.addr %s857, 2
      %s861 = sadd.s32 %s859, %s860
      %s862 = smul.addr %s861, 4
      %s863 = scalar_lea.vmem %s10, %s862
      // Predicated region
      $region69: #{vit_forward.10} parent=59 // pred_check
        %p864 = pneg %p299
      $region70: #{vit_forward.10} parent=59 // pred_check_branch
        %866 = sbr.rel (%p864) target = $region72
      $region71: #{vit_forward.10} parent=59 // pred_region
        %s867 = smul.u32 2, %s27
      $region72: #{vit_forward.10} parent=59 // pred_fallthru
        _
    $region60: #{vit_forward.10} parent=5 // pred_fallthru
      _
    %p868 = scmp.le.s32.totalorder 2, %s16
    // Predicated region
    $region73: #{vit_forward.10} parent=5 // pred_check
      %p869 = pneg %p868
    $region74: #{vit_forward.10} parent=5 // pred_check_branch
      %871 = sbr.rel (%p869) target = $region76
    $region75: #{vit_forward.10} parent=5 // pred_region
      %s872 = ssub.s32 %s16, 2
      // Predicated region
      $region77: #{vit_forward.10} parent=75 // pred_check
        %p873 = pneg %p305
      $region78: #{vit_forward.10} parent=75 // pred_check_branch
        %875 = sbr.rel (%p873) target = $region80
      $region79: #{vit_forward.10} parent=75 // pred_region
        %s876 = smul.u32 2, %s30
        %p877 = scmp.lt.s32.totalorder %s29, 1
        %s878 = scalar_select %p877, %s29, 1
        %p879 = scmp.lt.s32.totalorder %s876, 1
        %s880 = scalar_select %p879, %s876, 1
        %s881 = smul.addr %s878, 2
        %s882 = sadd.s32 %s880, %s881
        %s883 = smul.addr %s882, 4
        %s884 = scalar_lea.vmem %s10, %s883
      $region80: #{vit_forward.10} parent=75 // pred_fallthru
        _
    $region76: #{vit_forward.10} parent=5 // pred_fallthru
      _
  $region6: #{vit_forward.10} parent=0 // loop_footer
    %s20 = sadd.s32 1, %s16
  $region7: #{vit_forward.10} parent=0 // loop_footer_branch
    %15 = sbr.rel target = $region3
  $region8: #{vit_forward.10} parent=0 // loop_exit
    _

// kernel: vit_forward.9
$region0: #{vit_forward.9}
  #allocation0 [shape = 'u32[]', space=smem, size = 0x4, offset = 0x4, fixed_abs, tag = 'smem constant byte address 0x4 - core index']
  #allocation1 [shape = 'u32[144,128]{1,0:T(1,128)}', space=vmem, size = 0x12000, scoped, tag = 'internal scratch']
  #allocation2 [shape = 'f32[4,16,1]{2,1,0:T(8,128)}', space=vmem, size = 0x8000, scoped, tag = 'scratch operand']
  #allocation3 [shape = 'f32[4,16,1]{2,1,0:T(8,128)}', space=vmem, size = 0x8000, scoped, tag = 'scratch operand']
  #allocation4 [shape = 'f32[4,16,8]{2,1,0:T(8,128)}', space=vmem, size = 0x8000, scoped, tag = 'scratch operand']
  %s0 = inlined_call_operand.vmem [shape: bf16[2,16,32], index: 0, kind: input, shape index: {}]
  %s1 = inlined_call_operand.vmem [shape: bf16[2,16,32], index: 1, kind: input, shape index: {}]
  %s2 = inlined_call_operand.vmem [shape: bf16[2,16,32], index: 2, kind: input, shape index: {}]
  %s3 = inlined_call_operand.vmem [shape: bf16[2,16,32], index: 3, kind: output, shape index: {}]
  %s4 = sld [smem:[#allocation0]]
  $region45: #{vit_forward.9} parent=0
    _
  %s6 = ssub.s32 1, %s4
  %s7 = scalar_select 0, %s6, %s4
  loop: start=0, step=1, limit=4
  $region2: #{vit_forward.9} parent=0 // loop_pre_header
    _
  $region3: #{vit_forward.9} parent=0 // loop_header
    %s9 = sphi 0, %s13
    %p10 = scmp.ge.s32.totalorder %s9, 4
    %s16 = sphi 0, %s35
    %s17 = sphi 0, %s31
    %s18 = sphi 0, %s27
    %s19 = sphi 0, %s16
    %s20 = sphi 0, %s17
    %s21 = sphi 0, %s18
    %s22 = sphi 0, %s19
    %s23 = sphi 0, %s20
    %s24 = sphi 0, %s21
    %s42 = sphi 0, %s44
    %s45 = sphi 0, %s42
    %s46 = sphi 0, %s45
    %s62 = sphi 0, %s46
    %s70 = sphi 0, %s72
    %s73 = sphi 0, %s70
    %s74 = sphi 0, %s73
    %s90 = sphi 0, %s74
    %s98 = sphi 0, %s100
    %s101 = sphi 0, %s98
    %s102 = sphi 0, %s101
    %s118 = sphi 0, %s102
    %s128 = sphi 0, %s130
    %s131 = sphi 0, %s128
    %s132 = sphi 0, %s131
    %s148 = sphi 0, %s132
  $region4: #{vit_forward.9} parent=0 // loop_header_branch
    %12 = sbr.rel (%p10) target = $region8
  $region5: #{vit_forward.9} parent=0 // loop_body
    %s14 = ssub.s32 %s9, 1
    %s15 = ssub.s32 %s9, 2
    %s25 = sadd.s32 1, %s18
    %p26 = scmp.ge.s32.totalorder %s25, 1
    %s27 = scalar_select %p26, 0, %s25
    %s28 = sadd.s32 1, %s17
    %s29 = scalar_select %p26, %s28, %s17
    %p30 = scmp.ge.s32.totalorder %s29, 1
    %s31 = scalar_select %p30, 0, %s29
    %s32 = sadd.s32 1, %s16
    %s33 = scalar_select %p30, %s32, %s16
    %p34 = scmp.ge.s32.totalorder %s33, 2
    %s35 = scalar_select %p34, 0, %s33
    %s36 = ssub.s32 %s16, %s35
    %s37 = ssub.s32 %s18, %s27
    %s38 = sor.u32 %s36, %s37
    %s39 = ssub.s32 %s17, %s31
    %s40 = sor.u32 %s38, %s39
    %p41 = scmp.eq.s32.totalorder %s40, 0
    %s43 = sadd.s32 %s42, 1
    %s44 = scalar_select %p41, %s42, %s43
    %p47 = pneg %p41
    %p48 = scmp.eq.s32.totalorder %s9, 1
    %p49 = por %p47, %p48
    %p50 = scmp.ne.s32.totalorder %s42, %s45
    %p51 = scmp.eq.s32.totalorder %s9, 0
    %p52 = por %p50, %p51
    %p53 = scmp.ne.s32.totalorder %s42, %s45
    %p54 = scmp.eq.s32.totalorder %s14, 1
    %p55 = por %p53, %p54
    %p56 = scmp.ne.s32.totalorder %s45, %s46
    %p57 = scmp.eq.s32.totalorder %s14, 0
    %p58 = por %p56, %p57
    %p59 = scmp.ne.s32.totalorder %s45, %s46
    %p60 = scmp.eq.s32.totalorder %s15, 1
    %p61 = por %p59, %p60
    %p63 = scmp.ne.s32.totalorder %s46, %s62
    %p64 = scmp.eq.s32.totalorder %s15, 0
    %p65 = por %p63, %p64
    %s66 = ssub.s32 %s16, %s35
    %s67 = ssub.s32 %s17, %s31
    %s68 = sor.u32 %s66, %s67
    %p69 = scmp.eq.s32.totalorder %s68, 0
    %s71 = sadd.s32 %s70, 1
    %s72 = scalar_select %p69, %s70, %s71
    %p75 = pneg %p69
    %p76 = scmp.eq.s32.totalorder %s9, 1
    %p77 = por %p75, %p76
    %p78 = scmp.ne.s32.totalorder %s70, %s73
    %p79 = scmp.eq.s32.totalorder %s9, 0
    %p80 = por %p78, %p79
    %p81 = scmp.ne.s32.totalorder %s70, %s73
    %p82 = scmp.eq.s32.totalorder %s14, 1
    %p83 = por %p81, %p82
    %p84 = scmp.ne.s32.totalorder %s73, %s74
    %p85 = scmp.eq.s32.totalorder %s14, 0
    %p86 = por %p84, %p85
    %p87 = scmp.ne.s32.totalorder %s73, %s74
    %p88 = scmp.eq.s32.totalorder %s15, 1
    %p89 = por %p87, %p88
    %p91 = scmp.ne.s32.totalorder %s74, %s90
    %p92 = scmp.eq.s32.totalorder %s15, 0
    %p93 = por %p91, %p92
    %s94 = ssub.s32 %s16, %s35
    %s95 = ssub.s32 %s17, %s31
    %s96 = sor.u32 %s94, %s95
    %p97 = scmp.eq.s32.totalorder %s96, 0
    %s99 = sadd.s32 %s98, 1
    %s100 = scalar_select %p97, %s98, %s99
    %p103 = pneg %p97
    %p104 = scmp.eq.s32.totalorder %s9, 1
    %p105 = por %p103, %p104
    %p106 = scmp.ne.s32.totalorder %s98, %s101
    %p107 = scmp.eq.s32.totalorder %s9, 0
    %p108 = por %p106, %p107
    %p109 = scmp.ne.s32.totalorder %s98, %s101
    %p110 = scmp.eq.s32.totalorder %s14, 1
    %p111 = por %p109, %p110
    %p112 = scmp.ne.s32.totalorder %s101, %s102
    %p113 = scmp.eq.s32.totalorder %s14, 0
    %p114 = por %p112, %p113
    %p115 = scmp.ne.s32.totalorder %s101, %s102
    %p116 = scmp.eq.s32.totalorder %s15, 1
    %p117 = por %p115, %p116
    %p119 = scmp.ne.s32.totalorder %s102, %s118
    %p120 = scmp.eq.s32.totalorder %s15, 0
    %p121 = por %p119, %p120
    %s122 = ssub.s32 %s16, %s35
    %s123 = ssub.s32 %s18, %s27
    %s124 = sor.u32 %s122, %s123
    %s125 = ssub.s32 %s17, %s31
    %s126 = sor.u32 %s124, %s125
    %p127 = scmp.eq.s32.totalorder %s126, 0
    %s129 = sadd.s32 %s128, 1
    %s130 = scalar_select %p127, %s128, %s129
    %p133 = pneg %p127
    %p134 = scmp.eq.s32.totalorder %s9, 1
    %p135 = por %p133, %p134
    %p136 = scmp.ne.s32.totalorder %s128, %s131
    %p137 = scmp.eq.s32.totalorder %s9, 0
    %p138 = por %p136, %p137
    %p139 = scmp.ne.s32.totalorder %s128, %s131
    %p140 = scmp.eq.s32.totalorder %s14, 1
    %p141 = por %p139, %p140
    %p142 = scmp.ne.s32.totalorder %s131, %s132
    %p143 = scmp.eq.s32.totalorder %s14, 0
    %p144 = por %p142, %p143
    %p145 = scmp.ne.s32.totalorder %s131, %s132
    %p146 = scmp.eq.s32.totalorder %s15, 1
    %p147 = por %p145, %p146
    %p149 = scmp.ne.s32.totalorder %s132, %s148
    %p150 = scmp.eq.s32.totalorder %s15, 0
    %p151 = por %p149, %p150
    %p152 = scmp.le.s32.totalorder 1, %s9
    %p153 = scmp.lt.s32.totalorder %s9, 3
    %p154 = pnand %p152, %p153
    %p155 = pneg %p154
    // Predicated region
    $region9: #{vit_forward.9} parent=5 // pred_check
      _
    $region10: #{vit_forward.9} parent=5 // pred_check_branch
      %157 = sbr.rel (%p154) target = $region12
    $region11: #{vit_forward.9} parent=5 // pred_region
      %s158 = ssub.s32 %s9, 1
    $region12: #{vit_forward.9} parent=5 // pred_fallthru
      _
    %p159 = scmp.lt.s32.totalorder %s9, 2
    // Predicated region
    $region13: #{vit_forward.9} parent=5 // pred_check
      %p160 = pneg %p159
    $region14: #{vit_forward.9} parent=5 // pred_check_branch
      %162 = sbr.rel (%p160) target = $region16
    $region15: #{vit_forward.9} parent=5 // pred_region
      // Predicated region
      $region17: #{vit_forward.9} parent=15 // pred_check
        %p163 = pneg %p52
      $region18: #{vit_forward.9} parent=15 // pred_check_branch
        %165 = sbr.rel (%p163) target = $region20
      $region19: #{vit_forward.9} parent=15 // pred_region
        %s166 = smul.u32 2, %s18
        %p167 = scmp.lt.s32.totalorder %s16, 1
        %s168 = scalar_select %p167, %s16, 1
        %p169 = scmp.lt.s32.totalorder %s166, 1
        %s170 = scalar_select %p169, %s166, 1
        %p171 = scmp.lt.s32.totalorder %s17, 0
        %s172 = scalar_select %p171, %s17, 0
        %s173 = sadd.s32 %s172, %s170
        %s174 = smul.addr %s168, 2
        %s175 = sadd.s32 %s173, %s174
        %s176 = smul.addr %s175, 4
        %s177 = scalar_lea.vmem %s0, %s176
        %s178 = smul.u32 2, %s18
      $region20: #{vit_forward.9} parent=15 // pred_fallthru
        _
      // Predicated region
      $region21: #{vit_forward.9} parent=15 // pred_check
        %p179 = pneg %p80
      $region22: #{vit_forward.9} parent=15 // pred_check_branch
        %181 = sbr.rel (%p179) target = $region24
      $region23: #{vit_forward.9} parent=15 // pred_region
        %p182 = scmp.lt.s32.totalorder %s16, 1
        %s183 = scalar_select %p182, %s16, 1
        %p184 = scmp.lt.s32.totalorder %s17, 0
        %s185 = scalar_select %p184, %s17, 0
        %s186 = smul.addr %s183, 2
        %s187 = sadd.s32 %s185, %s186
        %s188 = smul.addr %s187, 4
        %s189 = scalar_lea.vmem %s1, %s188
      $region24: #{vit_forward.9} parent=15 // pred_fallthru
        _
      // Predicated region
      $region25: #{vit_forward.9} parent=15 // pred_check
        %p190 = pneg %p108
      $region26: #{vit_forward.9} parent=15 // pred_check_branch
        %192 = sbr.rel (%p190) target = $region28
      $region27: #{vit_forward.9} parent=15 // pred_region
        %p193 = scmp.lt.s32.totalorder %s16, 1
        %s194 = scalar_select %p193, %s16, 1
        %p195 = scmp.lt.s32.totalorder %s17, 0
        %s196 = scalar_select %p195, %s17, 0
        %s197 = smul.addr %s194, 2
        %s198 = sadd.s32 %s196, %s197
        %s199 = smul.addr %s198, 4
        %s200 = scalar_lea.vmem %s2, %s199
      $region28: #{vit_forward.9} parent=15 // pred_fallthru
        _
    $region16: #{vit_forward.9} parent=5 // pred_fallthru
      _
    %p201 = scmp.le.s32.totalorder 1, %s9
    %p202 = scmp.lt.s32.totalorder %s9, 3
    %p203 = pnand %p201, %p202
    %p204 = pneg %p203
    // Predicated region
    $region29: #{vit_forward.9} parent=5 // pred_check
      _
    $region30: #{vit_forward.9} parent=5 // pred_check_branch
      %206 = sbr.rel (%p203) target = $region32
    $region31: #{vit_forward.9} parent=5 // pred_region
      %s207 = ssub.s32 %s9, 1
      %s208 = smul.u32 2, %s21
      %p209 = scmp.lt.s32.totalorder %s19, 1
      %s210 = scalar_select %p209, %s19, 1
      %p211 = scmp.lt.s32.totalorder %s208, 1
      %s212 = scalar_select %p211, %s208, 1
      %p213 = scmp.lt.s32.totalorder %s20, 0
      %s214 = scalar_select %p213, %s20, 0
      %s215 = sadd.s32 %s214, %s212
      %s216 = smul.addr %s210, 2
      %s217 = sadd.s32 %s215, %s216
      %s218 = smul.addr %s217, 4
      %s219 = scalar_lea.vmem %s0, %s218
      %p220 = pneg %p58
      %p221 = pneg %p55
      %p222 = scmp.lt.s32.totalorder %s19, 1
      %s223 = scalar_select %p222, %s19, 1
      %p224 = scmp.lt.s32.totalorder %s20, 0
      %s225 = scalar_select %p224, %s20, 0
      %s226 = smul.addr %s223, 2
      %s227 = sadd.s32 %s225, %s226
      %s228 = smul.addr %s227, 4
      %s229 = scalar_lea.vmem %s1, %s228
      %p230 = pneg %p86
      %p231 = pneg %p83
      %p232 = scmp.lt.s32.totalorder %s19, 1
      %s233 = scalar_select %p232, %s19, 1
      %p234 = scmp.lt.s32.totalorder %s20, 0
      %s235 = scalar_select %p234, %s20, 0
      %s236 = smul.addr %s233, 2
      %s237 = sadd.s32 %s235, %s236
      %s238 = smul.addr %s237, 4
      %s239 = scalar_lea.vmem %s2, %s238
      %p240 = pneg %p114
      %p241 = pneg %p111
      %p242 = pneg %p144
      %p243 = pneg %p141
      %s244 = smul.u32 2, %s21
      %p245 = scmp.lt.s32.totalorder %s19, 1
      %s246 = scalar_select %p245, %s19, 1
      %p247 = scmp.lt.s32.totalorder %s244, 1
      %s248 = scalar_select %p247, %s244, 1
      %p249 = scmp.lt.s32.totalorder %s20, 0
      %s250 = scalar_select %p249, %s20, 0
      %s251 = sadd.s32 %s250, %s248
      %s252 = smul.addr %s246, 2
      %s253 = sadd.s32 %s251, %s252
      %s254 = smul.addr %s253, 4
      %s255 = scalar_lea.vmem %s3, %s254
      %s256 = smul.u32 2, %s21
      %p257 = scmp.lt.s32.totalorder %s19, 1
      %s258 = scalar_select %p257, %s19, 1
      %p259 = scmp.lt.s32.totalorder %s256, 1
      %s260 = scalar_select %p259, %s256, 1
      %p261 = scmp.lt.s32.totalorder %s20, 0
      %s262 = scalar_select %p261, %s20, 0
      %s263 = sadd.s32 %s262, %s260
      %s264 = smul.addr %s258, 2
      %s265 = sadd.s32 %s263, %s264
      %s266 = smul.addr %s265, 4
      %s267 = scalar_lea.vmem %s0, %s266
      %s268 = smul.u32 2, %s21
      %p269 = scmp.lt.s32.totalorder %s19, 1
      %s270 = scalar_select %p269, %s19, 1
      %p271 = scmp.lt.s32.totalorder %s20, 0
      %s272 = scalar_select %p271, %s20, 0
      %s273 = smul.addr %s270, 2
      %s274 = sadd.s32 %s272, %s273
      %s275 = smul.addr %s274, 4
      %s276 = scalar_lea.vmem %s1, %s275
      %p277 = scmp.lt.s32.totalorder %s19, 1
      %s278 = scalar_select %p277, %s19, 1
      %p279 = scmp.lt.s32.totalorder %s20, 0
      %s280 = scalar_select %p279, %s20, 0
      %s281 = smul.addr %s278, 2
      %s282 = sadd.s32 %s280, %s281
      %s283 = smul.addr %s282, 4
      %s284 = scalar_lea.vmem %s2, %s283
      %s285 = smul.u32 2, %s21
      %p286 = scmp.lt.s32.totalorder %s19, 1
      %s287 = scalar_select %p286, %s19, 1
      %p288 = scmp.lt.s32.totalorder %s285, 1
      %s289 = scalar_select %p288, %s285, 1
      %p290 = scmp.lt.s32.totalorder %s20, 0
      %s291 = scalar_select %p290, %s20, 0
      %s292 = sadd.s32 %s291, %s289
      %s293 = smul.addr %s287, 2
      %s294 = sadd.s32 %s292, %s293
      %s295 = smul.addr %s294, 4
      %s296 = scalar_lea.vmem %s3, %s295
      %s297 = smul.u32 2, %s21
      %v299 = vld [vmem:[%s267] sm:$0xf]
      %v300 = vld [vmem:[%s267 + $0x4] sm:$0xf]
      %vm301 = vcmask 7168
      %302 = vst.msk [vmem:[#allocation2] sm:$0xff] %vm301, -1e+30
      %303 = vst.msk [vmem:[#allocation2 + $0x8] sm:$0xff] %vm301, -1e+30
      %304 = vst.msk [vmem:[#allocation2 + $0x10] sm:$0xff] %vm301, -1e+30
      %305 = vst.msk [vmem:[#allocation2 + $0x18] sm:$0xff] %vm301, -1e+30
      %306 = vst.msk [vmem:[#allocation2 + $0x20] sm:$0xff] %vm301, -1e+30
      %307 = vst.msk [vmem:[#allocation2 + $0x28] sm:$0xff] %vm301, -1e+30
      %308 = vst.msk [vmem:[#allocation2 + $0x30] sm:$0xff] %vm301, -1e+30
      %309 = vst.msk [vmem:[#allocation2 + $0x38] sm:$0xff] %vm301, -1e+30
      %310 = vst.msk [vmem:[#allocation3] sm:$0xff] %vm301, 0.0
      %311 = vst.msk [vmem:[#allocation3 + $0x8] sm:$0xff] %vm301, 0.0
      %312 = vst.msk [vmem:[#allocation3 + $0x10] sm:$0xff] %vm301, 0.0
      %313 = vst.msk [vmem:[#allocation3 + $0x18] sm:$0xff] %vm301, 0.0
      %314 = vst.msk [vmem:[#allocation3 + $0x20] sm:$0xff] %vm301, 0.0
      %315 = vst.msk [vmem:[#allocation3 + $0x28] sm:$0xff] %vm301, 0.0
      %316 = vst.msk [vmem:[#allocation3 + $0x30] sm:$0xff] %vm301, 0.0
      %317 = vst.msk [vmem:[#allocation3 + $0x38] sm:$0xff] %vm301, 0.0
      %vm318 = vcmask 64512
      %319 = vst.msk [vmem:[#allocation4] sm:$0xff] %vm318, 0.0
      %320 = vst.msk [vmem:[#allocation4 + $0x8] sm:$0xff] %vm318, 0.0
      %321 = vst.msk [vmem:[#allocation4 + $0x10] sm:$0xff] %vm318, 0.0
      %322 = vst.msk [vmem:[#allocation4 + $0x18] sm:$0xff] %vm318, 0.0
      %323 = vst.msk [vmem:[#allocation4 + $0x20] sm:$0xff] %vm318, 0.0
      %324 = vst.msk [vmem:[#allocation4 + $0x28] sm:$0xff] %vm318, 0.0
      %325 = vst.msk [vmem:[#allocation4 + $0x30] sm:$0xff] %vm318, 0.0
      %326 = vst.msk [vmem:[#allocation4 + $0x38] sm:$0xff] %vm318, 0.0
      %v327 = vld [vmem:[%s276] sm:$0xf]
      %v328 = vld [vmem:[%s276 + $0x4] sm:$0xf]
      %v329 = vld [vmem:[%s284] sm:$0xf]
      %v330 = vld [vmem:[%s284 + $0x4] sm:$0xf]
      %v333 = vunpack.c.l.b16 %v299
      %v334 = vunpack.c.l.b16 %v300
      %v335 = vpack.c.b16 %v334, %v333
      %v338 = vunpack.c.l.b16 %v327
      %v339 = vunpack.c.l.b16 %v328
      %v340 = vpack.c.b16 %v339, %v338
      %v342 = vsel %vm318, %v335, 0
      %v345 = vsel %vm318, %v340, 0
      %347 = vmatprep.subr.bf16.mxu0 0
      %348 = vmatpush1.bf16.xpose.msra.mxu0 %v345
      %349 = vmatprep.subr.bf16.mxu0 0
      %350 = vmatpush1.bf16.xpose.msra.mxu0 0
      %351 = vmatprep.subr.bf16.mxu0 0
      %352 = vmatpush1.bf16.xpose.msra.mxu0 0
      %353 = vmatprep.subr.bf16.mxu0 0
      %354 = vmatpush1.bf16.xpose.msra.mxu0 0
      %355 = vmatprep.subr.bf16.mxu0 0
      %356 = vmatpush1.bf16.xpose.msra.mxu0 0
      %357 = vmatprep.subr.bf16.mxu0 0
      %358 = vmatpush1.bf16.xpose.msra.mxu0 0
      %359 = vmatprep.subr.bf16.mxu0 0
      %360 = vmatpush1.bf16.xpose.msra.mxu0 0
      %361 = vmatprep.subr.bf16.mxu0 0
      %362 = vmatpush1.bf16.xpose.msra.mxu0 0
      %363 = vmatprep.subr.bf16.mxu0 0
      %364 = vmatpush1.bf16.xpose.msra.mxu0 0
      %365 = vmatprep.subr.bf16.mxu0 0
      %366 = vmatpush1.bf16.xpose.msra.mxu0 0
      %367 = vmatprep.subr.bf16.mxu0 0
      %368 = vmatpush1.bf16.xpose.msra.mxu0 0
      %369 = vmatprep.subr.bf16.mxu0 0
      %370 = vmatpush1.bf16.xpose.msra.mxu0 0
      %371 = vmatprep.subr.bf16.mxu0 0
      %372 = vmatpush1.bf16.xpose.msra.mxu0 0
      %373 = vmatprep.subr.bf16.mxu0 0
      %374 = vmatpush1.bf16.xpose.msra.mxu0 0
      %375 = vmatprep.subr.bf16.mxu0 0
      %376 = vmatpush1.bf16.xpose.msra.mxu0 0
      %377 = vmatprep.subr.bf16.mxu0 0
      %378 = vmatpush1.bf16.xpose.msra.mxu0 0
      %379 = vmatprep.mubr.bf16.mxu0 0
      %380 = vmatmul.mubr.bf16.gmra.mrb[0].mxu0 %v342
      %v381 = vpop.f32.mrb[0].mxu0
      %v382 = vadd.f32 0.0, %v381
      %v383 = vpop.f32.mrb[0].mxu0
      %v384 = vpop.f32.mrb[0].mxu0
      %v385 = vadd.f32 0.0, %v384
      %v386 = vpop.f32.mrb[0].mxu0
      %387 = vdwg.mxu0
      %v388 = vld [vmem:[#allocation2] sm:$0xff]
      %v389 = vld [vmem:[#allocation2 + $0x8] sm:$0xff]
      %vm390 = vcmask 130048
      %v391 = vsel %vm390, %v382, -inf
      %392 = vmax.xlane.f32.xlu0 %v391
      %v393 = vpop.xlane.xlu0 %392
      %v394 = vsel %vm390, %v385, -inf
      %395 = vmax.xlane.f32.xlu0 %v394
      %v396 = vpop.xlane.xlu0 %395
      %v397 = vmax.f32 %v388, %v393
      %v398 = vmax.f32 %v389, %v396
      %v399 = vsub.f32 %v388, %v397
      %v400 = vsub.f32 %v389, %v398
      %v401 = vmul.f32 %v399, 1.442695
      %v402 = vpow.pop %v401
      %v403 = vmul.f32 %v400, 1.442695
      %v404 = vpow.pop %v403
      %406 = vset.pattern.permute.xlu0 0
      %407 = vperm.xlu0 %406, %v397
      %v408 = vpop.permute.xlu0 %407
      %411 = vset.pattern.permute.xlu0 0
      %412 = vperm.xlu0 %411, %v398
      %v413 = vpop.permute.xlu0 %412
      %v415 = vsub.f32 %v382, %v408
      %v416 = vsub.f32 %v385, %v413
      %v417 = vmul.f32 %v415, 1.442695
      %v418 = vpow.pop %v417
      %v419 = vmul.f32 %v416, 1.442695
      %v420 = vpow.pop %v419
      %v421 = vld [vmem:[#allocation3] sm:$0xff]
      %v422 = vld [vmem:[#allocation3 + $0x8] sm:$0xff]
      %v423 = vmul.f32 %v402, %v421
      %v424 = vmul.f32 %v404, %v422
      %v425 = vsel %vm390, %v418, 0.0
      %426 = vadd.xlane.f32.xlu0 %v425
      %v427 = vpop.xlane.xlu0 %426
      %v428 = vsel %vm390, %v420, 0.0
      %429 = vadd.xlane.f32.xlu0 %v428
      %v430 = vpop.xlane.xlu0 %429
      %v431 = vadd.f32 %v423, %v427
      %v432 = vadd.f32 %v424, %v430
      %433 = vst.msk [vmem:[#allocation3] sm:$0xff] %vm301, %v431
      %434 = vst.msk [vmem:[#allocation3 + $0x8] sm:$0xff] %vm301, %v432
      %v435 = vld [vmem:[#allocation4] sm:$0xff]
      %v436 = vld [vmem:[#allocation4 + $0x8] sm:$0xff]
      %438 = vset.pattern.permute.xlu0 0
      %439 = vperm.xlu0 %438, %v402
      %v440 = vpop.permute.xlu0 %439
      %443 = vset.pattern.permute.xlu0 0
      %444 = vperm.xlu0 %443, %v404
      %v445 = vpop.permute.xlu0 %444
      %v447 = vmul.f32 %v440, %v435
      %v448 = vmul.f32 %v445, %v436
      %v449 = vpack.c.bf16 %v420, %v418
      %v452 = vunpack.c.l.b16 %v329
      %v453 = vunpack.c.l.b16 %v330
      %v454 = vpack.c.b16 %v453, %v452
      %v457 = vsel %vm390, %v449, 0
      %459 = vmatprep.subr.bf16.mxu0 0
      %460 = vmatpush1.bf16.msra.mxu0 %v454
      %461 = vmatprep.subr.bf16.mxu0 0
      %462 = vmatpush1.bf16.msra.mxu0 0
      %463 = vmatprep.subr.bf16.mxu0 0
      %464 = vmatpush1.bf16.msra.mxu0 0
      %465 = vmatprep.subr.bf16.mxu0 0
      %466 = vmatpush1.bf16.msra.mxu0 0
      %467 = vmatprep.subr.bf16.mxu0 0
      %468 = vmatpush1.bf16.msra.mxu0 0
      %469 = vmatprep.subr.bf16.mxu0 0
      %470 = vmatpush1.bf16.msra.mxu0 0
      %471 = vmatprep.subr.bf16.mxu0 0
      %472 = vmatpush1.bf16.msra.mxu0 0
      %473 = vmatprep.subr.bf16.mxu0 0
      %474 = vmatpush1.bf16.msra.mxu0 0
      %475 = vmatprep.subr.bf16.mxu0 0
      %476 = vmatpush1.bf16.msra.mxu0 0
      %477 = vmatprep.subr.bf16.mxu0 0
      %478 = vmatpush1.bf16.msra.mxu0 0
      %479 = vmatprep.subr.bf16.mxu0 0
      %480 = vmatpush1.bf16.msra.mxu0 0
      %481 = vmatprep.subr.bf16.mxu0 0
      %482 = vmatpush1.bf16.msra.mxu0 0
      %483 = vmatprep.subr.bf16.mxu0 0
      %484 = vmatpush1.bf16.msra.mxu0 0
      %485 = vmatprep.subr.bf16.mxu0 0
      %486 = vmatpush1.bf16.msra.mxu0 0
      %487 = vmatprep.subr.bf16.mxu0 0
      %488 = vmatpush1.bf16.msra.mxu0 0
      %489 = vmatprep.subr.bf16.mxu0 0
      %490 = vmatpush1.bf16.msra.mxu0 0
      %491 = vmatprep.mubr.bf16.mxu0 0
      %492 = vmatmul.mubr.bf16.gmra.mrb[0].mxu0 %v457
      %v493 = vpop.f32.mrb[0].mxu0
      %v494 = vadd.f32 0.0, %v493
      %v495 = vpop.f32.mrb[0].mxu0
      %v496 = vpop.f32.mrb[0].mxu0
      %v497 = vadd.f32 0.0, %v496
      %v498 = vpop.f32.mrb[0].mxu0
      %499 = vdwg.mxu0
      %v500 = vadd.f32 %v447, %v494
      %v501 = vadd.f32 %v448, %v497
      %502 = vst.msk [vmem:[#allocation4] sm:$0xff] %vm318, %v500
      %503 = vst.msk [vmem:[#allocation4 + $0x8] sm:$0xff] %vm318, %v501
      %504 = vst.msk [vmem:[#allocation2] sm:$0xff] %vm301, %v397
      %505 = vst.msk [vmem:[#allocation2 + $0x8] sm:$0xff] %vm301, %v398
      %506 = vrot.lane.b32.xlu0 %v335, 120
      %v507 = vpop.permute.xlu0 %506
      %508 = vrot.lane.b32.xlu0 %v340, 120
      %v509 = vpop.permute.xlu0 %508
      %v511 = vsel %vm318, %v507, 0
      %v514 = vsel %vm318, %v509, 0
      %516 = vmatprep.subr.bf16.mxu0 0
      %517 = vmatpush1.bf16.xpose.msra.mxu0 %v514
      %518 = vmatprep.subr.bf16.mxu0 0
      %519 = vmatpush1.bf16.xpose.msra.mxu0 0
      %520 = vmatprep.subr.bf16.mxu0 0
      %521 = vmatpush1.bf16.xpose.msra.mxu0 0
      %522 = vmatprep.subr.bf16.mxu0 0
      %523 = vmatpush1.bf16.xpose.msra.mxu0 0
      %524 = vmatprep.subr.bf16.mxu0 0
      %525 = vmatpush1.bf16.xpose.msra.mxu0 0
      %526 = vmatprep.subr.bf16.mxu0 0
      %527 = vmatpush1.bf16.xpose.msra.mxu0 0
      %528 = vmatprep.subr.bf16.mxu0 0
      %529 = vmatpush1.bf16.xpose.msra.mxu0 0
      %530 = vmatprep.subr.bf16.mxu0 0
      %531 = vmatpush1.bf16.xpose.msra.mxu0 0
      %532 = vmatprep.subr.bf16.mxu0 0
      %533 = vmatpush1.bf16.xpose.msra.mxu0 0
      %534 = vmatprep.subr.bf16.mxu0 0
      %535 = vmatpush1.bf16.xpose.msra.mxu0 0
      %536 = vmatprep.subr.bf16.mxu0 0
      %537 = vmatpush1.bf16.xpose.msra.mxu0 0
      %538 = vmatprep.subr.bf16.mxu0 0
      %539 = vmatpush1.bf16.xpose.msra.mxu0 0
      %540 = vmatprep.subr.bf16.mxu0 0
      %541 = vmatpush1.bf16.xpose.msra.mxu0 0
      %542 = vmatprep.subr.bf16.mxu0 0
      %543 = vmatpush1.bf16.xpose.msra.mxu0 0
      %544 = vmatprep.subr.bf16.mxu0 0
      %545 = vmatpush1.bf16.xpose.msra.mxu0 0
      %546 = vmatprep.subr.bf16.mxu0 0
      %547 = vmatpush1.bf16.xpose.msra.mxu0 0
      %548 = vmatprep.mubr.bf16.mxu0 0
      %549 = vmatmul.mubr.bf16.gmra.mrb[0].mxu0 %v511
      %v550 = vpop.f32.mrb[0].mxu0
      %v551 = vadd.f32 0.0, %v550
      %v552 = vpop.f32.mrb[0].mxu0
      %v553 = vpop.f32.mrb[0].mxu0
      %v554 = vadd.f32 0.0, %v553
      %v555 = vpop.f32.mrb[0].mxu0
      %556 = vdwg.mxu0
      %s557 = scalar_lea.vmem [#allocation2], 16
      %v558 = vld [vmem:[%s557] sm:$0xff]
      %v559 = vld [vmem:[%s557 + $0x8] sm:$0xff]
      %v560 = vsel %vm390, %v551, -inf
      %561 = vmax.xlane.f32.xlu0 %v560
      %v562 = vpop.xlane.xlu0 %561
      %v563 = vsel %vm390, %v554, -inf
      %564 = vmax.xlane.f32.xlu0 %v563
      %v565 = vpop.xlane.xlu0 %564
      %v566 = vmax.f32 %v558, %v562
      %v567 = vmax.f32 %v559, %v565
      %v568 = vsub.f32 %v558, %v566
      %v569 = vsub.f32 %v559, %v567
      %v570 = vmul.f32 %v568, 1.442695
      %v571 = vpow.pop %v570
      %v572 = vmul.f32 %v569, 1.442695
      %v573 = vpow.pop %v572
      %575 = vset.pattern.permute.xlu0 0
      %576 = vperm.xlu0 %575, %v566
      %v577 = vpop.permute.xlu0 %576
      %580 = vset.pattern.permute.xlu0 0
      %581 = vperm.xlu0 %580, %v567
      %v582 = vpop.permute.xlu0 %581
      %v584 = vsub.f32 %v551, %v577
      %v585 = vsub.f32 %v554, %v582
      %v586 = vmul.f32 %v584, 1.442695
      %v587 = vpow.pop %v586
      %v588 = vmul.f32 %v585, 1.442695
      %v589 = vpow.pop %v588
      %s590 = scalar_lea.vmem [#allocation3], 16
      %v591 = vld [vmem:[%s590] sm:$0xff]
      %v592 = vld [vmem:[%s590 + $0x8] sm:$0xff]
      %v593 = vmul.f32 %v571, %v591
      %v594 = vmul.f32 %v573, %v592
      %v595 = vsel %vm390, %v587, 0.0
      %596 = vadd.xlane.f32.xlu0 %v595
      %v597 = vpop.xlane.xlu0 %596
      %v598 = vsel %vm390, %v589, 0.0
      %599 = vadd.xlane.f32.xlu0 %v598
      %v600 = vpop.xlane.xlu0 %599
      %v601 = vadd.f32 %v593, %v597
      %v602 = vadd.f32 %v594, %v600
      %603 = vst.msk [vmem:[%s590] sm:$0xff] %vm301, %v601
      %604 = vst.msk [vmem:[%s590 + $0x8] sm:$0xff] %vm301, %v602
      %s605 = scalar_lea.vmem [#allocation4], 16
      %v606 = vld [vmem:[%s605] sm:$0xff]
      %v607 = vld [vmem:[%s605 + $0x8] sm:$0xff]
      %609 = vset.pattern.permute.xlu0 0
      %610 = vperm.xlu0 %609, %v571
      %v611 = vpop.permute.xlu0 %610
      %614 = vset.pattern.permute.xlu0 0
      %615 = vperm.xlu0 %614, %v573
      %v616 = vpop.permute.xlu0 %615
      %v618 = vmul.f32 %v611, %v606
      %v619 = vmul.f32 %v616, %v607
      %v620 = vpack.c.bf16 %v589, %v587
      %621 = vrot.lane.b32.xlu0 %v454, 120
      %v622 = vpop.permute.xlu0 %621
      %v625 = vsel %vm390, %v620, 0
      %627 = vmatprep.subr.bf16.mxu0 0
      %628 = vmatpush1.bf16.msra.mxu0 %v622
      %629 = vmatprep.subr.bf16.mxu0 0
      %630 = vmatpush1.bf16.msra.mxu0 0
      %631 = vmatprep.subr.bf16.mxu0 0
      %632 = vmatpush1.bf16.msra.mxu0 0
      %633 = vmatprep.subr.bf16.mxu0 0
      %634 = vmatpush1.bf16.msra.mxu0 0
      %635 = vmatprep.subr.bf16.mxu0 0
      %636 = vmatpush1.bf16.msra.mxu0 0
      %637 = vmatprep.subr.bf16.mxu0 0
      %638 = vmatpush1.bf16.msra.mxu0 0
      %639 = vmatprep.subr.bf16.mxu0 0
      %640 = vmatpush1.bf16.msra.mxu0 0
      %641 = vmatprep.subr.bf16.mxu0 0
      %642 = vmatpush1.bf16.msra.mxu0 0
      %643 = vmatprep.subr.bf16.mxu0 0
      %644 = vmatpush1.bf16.msra.mxu0 0
      %645 = vmatprep.subr.bf16.mxu0 0
      %646 = vmatpush1.bf16.msra.mxu0 0
      %647 = vmatprep.subr.bf16.mxu0 0
      %648 = vmatpush1.bf16.msra.mxu0 0
      %649 = vmatprep.subr.bf16.mxu0 0
      %650 = vmatpush1.bf16.msra.mxu0 0
      %651 = vmatprep.subr.bf16.mxu0 0
      %652 = vmatpush1.bf16.msra.mxu0 0
      %653 = vmatprep.subr.bf16.mxu0 0
      %654 = vmatpush1.bf16.msra.mxu0 0
      %655 = vmatprep.subr.bf16.mxu0 0
      %656 = vmatpush1.bf16.msra.mxu0 0
      %657 = vmatprep.subr.bf16.mxu0 0
      %658 = vmatpush1.bf16.msra.mxu0 0
      %659 = vmatprep.mubr.bf16.mxu0 0
      %660 = vmatmul.mubr.bf16.gmra.mrb[0].mxu0 %v625
      %v661 = vpop.f32.mrb[0].mxu0
      %v662 = vadd.f32 0.0, %v661
      %v663 = vpop.f32.mrb[0].mxu0
      %v664 = vpop.f32.mrb[0].mxu0
      %v665 = vadd.f32 0.0, %v664
      %v666 = vpop.f32.mrb[0].mxu0
      %667 = vdwg.mxu0
      %v668 = vadd.f32 %v618, %v662
      %v669 = vadd.f32 %v619, %v665
      %670 = vst.msk [vmem:[%s605] sm:$0xff] %vm318, %v668
      %671 = vst.msk [vmem:[%s605 + $0x8] sm:$0xff] %vm318, %v669
      %672 = vst.msk [vmem:[%s557] sm:$0xff] %vm301, %v566
      %673 = vst.msk [vmem:[%s557 + $0x8] sm:$0xff] %vm301, %v567
      %674 = vrot.lane.b32.xlu0 %v335, 112
      %v675 = vpop.permute.xlu0 %674
      %676 = vrot.lane.b32.xlu0 %v340, 112
      %v677 = vpop.permute.xlu0 %676
      %v679 = vsel %vm318, %v675, 0
      %v682 = vsel %vm318, %v677, 0
      %684 = vmatprep.subr.bf16.mxu0 0
      %685 = vmatpush1.bf16.xpose.msra.mxu0 %v682
      %686 = vmatprep.subr.bf16.mxu0 0
      %687 = vmatpush1.bf16.xpose.msra.mxu0 0
      %688 = vmatprep.subr.bf16.mxu0 0
      %689 = vmatpush1.bf16.xpose.msra.mxu0 0
      %690 = vmatprep.subr.bf16.mxu0 0
      %691 = vmatpush1.bf16.xpose.msra.mxu0 0
      %692 = vmatprep.subr.bf16.mxu0 0
      %693 = vmatpush1.bf16.xpose.msra.mxu0 0
      %694 = vmatprep.subr.bf16.mxu0 0
      %695 = vmatpush1.bf16.xpose.msra.mxu0 0
      %696 = vmatprep.subr.bf16.mxu0 0
      %697 = vmatpush1.bf16.xpose.msra.mxu0 0
      %698 = vmatprep.subr.bf16.mxu0 0
      %699 = vmatpush1.bf16.xpose.msra.mxu0 0
      %700 = vmatprep.subr.bf16.mxu0 0
      %701 = vmatpush1.bf16.xpose.msra.mxu0 0
      %702 = vmatprep.subr.bf16.mxu0 0
      %703 = vmatpush1.bf16.xpose.msra.mxu0 0
      %704 = vmatprep.subr.bf16.mxu0 0
      %705 = vmatpush1.bf16.xpose.msra.mxu0 0
      %706 = vmatprep.subr.bf16.mxu0 0
      %707 = vmatpush1.bf16.xpose.msra.mxu0 0
      %708 = vmatprep.subr.bf16.mxu0 0
      %709 = vmatpush1.bf16.xpose.msra.mxu0 0
      %710 = vmatprep.subr.bf16.mxu0 0
      %711 = vmatpush1.bf16.xpose.msra.mxu0 0
      %712 = vmatprep.subr.bf16.mxu0 0
      %713 = vmatpush1.bf16.xpose.msra.mxu0 0
      %714 = vmatprep.subr.bf16.mxu0 0
      %715 = vmatpush1.bf16.xpose.msra.mxu0 0
      %716 = vmatprep.mubr.bf16.mxu0 0
      %717 = vmatmul.mubr.bf16.gmra.mrb[0].mxu0 %v679
      %v718 = vpop.f32.mrb[0].mxu0
      %v719 = vadd.f32 0.0, %v718
      %v720 = vpop.f32.mrb[0].mxu0
      %v721 = vpop.f32.mrb[0].mxu0
      %v722 = vadd.f32 0.0, %v721
      %v723 = vpop.f32.mrb[0].mxu0
      %724 = vdwg.mxu0
      %s725 = scalar_lea.vmem [#allocation2], 32
      %v726 = vld [vmem:[%s725] sm:$0xff]
      %v727 = vld [vmem:[%s725 + $0x8] sm:$0xff]
      %v728 = vsel %vm390, %v719, -inf
      %729 = vmax.xlane.f32.xlu0 %v728
      %v730 = vpop.xlane.xlu0 %729
      %v731 = vsel %vm390, %v722, -inf
      %732 = vmax.xlane.f32.xlu0 %v731
      %v733 = vpop.xlane.xlu0 %732
      %v734 = vmax.f32 %v726, %v730
      %v735 = vmax.f32 %v727, %v733
      %v736 = vsub.f32 %v726, %v734
      %v737 = vsub.f32 %v727, %v735
      %v738 = vmul.f32 %v736, 1.442695
      %v739 = vpow.pop %v738
      %v740 = vmul.f32 %v737, 1.442695
      %v741 = vpow.pop %v740
      %743 = vset.pattern.permute.xlu0 0
      %744 = vperm.xlu0 %743, %v734
      %v745 = vpop.permute.xlu0 %744
      %748 = vset.pattern.permute.xlu0 0
      %749 = vperm.xlu0 %748, %v735
      %v750 = vpop.permute.xlu0 %749
      %v752 = vsub.f32 %v719, %v745
      %v753 = vsub.f32 %v722, %v750
      %v754 = vmul.f32 %v752, 1.442695
      %v755 = vpow.pop %v754
      %v756 = vmul.f32 %v753, 1.442695
      %v757 = vpow.pop %v756
      %s758 = scalar_lea.vmem [#allocation3], 32
      %v759 = vld [vmem:[%s758] sm:$0xff]
      %v760 = vld [vmem:[%s758 + $0x8] sm:$0xff]
      %v761 = vmul.f32 %v739, %v759
      %v762 = vmul.f32 %v741, %v760
      %v763 = vsel %vm390, %v755, 0.0
      %764 = vadd.xlane.f32.xlu0 %v763
      %v765 = vpop.xlane.xlu0 %764
      %v766 = vsel %vm390, %v757, 0.0
      %767 = vadd.xlane.f32.xlu0 %v766
      %v768 = vpop.xlane.xlu0 %767
      %v769 = vadd.f32 %v761, %v765
      %v770 = vadd.f32 %v762, %v768
      %771 = vst.msk [vmem:[%s758] sm:$0xff] %vm301, %v769
      %772 = vst.msk [vmem:[%s758 + $0x8] sm:$0xff] %vm301, %v770
      %s773 = scalar_lea.vmem [#allocation4], 32
      %v774 = vld [vmem:[%s773] sm:$0xff]
      %v775 = vld [vmem:[%s773 + $0x8] sm:$0xff]
      %777 = vset.pattern.permute.xlu0 0
      %778 = vperm.xlu0 %777, %v739
      %v779 = vpop.permute.xlu0 %778
      %782 = vset.pattern.permute.xlu0 0
      %783 = vperm.xlu0 %782, %v741
      %v784 = vpop.permute.xlu0 %783
      %v786 = vmul.f32 %v779, %v774
      %v787 = vmul.f32 %v784, %v775
      %v788 = vpack.c.bf16 %v757, %v755
      %789 = vrot.lane.b32.xlu0 %v454, 112
      %v790 = vpop.permute.xlu0 %789
      %v793 = vsel %vm390, %v788, 0
      %795 = vmatprep.subr.bf16.mxu0 0
      %796 = vmatpush1.bf16.msra.mxu0 %v790
      %797 = vmatprep.subr.bf16.mxu0 0
      %798 = vmatpush1.bf16.msra.mxu0 0
      %799 = vmatprep.subr.bf16.mxu0 0
      %800 = vmatpush1.bf16.msra.mxu0 0
      %801 = vmatprep.subr.bf16.mxu0 0
      %802 = vmatpush1.bf16.msra.mxu0 0
      %803 = vmatprep.subr.bf16.mxu0 0
      %804 = vmatpush1.bf16.msra.mxu0 0
      %805 = vmatprep.subr.bf16.mxu0 0
      %806 = vmatpush1.bf16.msra.mxu0 0
      %807 = vmatprep.subr.bf16.mxu0 0
      %808 = vmatpush1.bf16.msra.mxu0 0
      %809 = vmatprep.subr.bf16.mxu0 0
      %810 = vmatpush1.bf16.msra.mxu0 0
      %811 = vmatprep.subr.bf16.mxu0 0
      %812 = vmatpush1.bf16.msra.mxu0 0
      %813 = vmatprep.subr.bf16.mxu0 0
      %814 = vmatpush1.bf16.msra.mxu0 0
      %815 = vmatprep.subr.bf16.mxu0 0
      %816 = vmatpush1.bf16.msra.mxu0 0
      %817 = vmatprep.subr.bf16.mxu0 0
      %818 = vmatpush1.bf16.msra.mxu0 0
      %819 = vmatprep.subr.bf16.mxu0 0
      %820 = vmatpush1.bf16.msra.mxu0 0
      %821 = vmatprep.subr.bf16.mxu0 0
      %822 = vmatpush1.bf16.msra.mxu0 0
      %823 = vmatprep.subr.bf16.mxu0 0
      %824 = vmatpush1.bf16.msra.mxu0 0
      %825 = vmatprep.subr.bf16.mxu0 0
      %826 = vmatpush1.bf16.msra.mxu0 0
      %827 = vmatprep.mubr.bf16.mxu0 0
      %828 = vmatmul.mubr.bf16.gmra.mrb[0].mxu0 %v793
      %v829 = vpop.f32.mrb[0].mxu0
      %v830 = vadd.f32 0.0, %v829
      %v831 = vpop.f32.mrb[0].mxu0
      %v832 = vpop.f32.mrb[0].mxu0
      %v833 = vadd.f32 0.0, %v832
      %v834 = vpop.f32.mrb[0].mxu0
      %835 = vdwg.mxu0
      %v836 = vadd.f32 %v786, %v830
      %v837 = vadd.f32 %v787, %v833
      %838 = vst.msk [vmem:[%s773] sm:$0xff] %vm318, %v836
      %839 = vst.msk [vmem:[%s773 + $0x8] sm:$0xff] %vm318, %v837
      %840 = vst.msk [vmem:[%s725] sm:$0xff] %vm301, %v734
      %841 = vst.msk [vmem:[%s725 + $0x8] sm:$0xff] %vm301, %v735
      %842 = vrot.lane.b32.xlu0 %v335, 104
      %v843 = vpop.permute.xlu0 %842
      %844 = vrot.lane.b32.xlu0 %v340, 104
      %v845 = vpop.permute.xlu0 %844
      %v847 = vsel %vm318, %v843, 0
      %v850 = vsel %vm318, %v845, 0
      %852 = vmatprep.subr.bf16.mxu0 0
      %853 = vmatpush1.bf16.xpose.msra.mxu0 %v850
      %854 = vmatprep.subr.bf16.mxu0 0
      %855 = vmatpush1.bf16.xpose.msra.mxu0 0
      %856 = vmatprep.subr.bf16.mxu0 0
      %857 = vmatpush1.bf16.xpose.msra.mxu0 0
      %858 = vmatprep.subr.bf16.mxu0 0
      %859 = vmatpush1.bf16.xpose.msra.mxu0 0
      %860 = vmatprep.subr.bf16.mxu0 0
      %861 = vmatpush1.bf16.xpose.msra.mxu0 0
      %862 = vmatprep.subr.bf16.mxu0 0
      %863 = vmatpush1.bf16.xpose.msra.mxu0 0
      %864 = vmatprep.subr.bf16.mxu0 0
      %865 = vmatpush1.bf16.xpose.msra.mxu0 0
      %866 = vmatprep.subr.bf16.mxu0 0
      %867 = vmatpush1.bf16.xpose.msra.mxu0 0
      %868 = vmatprep.subr.bf16.mxu0 0
      %869 = vmatpush1.bf16.xpose.msra.mxu0 0
      %870 = vmatprep.subr.bf16.mxu0 0
      %871 = vmatpush1.bf16.xpose.msra.mxu0 0
      %872 = vmatprep.subr.bf16.mxu0 0
      %873 = vmatpush1.bf16.xpose.msra.mxu0 0
      %874 = vmatprep.subr.bf16.mxu0 0
      %875 = vmatpush1.bf16.xpose.msra.mxu0 0
      %876 = vmatprep.subr.bf16.mxu0 0
      %877 = vmatpush1.bf16.xpose.msra.mxu0 0
      %878 = vmatprep.subr.bf16.mxu0 0
      %879 = vmatpush1.bf16.xpose.msra.mxu0 0
      %880 = vmatprep.subr.bf16.mxu0 0
      %881 = vmatpush1.bf16.xpose.msra.mxu0 0
      %882 = vmatprep.subr.bf16.mxu0 0
      %883 = vmatpush1.bf16.xpose.msra.mxu0 0
      %884 = vmatprep.mubr.bf16.mxu0 0
      %885 = vmatmul.mubr.bf16.gmra.mrb[0].mxu0 %v847
      %v886 = vpop.f32.mrb[0].mxu0
      %v887 = vadd.f32 0.0, %v886
      %v888 = vpop.f32.mrb[0].mxu0
      %v889 = vpop.f32.mrb[0].mxu0
      %v890 = vadd.f32 0.0, %v889
      %v891 = vpop.f32.mrb[0].mxu0
      %892 = vdwg.mxu0
      %s893 = scalar_lea.vmem [#allocation2], 48
      %v894 = vld [vmem:[%s893] sm:$0xff]
      %v895 = vld [vmem:[%s893 + $0x8] sm:$0xff]
      %v896 = vsel %vm390, %v887, -inf
      %897 = vmax.xlane.f32.xlu0 %v896
      %v898 = vpop.xlane.xlu0 %897
      %v899 = vsel %vm390, %v890, -inf
      %900 = vmax.xlane.f32.xlu0 %v899
      %v901 = vpop.xlane.xlu0 %900
      %v902 = vmax.f32 %v894, %v898
      %v903 = vmax.f32 %v895, %v901
      %v904 = vsub.f32 %v894, %v902
      %v905 = vsub.f32 %v895, %v903
      %v906 = vmul.f32 %v904, 1.442695
      %v907 = vpow.pop %v906
      %v908 = vmul.f32 %v905, 1.442695
      %v909 = vpow.pop %v908
      %911 = vset.pattern.permute.xlu0 0
      %912 = vperm.xlu0 %911, %v902
      %v913 = vpop.permute.xlu0 %912
      %916 = vset.pattern.permute.xlu0 0
      %917 = vperm.xlu0 %916, %v903
      %v918 = vpop.permute.xlu0 %917
      %v920 = vsub.f32 %v887, %v913
      %v921 = vsub.f32 %v890, %v918
      %v922 = vmul.f32 %v920, 1.442695
      %v923 = vpow.pop %v922
      %v924 = vmul.f32 %v921, 1.442695
      %v925 = vpow.pop %v924
      %s926 = scalar_lea.vmem [#allocation3], 48
      %v927 = vld [vmem:[%s926] sm:$0xff]
      %v928 = vld [vmem:[%s926 + $0x8] sm:$0xff]
      %v929 = vmul.f32 %v907, %v927
      %v930 = vmul.f32 %v909, %v928
      %v931 = vsel %vm390, %v923, 0.0
      %932 = vadd.xlane.f32.xlu0 %v931
      %v933 = vpop.xlane.xlu0 %932
      %v934 = vsel %vm390, %v925, 0.0
      %935 = vadd.xlane.f32.xlu0 %v934
      %v936 = vpop.xlane.xlu0 %935
      %v937 = vadd.f32 %v929, %v933
      %v938 = vadd.f32 %v930, %v936
      %939 = vst.msk [vmem:[%s926] sm:$0xff] %vm301, %v937
      %940 = vst.msk [vmem:[%s926 + $0x8] sm:$0xff] %vm301, %v938
      %s941 = scalar_lea.vmem [#allocation4], 48
      %v942 = vld [vmem:[%s941] sm:$0xff]
      %v943 = vld [vmem:[%s941 + $0x8] sm:$0xff]
      %945 = vset.pattern.permute.xlu0 0
      %946 = vperm.xlu0 %945, %v907
      %v947 = vpop.permute.xlu0 %946
      %950 = vset.pattern.permute.xlu0 0
      %951 = vperm.xlu0 %950, %v909
      %v952 = vpop.permute.xlu0 %951
      %v954 = vmul.f32 %v947, %v942
      %v955 = vmul.f32 %v952, %v943
      %v956 = vpack.c.bf16 %v925, %v923
      %957 = vrot.lane.b32.xlu0 %v454, 104
      %v958 = vpop.permute.xlu0 %957
      %v961 = vsel %vm390, %v956, 0
      %963 = vmatprep.subr.bf16.mxu0 0
      %964 = vmatpush1.bf16.msra.mxu0 %v958
      %965 = vmatprep.subr.bf16.mxu0 0
      %966 = vmatpush1.bf16.msra.mxu0 0
      %967 = vmatprep.subr.bf16.mxu0 0
      %968 = vmatpush1.bf16.msra.mxu0 0
      %969 = vmatprep.subr.bf16.mxu0 0
      %970 = vmatpush1.bf16.msra.mxu0 0
      %971 = vmatprep.subr.bf16.mxu0 0
      %972 = vmatpush1.bf16.msra.mxu0 0
      %973 = vmatprep.subr.bf16.mxu0 0
      %974 = vmatpush1.bf16.msra.mxu0 0
      %975 = vmatprep.subr.bf16.mxu0 0
      %976 = vmatpush1.bf16.msra.mxu0 0
      %977 = vmatprep.subr.bf16.mxu0 0
      %978 = vmatpush1.bf16.msra.mxu0 0
      %979 = vmatprep.subr.bf16.mxu0 0
      %980 = vmatpush1.bf16.msra.mxu0 0
      %981 = vmatprep.subr.bf16.mxu0 0
      %982 = vmatpush1.bf16.msra.mxu0 0
      %983 = vmatprep.subr.bf16.mxu0 0
      %984 = vmatpush1.bf16.msra.mxu0 0
      %985 = vmatprep.subr.bf16.mxu0 0
      %986 = vmatpush1.bf16.msra.mxu0 0
      %987 = vmatprep.subr.bf16.mxu0 0
      %988 = vmatpush1.bf16.msra.mxu0 0
      %989 = vmatprep.subr.bf16.mxu0 0
      %990 = vmatpush1.bf16.msra.mxu0 0
      %991 = vmatprep.subr.bf16.mxu0 0
      %992 = vmatpush1.bf16.msra.mxu0 0
      %993 = vmatprep.subr.bf16.mxu0 0
      %994 = vmatpush1.bf16.msra.mxu0 0
      %995 = vmatprep.mubr.bf16.mxu0 0
      %996 = vmatmul.mubr.bf16.gmra.mrb[0].mxu0 %v961
      %v997 = vpop.f32.mrb[0].mxu0
      %v998 = vadd.f32 0.0, %v997
      %v999 = vpop.f32.mrb[0].mxu0
      %v1000 = vpop.f32.mrb[0].mxu0
      %v1001 = vadd.f32 0.0, %v1000
      %v1002 = vpop.f32.mrb[0].mxu0
      %1003 = vdwg.mxu0
      %v1004 = vadd.f32 %v954, %v998
      %v1005 = vadd.f32 %v955, %v1001
      %1006 = vst.msk [vmem:[%s941] sm:$0xff] %vm318, %v1004
      %1007 = vst.msk [vmem:[%s941 + $0x8] sm:$0xff] %vm318, %v1005
      %1008 = vst.msk [vmem:[%s893] sm:$0xff] %vm301, %v902
      %1009 = vst.msk [vmem:[%s893 + $0x8] sm:$0xff] %vm301, %v903
      %v1010 = vld [vmem:[#allocation4] sm:$0xff]
      %v1011 = vld [vmem:[#allocation4 + $0x8] sm:$0xff]
      %v1012 = vld [vmem:[#allocation3] sm:$0xff]
      %v1013 = vld [vmem:[#allocation3 + $0x8] sm:$0xff]
      %v1014 = vrcp.pop %v1012
      %v1015 = vrcp.pop %v1013
      %1017 = vset.pattern.permute.xlu0 0
      %1018 = vperm.xlu0 %1017, %v1014
      %v1019 = vpop.permute.xlu0 %1018
      %1022 = vset.pattern.permute.xlu0 0
      %1023 = vperm.xlu0 %1022, %v1015
      %v1024 = vpop.permute.xlu0 %1023
      %v1026 = vmul.f32 %v1010, %v1019
      %v1027 = vmul.f32 %v1011, %v1024
      %v1028 = vpack.c.bf16 %v1027, %v1026
      %v1029 = vld [vmem:[%s605] sm:$0xff]
      %v1030 = vld [vmem:[%s605 + $0x8] sm:$0xff]
      %v1031 = vld [vmem:[%s590] sm:$0xff]
      %v1032 = vld [vmem:[%s590 + $0x8] sm:$0xff]
      %v1033 = vrcp.pop %v1031
      %v1034 = vrcp.pop %v1032
      %1036 = vset.pattern.permute.xlu0 0
      %1037 = vperm.xlu0 %1036, %v1033
      %v1038 = vpop.permute.xlu0 %1037
      %1041 = vset.pattern.permute.xlu0 0
      %1042 = vperm.xlu0 %1041, %v1034
      %v1043 = vpop.permute.xlu0 %1042
      %v1045 = vmul.f32 %v1029, %v1038
      %v1046 = vmul.f32 %v1030, %v1043
      %v1047 = vpack.c.bf16 %v1046, %v1045
      %v1048 = vld [vmem:[%s773] sm:$0xff]
      %v1049 = vld [vmem:[%s773 + $0x8] sm:$0xff]
      %v1050 = vld [vmem:[%s758] sm:$0xff]
      %v1051 = vld [vmem:[%s758 + $0x8] sm:$0xff]
      %v1052 = vrcp.pop %v1050
      %v1053 = vrcp.pop %v1051
      %1055 = vset.pattern.permute.xlu0 0
      %1056 = vperm.xlu0 %1055, %v1052
      %v1057 = vpop.permute.xlu0 %1056
      %1060 = vset.pattern.permute.xlu0 0
      %1061 = vperm.xlu0 %1060, %v1053
      %v1062 = vpop.permute.xlu0 %1061
      %v1064 = vmul.f32 %v1048, %v1057
      %v1065 = vmul.f32 %v1049, %v1062
      %v1066 = vpack.c.bf16 %v1065, %v1064
      %v1067 = vld [vmem:[%s941] sm:$0xff]
      %v1068 = vld [vmem:[%s941 + $0x8] sm:$0xff]
      %v1069 = vld [vmem:[%s926] sm:$0xff]
      %v1070 = vld [vmem:[%s926 + $0x8] sm:$0xff]
      %v1071 = vrcp.pop %v1069
      %v1072 = vrcp.pop %v1070
      %1074 = vset.pattern.permute.xlu0 0
      %1075 = vperm.xlu0 %1074, %v1071
      %v1076 = vpop.permute.xlu0 %1075
      %1079 = vset.pattern.permute.xlu0 0
      %1080 = vperm.xlu0 %1079, %v1072
      %v1081 = vpop.permute.xlu0 %1080
      %v1083 = vmul.f32 %v1067, %v1076
      %v1084 = vmul.f32 %v1068, %v1081
      %v1085 = vpack.c.bf16 %v1084, %v1083
      %1087 = vrot.lane.b32.xlu0 %v1047, 8
      %v1088 = vpop.permute.xlu0 %1087
      %1090 = vrot.lane.b32.xlu0 %v1066, 16
      %v1091 = vpop.permute.xlu0 %1090
      %1093 = vrot.lane.b32.xlu0 %v1085, 24
      %v1094 = vpop.permute.xlu0 %1093
      %v1097 = vsel %vm318, %v1028, %v1088
      %v1099 = vsel %vm390, %v1097, %v1091
      %vm1100 = vcmask 195584
      %v1102 = vsel %vm1100, %v1099, %v1094
      %v1104 = vunpack.c.l.b16 %v1102
      %v1105 = vunpack.c.h.b16 %v1102
      %v1106 = vpack.c.b16 %v1104, %v1104
      %v1107 = vpack.c.b16 %v1105, %v1105
      %vm1110 = vcmask 257024
      %1111 = vst.msk [vmem:[%s296] sm:$0xf] %vm1110, %v1106
      %1112 = vst.msk [vmem:[%s296 + $0x4] sm:$0xf] %vm1110, %v1107
      %s1113 = smul.u32 2, %s21
      %p1114 = scmp.lt.s32.totalorder %s19, 1
      %s1115 = scalar_select %p1114, %s19, 1
      %p1116 = scmp.lt.s32.totalorder %s1113, 1
      %s1117 = scalar_select %p1116, %s1113, 1
      %p1118 = scmp.lt.s32.totalorder %s20, 0
      %s1119 = scalar_select %p1118, %s20, 0
      %s1120 = sadd.s32 %s1119, %s1117
      %s1121 = smul.addr %s1115, 2
      %s1122 = sadd.s32 %s1120, %s1121
      %s1123 = smul.addr %s1122, 4
      %s1124 = scalar_lea.vmem %s3, %s1123
      // Predicated region
      $region33: #{vit_forward.9} parent=31 // pred_check
        %p1125 = pneg %p141
      $region34: #{vit_forward.9} parent=31 // pred_check_branch
        %1127 = sbr.rel (%p1125) target = $region36
      $region35: #{vit_forward.9} parent=31 // pred_region
        %s1128 = smul.u32 2, %s21
      $region36: #{vit_forward.9} parent=31 // pred_fallthru
        _
    $region32: #{vit_forward.9} parent=5 // pred_fallthru
      _
    %p1129 = scmp.le.s32.totalorder 2, %s9
    // Predicated region
    $region37: #{vit_forward.9} parent=5 // pred_check
      %p1130 = pneg %p1129
    $region38: #{vit_forward.9} parent=5 // pred_check_branch
      %1132 = sbr.rel (%p1130) target = $region40
    $region39: #{vit_forward.9} parent=5 // pred_region
      %s1133 = ssub.s32 %s9, 2
      // Predicated region
      $region41: #{vit_forward.9} parent=39 // pred_check
        %p1134 = pneg %p147
      $region42: #{vit_forward.9} parent=39 // pred_check_branch
        %1136 = sbr.rel (%p1134) target = $region44
      $region43: #{vit_forward.9} parent=39 // pred_region
        %s1137 = smul.u32 2, %s24
        %p1138 = scmp.lt.s32.totalorder %s22, 1
        %s1139 = scalar_select %p1138, %s22, 1
        %p1140 = scmp.lt.s32.totalorder %s1137, 1
        %s1141 = scalar_select %p1140, %s1137, 1
        %p1142 = scmp.lt.s32.totalorder %s23, 0
        %s1143 = scalar_select %p1142, %s23, 0
        %s1144 = sadd.s32 %s1143, %s1141
        %s1145 = smul.addr %s1139, 2
        %s1146 = sadd.s32 %s1144, %s1145
        %s1147 = smul.addr %s1146, 4
        %s1148 = scalar_lea.vmem %s3, %s1147
      $region44: #{vit_forward.9} parent=39 // pred_fallthru
        _
    $region40: #{vit_forward.9} parent=5 // pred_fallthru
      _
  $region6: #{vit_forward.9} parent=0 // loop_footer
    %s13 = sadd.s32 1, %s9
  $region7: #{vit_forward.9} parent=0 // loop_footer_branch
    %8 = sbr.rel target = $region3
  $region8: #{vit_forward.9} parent=0 // loop_exit
    _

</llo_original>
